<compile_context>
chip_gen: v7x
topology: tpu7x:2x2x1
jax: 0.10.0
libtpu: 0.0.40
codegen_flags: <defaults>
</compile_context>

<pallas_src>
import math

import jax
import jax.numpy as jnp
from jax.experimental import pallas as pl
from jax.experimental.pallas import tpu as pltpu


# ----------------------------- config ---------------------------------------

IN_DIM = 16
WIDTH = 128
DEPTH = 8
SKIPS = (4,)                 # layer s+1 consumes cat([input, h]) for s in SKIPS
SPLITS = (1, WIDTH)          # [1, width] -> Softplus on first, Identity on rest
OUT_DIM = sum(SPLITS)
DEFAULT_TM = 1024            # max rows per tile; large tiles amortize ~0.35us/step


def _skip_layers(depth, skips):
    # layer (s + 1) consumes cat([input, h]) when s in skips
    return tuple(s + 1 for s in skips if 0 <= s < depth - 1)


def _softplus(x, beta=1.0, threshold=20.0):
    # matches torch.nn.Softplus (threshold guard for numerical stability)
    z = beta * x
    safe = jnp.minimum(z, threshold)
    return jnp.where(z > threshold, x, jnp.log1p(jnp.exp(safe)) / beta)


# ----------------------------- kernel ---------------------------------------

def make_kernel(depth, width, skip_layers, splits):
    skip_layers = tuple(sorted(skip_layers))
    # column offset of each skip layer's x_in-projection inside the fused xp
    skip_col = {l: width * (i + 1) for i, l in enumerate(skip_layers)}

    def kernel(x_ref, w0s_ref, wmid_ref, b_ref,
               wout_sp_ref, bout_sp_ref, wout_id_ref, bout_id_ref,
               o_sp_ref, o_id_ref):
        x_in = x_ref[...].astype(jnp.bfloat16)                       # (TM, in_dim)
        # Fused K=in_dim matmul: layer-0 weight and every skip-layer input
        # weight share x_in -> one MXU push, result reused at the skip layer.
        xp = jnp.dot(x_in, w0s_ref[...],
                     preferred_element_type=jnp.float32)             # (TM, W*(1+n_skip))
        h = jnp.maximum(xp[:, :width] + b_ref[0], 0.0)               # layer 0 + ReLU
        for l in range(1, depth):
            acc = jnp.dot(h.astype(jnp.bfloat16), wmid_ref[l - 1],
                          preferred_element_type=jnp.float32)
            if l in skip_col:
                c = skip_col[l]
                acc = acc + xp[:, c:c + width]                       # += x_in @ W[:in_dim]
            h = jnp.maximum(acc + b_ref[l], 0.0)                     # ReLU
        hb = h.astype(jnp.bfloat16)
        # Split output heads: Softplus head (s0 lanes) and Identity head (width lanes).
        y_sp = jnp.dot(hb, wout_sp_ref[...],
                       preferred_element_type=jnp.float32) + bout_sp_ref[...]
        y_id = jnp.dot(hb, wout_id_ref[...],
                       preferred_element_type=jnp.float32) + bout_id_ref[...]
        o_sp_ref[...] = _softplus(y_sp).astype(o_sp_ref.dtype)       # only s0 columns
        o_id_ref[...] = y_id.astype(o_id_ref.dtype)

    return kernel


# ----------------------------- params ---------------------------------------

def init_params(key, in_dim=IN_DIM, width=WIDTH, depth=DEPTH, splits=SPLITS, skips=SKIPS):
    """Synthetic nn.Linear-style init: U(-1/sqrt(fan_in), 1/sqrt(fan_in)).

    Weights are stored as (fan_in, width) so the forward is x @ W + b; for skip
    layers the first in_dim rows multiply the raw input (cat order [input, h]).
    """
    skip_layers = _skip_layers(depth, skips)
    keys = jax.random.split(key, depth + 1)
    Ws, Bs = [], []
    for l in range(depth):
        fan_in = (in_dim if l == 0 else width) + (in_dim if l in skip_layers else 0)
        bound = 1.0 / math.sqrt(fan_in)
        kw, kb = jax.random.split(keys[l])
        Ws.append(jax.random.uniform(kw, (fan_in, width), jnp.float32, -bound, bound))
        Bs.append(jax.random.uniform(kb, (1, width), jnp.float32, -bound, bound))
    out_dim = sum(splits)
    bound = 1.0 / math.sqrt(width)
    kw, kb = jax.random.split(keys[depth])
    w_out = jax.random.uniform(kw, (width, out_dim), jnp.float32, -bound, bound)
    b_out = jax.random.uniform(kb, (1, out_dim), jnp.float32, -bound, bound)
    return Ws, Bs, w_out, b_out


def pack_params(Ws, Bs, w_out, b_out, *, in_dim=IN_DIM, width=WIDTH, depth=DEPTH,
                splits=SPLITS, skips=SKIPS):
    """Pack parameters into a few grid-invariant kernel inputs (bf16 weights)."""
    skip_layers = tuple(sorted(_skip_layers(depth, skips)))
    # Fused first-layer RHS: [W0 | W_l[:in_dim] for each skip layer l]; all consume x_in.
    w0s = jnp.concatenate([Ws[0]] + [Ws[l][:in_dim] for l in skip_layers],
                          axis=1).astype(jnp.bfloat16)               # (in_dim, W*(1+n_skip))
    # Interior (h-consuming) weights for layers 1..depth-1, stacked.
    wmid = jnp.stack([Ws[l][in_dim:] if l in skip_layers else Ws[l]
                      for l in range(1, depth)]).astype(jnp.bfloat16)  # (depth-1, W, W)
    b_stack = jnp.stack(Bs)                                          # (depth, 1, W) f32
    s0 = splits[0]
    w_out_sp = w_out[:, :s0].astype(jnp.bfloat16)                    # (W, s0)
    w_out_id = w_out[:, s0:].astype(jnp.bfloat16)                    # (W, splits[1])
    b_out_sp = b_out[:, :s0]
    b_out_id = b_out[:, s0:]
    return (w0s, wmid, b_stack, w_out_sp, b_out_sp, w_out_id, b_out_id)


# ----------------------------- wrapper ---------------------------------------

def _choose_tiles(n, tm_max):
    """Pick (num_tiles, rows_per_tile): balanced tiles (minimal pad waste),
    >=2 tiles when rows allow it (v7x has 2 TensorCores), sublane-aligned."""
    g = max(1, -(-n // tm_max))          # ceil(n / tm_max)
    if g == 1 and n > 256:
        g = 2
    tm = -(-n // g)                      # ceil(n / g)
    tm = ((tm + 7) // 8) * 8             # sublane multiple of 8
    return g, tm


def split_regressor_forward(feat, packed_params, *, tm=DEFAULT_TM):
    lead = feat.shape[:-1]
    n = math.prod(lead)
    x = feat.reshape(n, IN_DIM)

    grid_m, tm = _choose_tiles(n, tm)
    n_pad = grid_m * tm
    if n_pad != n:
        x = jnp.pad(x, ((0, n_pad - n), (0, 0)))     # padded rows discarded below

    in_specs = [pl.BlockSpec((tm, IN_DIM), lambda i: (i, 0))]
    for p in packed_params:
        # whole, grid-invariant parameter blocks (block index never changes,
        # so Pallas keeps them resident in VMEM across grid steps)
        in_specs.append(pl.BlockSpec(p.shape, lambda i, nd=p.ndim: (0,) * nd))

    s0, s1 = SPLITS
    kernel = make_kernel(DEPTH, WIDTH, _skip_layers(DEPTH, SKIPS), SPLITS)
    y_sp, y_id = pl.pallas_call(
        kernel,
        out_shape=(jax.ShapeDtypeStruct((n_pad, s0), jnp.float32),
                   jax.ShapeDtypeStruct((n_pad, s1), jnp.float32)),
        grid=(grid_m,),
        in_specs=in_specs,
        out_specs=[pl.BlockSpec((tm, s0), lambda i: (i, 0)),
                   pl.BlockSpec((tm, s1), lambda i: (i, 0))],
        compiler_params=pltpu.CompilerParams(
            dimension_semantics=("parallel",)),
    )(x, *packed_params)

    y = jnp.concatenate([y_sp[:n], y_id[:n]], axis=-1)
    return y.reshape(*lead, OUT_DIM)


# ----------------------------- references (pure JAX) --------------------------

def reference_forward(feat, Ws, Bs, w_out, b_out):
    """f32 reference of SplitRegressor.forward (sequential_split=False)."""
    skip_layers = _skip_layers(DEPTH, SKIPS)
    inp = feat
    h = feat
    for l in range(DEPTH):
        xc = jnp.concatenate([inp, h], axis=-1) if l in skip_layers else h
        h = jnp.maximum(xc @ Ws[l] + Bs[l], 0.0)
    y = h @ w_out + b_out
    s0 = SPLITS[0]
    return jnp.concatenate([_softplus(y[..., :s0]), y[..., s0:]], axis=-1)


def reference_forward_mixed(feat, Ws, Bs, w_out, b_out):
    """Same math as the kernel: bf16 matmul operands, f32 accumulation."""
    skip_layers = _skip_layers(DEPTH, SKIPS)
    lead = feat.shape[:-1]
    x = feat.reshape(-1, IN_DIM)
    inp = x
    h = x
    for l in range(DEPTH):
        xc = jnp.concatenate([inp, h], axis=-1) if l in skip_layers else h
        acc = jnp.dot(xc.astype(jnp.bfloat16), Ws[l].astype(jnp.bfloat16),
                      preferred_element_type=jnp.float32)
        h = jnp.maximum(acc + Bs[l], 0.0)
    y = jnp.dot(h.astype(jnp.bfloat16), w_out.astype(jnp.bfloat16),
                preferred_element_type=jnp.float32) + b_out
    s0 = SPLITS[0]
    y = jnp.concatenate([_softplus(y[:, :s0]), y[:, s0:]], axis=-1)
    return y.reshape(*lead, OUT_DIM)


# ----------------------------- main ------------------------------------------

if __name__ == "__main__":
    key = jax.random.PRNGKey(0)
    kp, kx = jax.random.split(key)

    Ws, Bs, w_out, b_out = init_params(kp)
    packed = pack_params(Ws, Bs, w_out, b_out)

    B, P = 2, 384                      # feat: (B, P, in_dim), channels-last -> 768 rows
    feat = jax.random.normal(kx, (B, P, IN_DIM), jnp.float32)

    out = jax.block_until_ready(split_regressor_forward(feat, packed))
    assert out.shape == (B, P, OUT_DIM), out.shape

    ref_mixed = reference_forward_mixed(feat, Ws, Bs, w_out, b_out)
    ref_f32 = reference_forward(feat, Ws, Bs, w_out, b_out)
    err_mixed = float(jnp.max(jnp.abs(out - ref_mixed)))
    err_f32 = float(jnp.max(jnp.abs(out - ref_f32)))
    assert err_mixed < 1e-3, f"kernel vs same-precision reference: {err_mixed}"
    assert err_f32 < 3e-2, f"kernel (bf16 operands) vs f32 reference: {err_f32}"

    print("KERNEL_OK")
</pallas_src>

<mosaic_0001>
module attributes {stable_mosaic.version = 11 : i64} {
  func.func @kernel(%arg0: i32, %arg1: memref<384x16xf32, #tpu.memory_space<vmem>>, %arg2: memref<16x256xbf16, #tpu.memory_space<vmem>>, %arg3: memref<7x128x128xbf16, #tpu.memory_space<vmem>>, %arg4: memref<8x1x128xf32, #tpu.memory_space<vmem>>, %arg5: memref<128x1xbf16, #tpu.memory_space<vmem>>, %arg6: memref<1x1xf32, #tpu.memory_space<vmem>>, %arg7: memref<128x128xbf16, #tpu.memory_space<vmem>>, %arg8: memref<1x128xf32, #tpu.memory_space<vmem>>, %arg9: memref<384x1xf32, #tpu.memory_space<vmem>>, %arg10: memref<384x128xf32, #tpu.memory_space<vmem>>) attributes {dimension_semantics = [#tpu.dimension_semantics<parallel>], iteration_bounds = array<i64: 2>, scalar_prefetch = 0 : i64, scratch_operands = 0 : i64, tpu.core_type = #tpu.core_type<tc>, window_params = [{transform_indices = @transform_0, window_bounds = array<i64: 384, 16>}, {pipeline_mode = #tpu.pipeline_mode<synchronous>, transform_indices = @transform_1, window_bounds = array<i64: 16, 256>}, {pipeline_mode = #tpu.pipeline_mode<synchronous>, transform_indices = @transform_2, window_bounds = array<i64: 7, 128, 128>}, {pipeline_mode = #tpu.pipeline_mode<synchronous>, transform_indices = @transform_3, window_bounds = array<i64: 8, 1, 128>}, {pipeline_mode = #tpu.pipeline_mode<synchronous>, transform_indices = @transform_4, window_bounds = array<i64: 128, 1>}, {pipeline_mode = #tpu.pipeline_mode<synchronous>, transform_indices = @transform_5, window_bounds = array<i64: 1, 1>}, {pipeline_mode = #tpu.pipeline_mode<synchronous>, transform_indices = @transform_6, window_bounds = array<i64: 128, 128>}, {pipeline_mode = #tpu.pipeline_mode<synchronous>, transform_indices = @transform_7, window_bounds = array<i64: 1, 128>}, {transform_indices = @transform_8, window_bounds = array<i64: 384, 1>}, {transform_indices = @transform_9, window_bounds = array<i64: 384, 128>}]} {
    %c0 = arith.constant 0 : index
    %c0_0 = arith.constant 0 : index
    %0 = vector.load %arg1[%c0, %c0_0] : memref<384x16xf32, #tpu.memory_space<vmem>>, vector<384x16xf32>
    %1 = arith.truncf %0 : vector<384x16xf32> to vector<384x16xbf16>
    %c0_1 = arith.constant 0 : index
    %c0_2 = arith.constant 0 : index
    %2 = vector.load %arg2[%c0_1, %c0_2] : memref<16x256xbf16, #tpu.memory_space<vmem>>, vector<16x256xbf16>
    %cst = arith.constant dense<0.000000e+00> : vector<384x256xf32>
    %3 = tpu.matmul %1, %2, %cst {dimension_numbers = #tpu.dot_dimension_numbers<[1], [0], [0], [1], [0, 0, 1, 1], [], []>} : vector<384x16xbf16>, vector<16x256xbf16>, vector<384x256xf32> -> vector<384x256xf32>
    %4 = vector.extract_strided_slice %3 {offsets = [0, 0], sizes = [384, 128], strides = [1, 1]} : vector<384x256xf32> to vector<384x128xf32>
    %c0_3 = arith.constant 0 : index
    %c0_4 = arith.constant 0 : index
    %c0_5 = arith.constant 0 : index
    %5 = vector.load %arg4[%c0_3, %c0_4, %c0_5] : memref<8x1x128xf32, #tpu.memory_space<vmem>>, vector<1x1x128xf32>
    %6 = vector.shape_cast %5 : vector<1x1x128xf32> to vector<1x128xf32>
    %7 = vector.broadcast %6 : vector<1x128xf32> to vector<384x128xf32>
    %8 = arith.addf %4, %7 : vector<384x128xf32>
    %cst_6 = arith.constant 0.000000e+00 : f32
    %9 = vector.broadcast %cst_6 : f32 to vector<384x128xf32>
    %10 = arith.maximumf %8, %9 : vector<384x128xf32>
    %11 = arith.truncf %10 : vector<384x128xf32> to vector<384x128xbf16>
    %c0_7 = arith.constant 0 : index
    %c0_8 = arith.constant 0 : index
    %c0_9 = arith.constant 0 : index
    %12 = vector.load %arg3[%c0_7, %c0_8, %c0_9] : memref<7x128x128xbf16, #tpu.memory_space<vmem>>, vector<1x128x128xbf16>
    %13 = vector.shape_cast %12 : vector<1x128x128xbf16> to vector<128x128xbf16>
    %cst_10 = arith.constant dense<0.000000e+00> : vector<384x128xf32>
    %14 = tpu.matmul %11, %13, %cst_10 {dimension_numbers = #tpu.dot_dimension_numbers<[1], [0], [0], [1], [0, 0, 1, 1], [], []>} : vector<384x128xbf16>, vector<128x128xbf16>, vector<384x128xf32> -> vector<384x128xf32>
    %c1 = arith.constant 1 : index
    %c0_11 = arith.constant 0 : index
    %c0_12 = arith.constant 0 : index
    %15 = vector.load %arg4[%c1, %c0_11, %c0_12] : memref<8x1x128xf32, #tpu.memory_space<vmem>>, vector<1x1x128xf32>
    %16 = vector.shape_cast %15 : vector<1x1x128xf32> to vector<1x128xf32>
    %17 = vector.broadcast %16 : vector<1x128xf32> to vector<384x128xf32>
    %18 = arith.addf %14, %17 : vector<384x128xf32>
    %cst_13 = arith.constant 0.000000e+00 : f32
    %19 = vector.broadcast %cst_13 : f32 to vector<384x128xf32>
    %20 = arith.maximumf %18, %19 : vector<384x128xf32>
    %21 = arith.truncf %20 : vector<384x128xf32> to vector<384x128xbf16>
    %c1_14 = arith.constant 1 : index
    %c0_15 = arith.constant 0 : index
    %c0_16 = arith.constant 0 : index
    %22 = vector.load %arg3[%c1_14, %c0_15, %c0_16] : memref<7x128x128xbf16, #tpu.memory_space<vmem>>, vector<1x128x128xbf16>
    %23 = vector.shape_cast %22 : vector<1x128x128xbf16> to vector<128x128xbf16>
    %cst_17 = arith.constant dense<0.000000e+00> : vector<384x128xf32>
    %24 = tpu.matmul %21, %23, %cst_17 {dimension_numbers = #tpu.dot_dimension_numbers<[1], [0], [0], [1], [0, 0, 1, 1], [], []>} : vector<384x128xbf16>, vector<128x128xbf16>, vector<384x128xf32> -> vector<384x128xf32>
    %c2 = arith.constant 2 : index
    %c0_18 = arith.constant 0 : index
    %c0_19 = arith.constant 0 : index
    %25 = vector.load %arg4[%c2, %c0_18, %c0_19] : memref<8x1x128xf32, #tpu.memory_space<vmem>>, vector<1x1x128xf32>
    %26 = vector.shape_cast %25 : vector<1x1x128xf32> to vector<1x128xf32>
    %27 = vector.broadcast %26 : vector<1x128xf32> to vector<384x128xf32>
    %28 = arith.addf %24, %27 : vector<384x128xf32>
    %cst_20 = arith.constant 0.000000e+00 : f32
    %29 = vector.broadcast %cst_20 : f32 to vector<384x128xf32>
    %30 = arith.maximumf %28, %29 : vector<384x128xf32>
    %31 = arith.truncf %30 : vector<384x128xf32> to vector<384x128xbf16>
    %c2_21 = arith.constant 2 : index
    %c0_22 = arith.constant 0 : index
    %c0_23 = arith.constant 0 : index
    %32 = vector.load %arg3[%c2_21, %c0_22, %c0_23] : memref<7x128x128xbf16, #tpu.memory_space<vmem>>, vector<1x128x128xbf16>
    %33 = vector.shape_cast %32 : vector<1x128x128xbf16> to vector<128x128xbf16>
    %cst_24 = arith.constant dense<0.000000e+00> : vector<384x128xf32>
    %34 = tpu.matmul %31, %33, %cst_24 {dimension_numbers = #tpu.dot_dimension_numbers<[1], [0], [0], [1], [0, 0, 1, 1], [], []>} : vector<384x128xbf16>, vector<128x128xbf16>, vector<384x128xf32> -> vector<384x128xf32>
    %c3 = arith.constant 3 : index
    %c0_25 = arith.constant 0 : index
    %c0_26 = arith.constant 0 : index
    %35 = vector.load %arg4[%c3, %c0_25, %c0_26] : memref<8x1x128xf32, #tpu.memory_space<vmem>>, vector<1x1x128xf32>
    %36 = vector.shape_cast %35 : vector<1x1x128xf32> to vector<1x128xf32>
    %37 = vector.broadcast %36 : vector<1x128xf32> to vector<384x128xf32>
    %38 = arith.addf %34, %37 : vector<384x128xf32>
    %cst_27 = arith.constant 0.000000e+00 : f32
    %39 = vector.broadcast %cst_27 : f32 to vector<384x128xf32>
    %40 = arith.maximumf %38, %39 : vector<384x128xf32>
    %41 = arith.truncf %40 : vector<384x128xf32> to vector<384x128xbf16>
    %c3_28 = arith.constant 3 : index
    %c0_29 = arith.constant 0 : index
    %c0_30 = arith.constant 0 : index
    %42 = vector.load %arg3[%c3_28, %c0_29, %c0_30] : memref<7x128x128xbf16, #tpu.memory_space<vmem>>, vector<1x128x128xbf16>
    %43 = vector.shape_cast %42 : vector<1x128x128xbf16> to vector<128x128xbf16>
    %cst_31 = arith.constant dense<0.000000e+00> : vector<384x128xf32>
    %44 = tpu.matmul %41, %43, %cst_31 {dimension_numbers = #tpu.dot_dimension_numbers<[1], [0], [0], [1], [0, 0, 1, 1], [], []>} : vector<384x128xbf16>, vector<128x128xbf16>, vector<384x128xf32> -> vector<384x128xf32>
    %c4 = arith.constant 4 : index
    %c0_32 = arith.constant 0 : index
    %c0_33 = arith.constant 0 : index
    %45 = vector.load %arg4[%c4, %c0_32, %c0_33] : memref<8x1x128xf32, #tpu.memory_space<vmem>>, vector<1x1x128xf32>
    %46 = vector.shape_cast %45 : vector<1x1x128xf32> to vector<1x128xf32>
    %47 = vector.broadcast %46 : vector<1x128xf32> to vector<384x128xf32>
    %48 = arith.addf %44, %47 : vector<384x128xf32>
    %cst_34 = arith.constant 0.000000e+00 : f32
    %49 = vector.broadcast %cst_34 : f32 to vector<384x128xf32>
    %50 = arith.maximumf %48, %49 : vector<384x128xf32>
    %51 = arith.truncf %50 : vector<384x128xf32> to vector<384x128xbf16>
    %c4_35 = arith.constant 4 : index
    %c0_36 = arith.constant 0 : index
    %c0_37 = arith.constant 0 : index
    %52 = vector.load %arg3[%c4_35, %c0_36, %c0_37] : memref<7x128x128xbf16, #tpu.memory_space<vmem>>, vector<1x128x128xbf16>
    %53 = vector.shape_cast %52 : vector<1x128x128xbf16> to vector<128x128xbf16>
    %cst_38 = arith.constant dense<0.000000e+00> : vector<384x128xf32>
    %54 = tpu.matmul %51, %53, %cst_38 {dimension_numbers = #tpu.dot_dimension_numbers<[1], [0], [0], [1], [0, 0, 1, 1], [], []>} : vector<384x128xbf16>, vector<128x128xbf16>, vector<384x128xf32> -> vector<384x128xf32>
    %55 = vector.extract_strided_slice %3 {offsets = [0, 128], sizes = [384, 128], strides = [1, 1]} : vector<384x256xf32> to vector<384x128xf32>
    %56 = arith.addf %54, %55 : vector<384x128xf32>
    %c5 = arith.constant 5 : index
    %c0_39 = arith.constant 0 : index
    %c0_40 = arith.constant 0 : index
    %57 = vector.load %arg4[%c5, %c0_39, %c0_40] : memref<8x1x128xf32, #tpu.memory_space<vmem>>, vector<1x1x128xf32>
    %58 = vector.shape_cast %57 : vector<1x1x128xf32> to vector<1x128xf32>
    %59 = vector.broadcast %58 : vector<1x128xf32> to vector<384x128xf32>
    %60 = arith.addf %56, %59 : vector<384x128xf32>
    %cst_41 = arith.constant 0.000000e+00 : f32
    %61 = vector.broadcast %cst_41 : f32 to vector<384x128xf32>
    %62 = arith.maximumf %60, %61 : vector<384x128xf32>
    %63 = arith.truncf %62 : vector<384x128xf32> to vector<384x128xbf16>
    %c5_42 = arith.constant 5 : index
    %c0_43 = arith.constant 0 : index
    %c0_44 = arith.constant 0 : index
    %64 = vector.load %arg3[%c5_42, %c0_43, %c0_44] : memref<7x128x128xbf16, #tpu.memory_space<vmem>>, vector<1x128x128xbf16>
    %65 = vector.shape_cast %64 : vector<1x128x128xbf16> to vector<128x128xbf16>
    %cst_45 = arith.constant dense<0.000000e+00> : vector<384x128xf32>
    %66 = tpu.matmul %63, %65, %cst_45 {dimension_numbers = #tpu.dot_dimension_numbers<[1], [0], [0], [1], [0, 0, 1, 1], [], []>} : vector<384x128xbf16>, vector<128x128xbf16>, vector<384x128xf32> -> vector<384x128xf32>
    %c6 = arith.constant 6 : index
    %c0_46 = arith.constant 0 : index
    %c0_47 = arith.constant 0 : index
    %67 = vector.load %arg4[%c6, %c0_46, %c0_47] : memref<8x1x128xf32, #tpu.memory_space<vmem>>, vector<1x1x128xf32>
    %68 = vector.shape_cast %67 : vector<1x1x128xf32> to vector<1x128xf32>
    %69 = vector.broadcast %68 : vector<1x128xf32> to vector<384x128xf32>
    %70 = arith.addf %66, %69 : vector<384x128xf32>
    %cst_48 = arith.constant 0.000000e+00 : f32
    %71 = vector.broadcast %cst_48 : f32 to vector<384x128xf32>
    %72 = arith.maximumf %70, %71 : vector<384x128xf32>
    %73 = arith.truncf %72 : vector<384x128xf32> to vector<384x128xbf16>
    %c6_49 = arith.constant 6 : index
    %c0_50 = arith.constant 0 : index
    %c0_51 = arith.constant 0 : index
    %74 = vector.load %arg3[%c6_49, %c0_50, %c0_51] : memref<7x128x128xbf16, #tpu.memory_space<vmem>>, vector<1x128x128xbf16>
    %75 = vector.shape_cast %74 : vector<1x128x128xbf16> to vector<128x128xbf16>
    %cst_52 = arith.constant dense<0.000000e+00> : vector<384x128xf32>
    %76 = tpu.matmul %73, %75, %cst_52 {dimension_numbers = #tpu.dot_dimension_numbers<[1], [0], [0], [1], [0, 0, 1, 1], [], []>} : vector<384x128xbf16>, vector<128x128xbf16>, vector<384x128xf32> -> vector<384x128xf32>
    %c7 = arith.constant 7 : index
    %c0_53 = arith.constant 0 : index
    %c0_54 = arith.constant 0 : index
    %77 = vector.load %arg4[%c7, %c0_53, %c0_54] : memref<8x1x128xf32, #tpu.memory_space<vmem>>, vector<1x1x128xf32>
    %78 = vector.shape_cast %77 : vector<1x1x128xf32> to vector<1x128xf32>
    %79 = vector.broadcast %78 : vector<1x128xf32> to vector<384x128xf32>
    %80 = arith.addf %76, %79 : vector<384x128xf32>
    %cst_55 = arith.constant 0.000000e+00 : f32
    %81 = vector.broadcast %cst_55 : f32 to vector<384x128xf32>
    %82 = arith.maximumf %80, %81 : vector<384x128xf32>
    %83 = arith.truncf %82 : vector<384x128xf32> to vector<384x128xbf16>
    %c0_56 = arith.constant 0 : index
    %c0_57 = arith.constant 0 : index
    %84 = vector.load %arg5[%c0_56, %c0_57] : memref<128x1xbf16, #tpu.memory_space<vmem>>, vector<128x1xbf16>
    %cst_58 = arith.constant dense<0.000000e+00> : vector<384x1xf32>
    %85 = tpu.matmul %83, %84, %cst_58 {dimension_numbers = #tpu.dot_dimension_numbers<[1], [0], [0], [1], [0, 0, 1, 1], [], []>} : vector<384x128xbf16>, vector<128x1xbf16>, vector<384x1xf32> -> vector<384x1xf32>
    %c0_59 = arith.constant 0 : index
    %c0_60 = arith.constant 0 : index
    %86 = vector.load %arg6[%c0_59, %c0_60] : memref<1x1xf32, #tpu.memory_space<vmem>>, vector<1x1xf32>
    %87 = vector.broadcast %86 : vector<1x1xf32> to vector<384x1xf32>
    %88 = arith.addf %85, %87 : vector<384x1xf32>
    %c0_61 = arith.constant 0 : index
    %c0_62 = arith.constant 0 : index
    %89 = vector.load %arg7[%c0_61, %c0_62] : memref<128x128xbf16, #tpu.memory_space<vmem>>, vector<128x128xbf16>
    %cst_63 = arith.constant dense<0.000000e+00> : vector<384x128xf32>
    %90 = tpu.matmul %83, %89, %cst_63 {dimension_numbers = #tpu.dot_dimension_numbers<[1], [0], [0], [1], [0, 0, 1, 1], [], []>} : vector<384x128xbf16>, vector<128x128xbf16>, vector<384x128xf32> -> vector<384x128xf32>
    %c0_64 = arith.constant 0 : index
    %c0_65 = arith.constant 0 : index
    %91 = vector.load %arg8[%c0_64, %c0_65] : memref<1x128xf32, #tpu.memory_space<vmem>>, vector<1x128xf32>
    %92 = vector.broadcast %91 : vector<1x128xf32> to vector<384x128xf32>
    %93 = arith.addf %90, %92 : vector<384x128xf32>
    %cst_66 = arith.constant 1.000000e+00 : f32
    %94 = vector.broadcast %cst_66 : f32 to vector<384x1xf32>
    %95 = arith.mulf %94, %88 : vector<384x1xf32>
    %cst_67 = arith.constant 2.000000e+01 : f32
    %96 = vector.broadcast %cst_67 : f32 to vector<384x1xf32>
    %97 = arith.minimumf %95, %96 : vector<384x1xf32>
    %cst_68 = arith.constant 2.000000e+01 : f32
    %98 = vector.broadcast %cst_68 : f32 to vector<384x1xf32>
    %99 = arith.cmpf ogt, %95, %98 : vector<384x1xf32>
    %100 = math.exp %97 : vector<384x1xf32>
    %101 = math.log1p %100 : vector<384x1xf32>
    %cst_69 = arith.constant 1.000000e+00 : f32
    %102 = vector.broadcast %cst_69 : f32 to vector<384x1xf32>
    %103 = arith.divf %101, %102 : vector<384x1xf32>
    %104 = arith.select %99, %88, %103 : vector<384x1xi1>, vector<384x1xf32>
    %c0_70 = arith.constant 0 : index
    %c0_71 = arith.constant 0 : index
    %105 = vector.load %arg9[%c0_70, %c0_71] : memref<384x1xf32, #tpu.memory_space<vmem>>, vector<384x1xf32>
    tpu.vector_store %arg9[%c0_70, %c0_71], %104 {strides = array<i32>} : memref<384x1xf32, #tpu.memory_space<vmem>>, vector<384x1xf32>,
    %c0_72 = arith.constant 0 : index
    %c0_73 = arith.constant 0 : index
    %106 = vector.load %arg10[%c0_72, %c0_73] : memref<384x128xf32, #tpu.memory_space<vmem>>, vector<384x128xf32>
    tpu.vector_store %arg10[%c0_72, %c0_73], %93 {strides = array<i32>} : memref<384x128xf32, #tpu.memory_space<vmem>>, vector<384x128xf32>,
    return
  }
  func.func @transform_0(%arg0: i32) -> (i32, i32) {
    %c0_i32 = arith.constant 0 : i32
    %c0_i32_0 = arith.constant 0 : i32
    return %arg0, %c0_i32 : i32, i32
  }
  func.func @transform_1(%arg0: i32) -> (i32, i32) {
    %c0_i32 = arith.constant 0 : i32
    %c0_i32_0 = arith.constant 0 : i32
    %c0_i32_1 = arith.constant 0 : i32
    return %c0_i32, %c0_i32_0 : i32, i32
  }
  func.func @transform_2(%arg0: i32) -> (i32, i32, i32) {
    %c0_i32 = arith.constant 0 : i32
    %c0_i32_0 = arith.constant 0 : i32
    %c0_i32_1 = arith.constant 0 : i32
    %c0_i32_2 = arith.constant 0 : i32
    return %c0_i32, %c0_i32_0, %c0_i32_1 : i32, i32, i32
  }
  func.func @transform_3(%arg0: i32) -> (i32, i32, i32) {
    %c0_i32 = arith.constant 0 : i32
    %c0_i32_0 = arith.constant 0 : i32
    %c0_i32_1 = arith.constant 0 : i32
    %c0_i32_2 = arith.constant 0 : i32
    return %c0_i32, %c0_i32_0, %c0_i32_1 : i32, i32, i32
  }
  func.func @transform_4(%arg0: i32) -> (i32, i32) {
    %c0_i32 = arith.constant 0 : i32
    %c0_i32_0 = arith.constant 0 : i32
    %c0_i32_1 = arith.constant 0 : i32
    return %c0_i32, %c0_i32_0 : i32, i32
  }
  func.func @transform_5(%arg0: i32) -> (i32, i32) {
    %c0_i32 = arith.constant 0 : i32
    %c0_i32_0 = arith.constant 0 : i32
    %c0_i32_1 = arith.constant 0 : i32
    return %c0_i32, %c0_i32_0 : i32, i32
  }
  func.func @transform_6(%arg0: i32) -> (i32, i32) {
    %c0_i32 = arith.constant 0 : i32
    %c0_i32_0 = arith.constant 0 : i32
    %c0_i32_1 = arith.constant 0 : i32
    return %c0_i32, %c0_i32_0 : i32, i32
  }
  func.func @transform_7(%arg0: i32) -> (i32, i32) {
    %c0_i32 = arith.constant 0 : i32
    %c0_i32_0 = arith.constant 0 : i32
    %c0_i32_1 = arith.constant 0 : i32
    return %c0_i32, %c0_i32_0 : i32, i32
  }
  func.func @transform_8(%arg0: i32) -> (i32, i32) {
    %c0_i32 = arith.constant 0 : i32
    %c0_i32_0 = arith.constant 0 : i32
    return %arg0, %c0_i32 : i32, i32
  }
  func.func @transform_9(%arg0: i32) -> (i32, i32) {
    %c0_i32 = arith.constant 0 : i32
    %c0_i32_0 = arith.constant 0 : i32
    return %arg0, %c0_i32 : i32, i32
  }
}

</mosaic_0001>

<llo_original>
// kernel: tpu_custom_call.1
$region0: #{tpu_custom_call.1}
  #allocation0 [shape = 'u32[]', space=smem, size = 0x4, offset = 0x4, fixed_abs, tag = 'smem constant byte address 0x4 - core index']
  #allocation1 [shape = 'u32[144,128]{1,0:T(1,128)}', space=vmem, size = 0x12000, scoped, tag = 'internal scratch']
  #allocation2 [shape = 'f32[1,1]{1,0:T(1,128)S(1)}', space=vmem, size = 0x200, scoped, tag = 'scoped memory for tpu_custom_call.1']
  %s0 = inlined_call_operand.vmem [shape: f32[768,16], index: 0, kind: input, shape index: {}]
  %s1 = inlined_call_operand.vmem [shape: bf16[16,256], index: 1, kind: input, shape index: {}]
  %s2 = inlined_call_operand.vmem [shape: bf16[7,128,128], index: 2, kind: input, shape index: {}]
  %s3 = inlined_call_operand.vmem [shape: f32[8,1,128], index: 3, kind: input, shape index: {}]
  %s4 = inlined_call_operand.vmem [shape: bf16[128,1], index: 4, kind: input, shape index: {}]
  %s5 = inlined_call_operand.<no memory space> [shape: f32[1,1], index: 5, kind: input, shape index: {}]
  %s6 = inlined_call_operand.vmem [shape: bf16[128,128], index: 6, kind: input, shape index: {}]
  %s7 = inlined_call_operand.vmem [shape: f32[1,128], index: 7, kind: input, shape index: {}]
  %s8 = inlined_call_operand.vmem [shape: f32[768,1], index: 8, kind: output, shape index: {0}]
  %s9 = inlined_call_operand.hbm [shape: f32[768,128], index: 9, kind: output, shape index: {1}]
  %10 = xla_tuple %s8, %s9
  %s11 = sld [smem:[#allocation0]]
  $region73: #{tpu_custom_call.1} parent=0
    _
  %s13 = ssub.s32 1, %s11
  %s14 = scalar_select 0, %s13, %s11
  %v15 = vstv %s5
  %16 = vst [vmem:[#allocation2] sm:$0x1] %v15
  $region1: #{tpu_custom_call.1} parent=0
    #allocation3 [shape = 'u8[393216]{0}', space=vmem, size = 0x60000, scoped, tag = 'output window, operand 1']
    #allocation4 [shape = 's32[2]{0}', space=sflag, size = 0x8, scoped, tag = 'scoped memory for tpu_custom_call.1']
    %17 = vsyncpa [#allocation4], 0
    %s18 = scalar_lea.sflag [#allocation4], 1
    %19 = vsyncpa %s18, 0
    loop: start=0, step=1, limit=4
    $region2: #{tpu_custom_call.1} parent=1 // loop_pre_header
      _
    $region3: #{tpu_custom_call.1} parent=1 // loop_header
      %s21 = sphi 0, %s25
      %p22 = scmp.ge.s32.totalorder %s21, 4
      %s31 = sphi 0, %s33
      %s34 = sphi 0, %s31
      %s35 = sphi 0, %s34
      %s51 = sphi 0, %s35
      %s55 = sphi 0, %s55
      %s57 = sphi 0, %s55
      %s58 = sphi 0, %s57
      %s72 = sphi 0, %s58
      %s76 = sphi 0, %s76
      %s78 = sphi 0, %s76
      %s79 = sphi 0, %s78
      %s93 = sphi 0, %s79
      %s97 = sphi 0, %s97
      %s99 = sphi 0, %s97
      %s100 = sphi 0, %s99
      %s114 = sphi 0, %s100
      %s118 = sphi 0, %s118
      %s120 = sphi 0, %s118
      %s121 = sphi 0, %s120
      %s135 = sphi 0, %s121
      %s139 = sphi 0, %s139
      %s141 = sphi 0, %s139
      %s142 = sphi 0, %s141
      %s156 = sphi 0, %s142
      %s160 = sphi 0, %s160
      %s162 = sphi 0, %s160
      %s163 = sphi 0, %s162
      %s177 = sphi 0, %s163
      %s181 = sphi 0, %s181
      %s183 = sphi 0, %s181
      %s184 = sphi 0, %s183
      %s198 = sphi 0, %s184
      %s204 = sphi 0, %s206
      %s207 = sphi 0, %s204
      %s208 = sphi 0, %s207
      %s224 = sphi 0, %s208
      %s230 = sphi 0, %s232
      %s233 = sphi 0, %s230
      %s234 = sphi 0, %s233
      %s250 = sphi 0, %s234
    $region4: #{tpu_custom_call.1} parent=1 // loop_header_branch
      %24 = sbr.rel (%p22) target = $region8
    $region5: #{tpu_custom_call.1} parent=1 // loop_body
      %s26 = ssub.s32 %s21, 1
      %s27 = ssub.s32 %s21, 2
      %s28 = sadd.s32 %s21, 1
      %s29 = ssub.s32 %s21, %s28
      %p30 = scmp.eq.s32.totalorder %s29, 0
      %s32 = sadd.s32 %s31, 1
      %s33 = scalar_select %p30, %s31, %s32
      %p36 = pneg %p30
      %p37 = scmp.eq.s32.totalorder %s21, 1
      %p38 = por %p36, %p37
      %p39 = scmp.ne.s32.totalorder %s31, %s34
      %p40 = scmp.eq.s32.totalorder %s21, 0
      %p41 = por %p39, %p40
      %p42 = scmp.ne.s32.totalorder %s31, %s34
      %p43 = scmp.eq.s32.totalorder %s26, 1
      %p44 = por %p42, %p43
      %p45 = scmp.ne.s32.totalorder %s34, %s35
      %p46 = scmp.eq.s32.totalorder %s26, 0
      %p47 = por %p45, %p46
      %p48 = scmp.ne.s32.totalorder %s34, %s35
      %p49 = scmp.eq.s32.totalorder %s27, 1
      %p50 = por %p48, %p49
      %p52 = scmp.ne.s32.totalorder %s35, %s51
      %p53 = scmp.eq.s32.totalorder %s27, 0
      %p54 = por %p52, %p53
      %s56 = sadd.s32 %s55, 1
      %p59 = scmp.eq.s32.totalorder %s21, 1
      %p60 = scmp.ne.s32.totalorder %s55, %s57
      %p61 = scmp.eq.s32.totalorder %s21, 0
      %p62 = por %p60, %p61
      %p63 = scmp.ne.s32.totalorder %s55, %s57
      %p64 = scmp.eq.s32.totalorder %s26, 1
      %p65 = por %p63, %p64
      %p66 = scmp.ne.s32.totalorder %s57, %s58
      %p67 = scmp.eq.s32.totalorder %s26, 0
      %p68 = por %p66, %p67
      %p69 = scmp.ne.s32.totalorder %s57, %s58
      %p70 = scmp.eq.s32.totalorder %s27, 1
      %p71 = por %p69, %p70
      %p73 = scmp.ne.s32.totalorder %s58, %s72
      %p74 = scmp.eq.s32.totalorder %s27, 0
      %p75 = por %p73, %p74
      %s77 = sadd.s32 %s76, 1
      %p80 = scmp.eq.s32.totalorder %s21, 1
      %p81 = scmp.ne.s32.totalorder %s76, %s78
      %p82 = scmp.eq.s32.totalorder %s21, 0
      %p83 = por %p81, %p82
      %p84 = scmp.ne.s32.totalorder %s76, %s78
      %p85 = scmp.eq.s32.totalorder %s26, 1
      %p86 = por %p84, %p85
      %p87 = scmp.ne.s32.totalorder %s78, %s79
      %p88 = scmp.eq.s32.totalorder %s26, 0
      %p89 = por %p87, %p88
      %p90 = scmp.ne.s32.totalorder %s78, %s79
      %p91 = scmp.eq.s32.totalorder %s27, 1
      %p92 = por %p90, %p91
      %p94 = scmp.ne.s32.totalorder %s79, %s93
      %p95 = scmp.eq.s32.totalorder %s27, 0
      %p96 = por %p94, %p95
      %s98 = sadd.s32 %s97, 1
      %p101 = scmp.eq.s32.totalorder %s21, 1
      %p102 = scmp.ne.s32.totalorder %s97, %s99
      %p103 = scmp.eq.s32.totalorder %s21, 0
      %p104 = por %p102, %p103
      %p105 = scmp.ne.s32.totalorder %s97, %s99
      %p106 = scmp.eq.s32.totalorder %s26, 1
      %p107 = por %p105, %p106
      %p108 = scmp.ne.s32.totalorder %s99, %s100
      %p109 = scmp.eq.s32.totalorder %s26, 0
      %p110 = por %p108, %p109
      %p111 = scmp.ne.s32.totalorder %s99, %s100
      %p112 = scmp.eq.s32.totalorder %s27, 1
      %p113 = por %p111, %p112
      %p115 = scmp.ne.s32.totalorder %s100, %s114
      %p116 = scmp.eq.s32.totalorder %s27, 0
      %p117 = por %p115, %p116
      %s119 = sadd.s32 %s118, 1
      %p122 = scmp.eq.s32.totalorder %s21, 1
      %p123 = scmp.ne.s32.totalorder %s118, %s120
      %p124 = scmp.eq.s32.totalorder %s21, 0
      %p125 = por %p123, %p124
      %p126 = scmp.ne.s32.totalorder %s118, %s120
      %p127 = scmp.eq.s32.totalorder %s26, 1
      %p128 = por %p126, %p127
      %p129 = scmp.ne.s32.totalorder %s120, %s121
      %p130 = scmp.eq.s32.totalorder %s26, 0
      %p131 = por %p129, %p130
      %p132 = scmp.ne.s32.totalorder %s120, %s121
      %p133 = scmp.eq.s32.totalorder %s27, 1
      %p134 = por %p132, %p133
      %p136 = scmp.ne.s32.totalorder %s121, %s135
      %p137 = scmp.eq.s32.totalorder %s27, 0
      %p138 = por %p136, %p137
      %s140 = sadd.s32 %s139, 1
      %p143 = scmp.eq.s32.totalorder %s21, 1
      %p144 = scmp.ne.s32.totalorder %s139, %s141
      %p145 = scmp.eq.s32.totalorder %s21, 0
      %p146 = por %p144, %p145
      %p147 = scmp.ne.s32.totalorder %s139, %s141
      %p148 = scmp.eq.s32.totalorder %s26, 1
      %p149 = por %p147, %p148
      %p150 = scmp.ne.s32.totalorder %s141, %s142
      %p151 = scmp.eq.s32.totalorder %s26, 0
      %p152 = por %p150, %p151
      %p153 = scmp.ne.s32.totalorder %s141, %s142
      %p154 = scmp.eq.s32.totalorder %s27, 1
      %p155 = por %p153, %p154
      %p157 = scmp.ne.s32.totalorder %s142, %s156
      %p158 = scmp.eq.s32.totalorder %s27, 0
      %p159 = por %p157, %p158
      %s161 = sadd.s32 %s160, 1
      %p164 = scmp.eq.s32.totalorder %s21, 1
      %p165 = scmp.ne.s32.totalorder %s160, %s162
      %p166 = scmp.eq.s32.totalorder %s21, 0
      %p167 = por %p165, %p166
      %p168 = scmp.ne.s32.totalorder %s160, %s162
      %p169 = scmp.eq.s32.totalorder %s26, 1
      %p170 = por %p168, %p169
      %p171 = scmp.ne.s32.totalorder %s162, %s163
      %p172 = scmp.eq.s32.totalorder %s26, 0
      %p173 = por %p171, %p172
      %p174 = scmp.ne.s32.totalorder %s162, %s163
      %p175 = scmp.eq.s32.totalorder %s27, 1
      %p176 = por %p174, %p175
      %p178 = scmp.ne.s32.totalorder %s163, %s177
      %p179 = scmp.eq.s32.totalorder %s27, 0
      %p180 = por %p178, %p179
      %s182 = sadd.s32 %s181, 1
      %p185 = scmp.eq.s32.totalorder %s21, 1
      %p186 = scmp.ne.s32.totalorder %s181, %s183
      %p187 = scmp.eq.s32.totalorder %s21, 0
      %p188 = por %p186, %p187
      %p189 = scmp.ne.s32.totalorder %s181, %s183
      %p190 = scmp.eq.s32.totalorder %s26, 1
      %p191 = por %p189, %p190
      %p192 = scmp.ne.s32.totalorder %s183, %s184
      %p193 = scmp.eq.s32.totalorder %s26, 0
      %p194 = por %p192, %p193
      %p195 = scmp.ne.s32.totalorder %s183, %s184
      %p196 = scmp.eq.s32.totalorder %s27, 1
      %p197 = por %p195, %p196
      %p199 = scmp.ne.s32.totalorder %s184, %s198
      %p200 = scmp.eq.s32.totalorder %s27, 0
      %p201 = por %p199, %p200
      %s202 = ssub.s32 %s21, %s28
      %p203 = scmp.eq.s32.totalorder %s202, 0
      %s205 = sadd.s32 %s204, 1
      %s206 = scalar_select %p203, %s204, %s205
      %p209 = pneg %p203
      %p210 = scmp.eq.s32.totalorder %s21, 1
      %p211 = por %p209, %p210
      %p212 = scmp.ne.s32.totalorder %s204, %s207
      %p213 = scmp.eq.s32.totalorder %s21, 0
      %p214 = por %p212, %p213
      %p215 = scmp.ne.s32.totalorder %s204, %s207
      %p216 = scmp.eq.s32.totalorder %s26, 1
      %p217 = por %p215, %p216
      %p218 = scmp.ne.s32.totalorder %s207, %s208
      %p219 = scmp.eq.s32.totalorder %s26, 0
      %p220 = por %p218, %p219
      %p221 = scmp.ne.s32.totalorder %s207, %s208
      %p222 = scmp.eq.s32.totalorder %s27, 1
      %p223 = por %p221, %p222
      %p225 = scmp.ne.s32.totalorder %s208, %s224
      %p226 = scmp.eq.s32.totalorder %s27, 0
      %p227 = por %p225, %p226
      %s228 = ssub.s32 %s21, %s28
      %p229 = scmp.eq.s32.totalorder %s228, 0
      %s231 = sadd.s32 %s230, 1
      %s232 = scalar_select %p229, %s230, %s231
      %p235 = pneg %p229
      %p236 = scmp.eq.s32.totalorder %s21, 1
      %p237 = por %p235, %p236
      %p238 = scmp.ne.s32.totalorder %s230, %s233
      %p239 = scmp.eq.s32.totalorder %s21, 0
      %p240 = por %p238, %p239
      %p241 = scmp.ne.s32.totalorder %s230, %s233
      %p242 = scmp.eq.s32.totalorder %s26, 1
      %p243 = por %p241, %p242
      %p244 = scmp.ne.s32.totalorder %s233, %s234
      %p245 = scmp.eq.s32.totalorder %s26, 0
      %p246 = por %p244, %p245
      %p247 = scmp.ne.s32.totalorder %s233, %s234
      %p248 = scmp.eq.s32.totalorder %s27, 1
      %p249 = por %p247, %p248
      %p251 = scmp.ne.s32.totalorder %s234, %s250
      %p252 = scmp.eq.s32.totalorder %s27, 0
      %p253 = por %p251, %p252
      %p254 = scmp.le.s32.totalorder 1, %s21
      %p255 = scmp.lt.s32.totalorder %s21, 3
      %p256 = pnand %p254, %p255
      %p257 = pneg %p256
      // Predicated region
      $region9: #{tpu_custom_call.1} parent=5 // pred_check
        _
      $region10: #{tpu_custom_call.1} parent=5 // pred_check_branch
        %259 = sbr.rel (%p256) target = $region12
      $region11: #{tpu_custom_call.1} parent=5 // pred_region
        %s260 = ssub.s32 %s21, 1
        // Predicated region
        $region13: #{tpu_custom_call.1} parent=11 // pred_check
          %p261 = pneg %p68
        $region14: #{tpu_custom_call.1} parent=11 // pred_check_branch
          %263 = sbr.rel (%p261) target = $region16
        $region15: #{tpu_custom_call.1} parent=11 // pred_region
          _
        $region16: #{tpu_custom_call.1} parent=11 // pred_fallthru
          _
        // Predicated region
        $region17: #{tpu_custom_call.1} parent=11 // pred_check
          %p264 = pneg %p89
        $region18: #{tpu_custom_call.1} parent=11 // pred_check_branch
          %266 = sbr.rel (%p264) target = $region20
        $region19: #{tpu_custom_call.1} parent=11 // pred_region
          _
        $region20: #{tpu_custom_call.1} parent=11 // pred_fallthru
          _
        // Predicated region
        $region21: #{tpu_custom_call.1} parent=11 // pred_check
          %p267 = pneg %p110
        $region22: #{tpu_custom_call.1} parent=11 // pred_check_branch
          %269 = sbr.rel (%p267) target = $region24
        $region23: #{tpu_custom_call.1} parent=11 // pred_region
          _
        $region24: #{tpu_custom_call.1} parent=11 // pred_fallthru
          _
        // Predicated region
        $region25: #{tpu_custom_call.1} parent=11 // pred_check
          %p270 = pneg %p131
        $region26: #{tpu_custom_call.1} parent=11 // pred_check_branch
          %272 = sbr.rel (%p270) target = $region28
        $region27: #{tpu_custom_call.1} parent=11 // pred_region
          _
        $region28: #{tpu_custom_call.1} parent=11 // pred_fallthru
          _
        // Predicated region
        $region29: #{tpu_custom_call.1} parent=11 // pred_check
          %p273 = pneg %p152
        $region30: #{tpu_custom_call.1} parent=11 // pred_check_branch
          %275 = sbr.rel (%p273) target = $region32
        $region31: #{tpu_custom_call.1} parent=11 // pred_region
          _
        $region32: #{tpu_custom_call.1} parent=11 // pred_fallthru
          _
        // Predicated region
        $region33: #{tpu_custom_call.1} parent=11 // pred_check
          %p276 = pneg %p173
        $region34: #{tpu_custom_call.1} parent=11 // pred_check_branch
          %278 = sbr.rel (%p276) target = $region36
        $region35: #{tpu_custom_call.1} parent=11 // pred_region
          _
        $region36: #{tpu_custom_call.1} parent=11 // pred_fallthru
          _
        // Predicated region
        $region37: #{tpu_custom_call.1} parent=11 // pred_check
          %p279 = pneg %p194
        $region38: #{tpu_custom_call.1} parent=11 // pred_check_branch
          %281 = sbr.rel (%p279) target = $region40
        $region39: #{tpu_custom_call.1} parent=11 // pred_region
          _
        $region40: #{tpu_custom_call.1} parent=11 // pred_fallthru
          _
      $region12: #{tpu_custom_call.1} parent=5 // pred_fallthru
        _
      %p282 = scmp.lt.s32.totalorder %s21, 2
      // Predicated region
      $region41: #{tpu_custom_call.1} parent=5 // pred_check
        %p283 = pneg %p282
      $region42: #{tpu_custom_call.1} parent=5 // pred_check_branch
        %285 = sbr.rel (%p283) target = $region44
      $region43: #{tpu_custom_call.1} parent=5 // pred_region
        // Predicated region
        $region45: #{tpu_custom_call.1} parent=43 // pred_check
          %p286 = pneg %p41
        $region46: #{tpu_custom_call.1} parent=43 // pred_check_branch
          %288 = sbr.rel (%p286) target = $region48
        $region47: #{tpu_custom_call.1} parent=43 // pred_region
          %s289 = smul.u32 48, %s21
          %p290 = scmp.lt.s32.totalorder %s289, 95
          %s291 = scalar_select %p290, %s289, 95
          %s292 = smul.addr %s291, 8
          %s293 = scalar_lea.vmem %s0, %s292
          %s294 = smul.u32 48, %s21
        $region48: #{tpu_custom_call.1} parent=43 // pred_fallthru
          _
      $region44: #{tpu_custom_call.1} parent=5 // pred_fallthru
        _
      %p295 = scmp.le.s32.totalorder 1, %s21
      %p296 = scmp.lt.s32.totalorder %s21, 3
      %p297 = pnand %p295, %p296
      %p298 = pneg %p297
      // Predicated region
      $region49: #{tpu_custom_call.1} parent=5 // pred_check
        _
      $region50: #{tpu_custom_call.1} parent=5 // pred_check_branch
        %300 = sbr.rel (%p297) target = $region52
      $region51: #{tpu_custom_call.1} parent=5 // pred_region
        %s301 = ssub.s32 %s21, 1
        %s302 = smul.u32 48, %s26
        %p303 = scmp.lt.s32.totalorder %s302, 95
        %s304 = scalar_select %p303, %s302, 95
        %s305 = smul.addr %s304, 8
        %s306 = scalar_lea.vmem %s0, %s305
        %p307 = pneg %p47
        %p308 = pneg %p44
        %p309 = pneg %p68
        %p310 = pneg %p65
        %p311 = pneg %p89
        %p312 = pneg %p86
        %p313 = pneg %p110
        %p314 = pneg %p107
        %p315 = pneg %p131
        %p316 = pneg %p128
        %p317 = pneg %p152
        %p318 = pneg %p149
        %p319 = pneg %p173
        %p320 = pneg %p170
        %p321 = pneg %p194
        %p322 = pneg %p191
        %p323 = pneg %p220
        %p324 = pneg %p217
        %s325 = smul.u32 48, %s26
        %p326 = scmp.lt.s32.totalorder %s325, 95
        %s327 = scalar_select %p326, %s325, 95
        %s328 = smul.addr %s327, 8
        %s329 = scalar_lea.vmem %s8, %s328
        %p330 = pneg %p246
        %p331 = pneg %p243
        %s332 = sand.u32 %s233, 1
        %s333 = scalar_lea.sflag [#allocation4], %s332
        %s334 = sand.u32 %s233, 1
        %s335 = smul.addr %s334, 384
        %s336 = scalar_lea.vmem [#allocation3], %s335
        %s337 = smul.u32 48, %s26
        %p338 = scmp.lt.s32.totalorder %s337, 95
        %s339 = scalar_select %p338, %s337, 95
        %s340 = smul.addr %s339, 8
        %s341 = scalar_lea.vmem %s0, %s340
        %s342 = smul.u32 48, %s26
        %s343 = smul.u32 48, %s26
        %p344 = scmp.lt.s32.totalorder %s343, 95
        %s345 = scalar_select %p344, %s343, 95
        %s346 = smul.addr %s345, 8
        %s347 = scalar_lea.vmem %s8, %s346
        %s348 = smul.u32 48, %s26
        %s349 = smul.u32 48, %s26
        %v351 = vld [vmem:[%s341] sm:$0xff]
        %v352 = vld [vmem:[%s341 + $0x8] sm:$0xff]
        %v353 = vld [vmem:[%s341 + $0x10] sm:$0xff]
        %v354 = vld [vmem:[%s341 + $0x18] sm:$0xff]
        %v355 = vld [vmem:[%s341 + $0x20] sm:$0xff]
        %v356 = vld [vmem:[%s341 + $0x28] sm:$0xff]
        %v357 = vld [vmem:[%s341 + $0x30] sm:$0xff]
        %v358 = vld [vmem:[%s341 + $0x38] sm:$0xff]
        %v359 = vld [vmem:[%s341 + $0x40] sm:$0xff]
        %v360 = vld [vmem:[%s341 + $0x48] sm:$0xff]
        %v361 = vld [vmem:[%s341 + $0x50] sm:$0xff]
        %v362 = vld [vmem:[%s341 + $0x58] sm:$0xff]
        %v363 = vld [vmem:[%s341 + $0x60] sm:$0xff]
        %v364 = vld [vmem:[%s341 + $0x68] sm:$0xff]
        %v365 = vld [vmem:[%s341 + $0x70] sm:$0xff]
        %v366 = vld [vmem:[%s341 + $0x78] sm:$0xff]
        %v367 = vld [vmem:[%s341 + $0x80] sm:$0xff]
        %v368 = vld [vmem:[%s341 + $0x88] sm:$0xff]
        %v369 = vld [vmem:[%s341 + $0x90] sm:$0xff]
        %v370 = vld [vmem:[%s341 + $0x98] sm:$0xff]
        %v371 = vld [vmem:[%s341 + $0xa0] sm:$0xff]
        %v372 = vld [vmem:[%s341 + $0xa8] sm:$0xff]
        %v373 = vld [vmem:[%s341 + $0xb0] sm:$0xff]
        %v374 = vld [vmem:[%s341 + $0xb8] sm:$0xff]
        %v375 = vld [vmem:[%s341 + $0xc0] sm:$0xff]
        %v376 = vld [vmem:[%s341 + $0xc8] sm:$0xff]
        %v377 = vld [vmem:[%s341 + $0xd0] sm:$0xff]
        %v378 = vld [vmem:[%s341 + $0xd8] sm:$0xff]
        %v379 = vld [vmem:[%s341 + $0xe0] sm:$0xff]
        %v380 = vld [vmem:[%s341 + $0xe8] sm:$0xff]
        %v381 = vld [vmem:[%s341 + $0xf0] sm:$0xff]
        %v382 = vld [vmem:[%s341 + $0xf8] sm:$0xff]
        %v383 = vld [vmem:[%s341 + $0x100] sm:$0xff]
        %v384 = vld [vmem:[%s341 + $0x108] sm:$0xff]
        %v385 = vld [vmem:[%s341 + $0x110] sm:$0xff]
        %v386 = vld [vmem:[%s341 + $0x118] sm:$0xff]
        %v387 = vld [vmem:[%s341 + $0x120] sm:$0xff]
        %v388 = vld [vmem:[%s341 + $0x128] sm:$0xff]
        %v389 = vld [vmem:[%s341 + $0x130] sm:$0xff]
        %v390 = vld [vmem:[%s341 + $0x138] sm:$0xff]
        %v391 = vld [vmem:[%s341 + $0x140] sm:$0xff]
        %v392 = vld [vmem:[%s341 + $0x148] sm:$0xff]
        %v393 = vld [vmem:[%s341 + $0x150] sm:$0xff]
        %v394 = vld [vmem:[%s341 + $0x158] sm:$0xff]
        %v395 = vld [vmem:[%s341 + $0x160] sm:$0xff]
        %v396 = vld [vmem:[%s341 + $0x168] sm:$0xff]
        %v397 = vld [vmem:[%s341 + $0x170] sm:$0xff]
        %v398 = vld [vmem:[%s341 + $0x178] sm:$0xff]
        %v399 = vpack.c.bf16 %v352, %v351
        %v400 = vpack.c.bf16 %v354, %v353
        %v401 = vpack.c.bf16 %v356, %v355
        %v402 = vpack.c.bf16 %v358, %v357
        %v403 = vpack.c.bf16 %v360, %v359
        %v404 = vpack.c.bf16 %v362, %v361
        %v405 = vpack.c.bf16 %v364, %v363
        %v406 = vpack.c.bf16 %v366, %v365
        %v407 = vpack.c.bf16 %v368, %v367
        %v408 = vpack.c.bf16 %v370, %v369
        %v409 = vpack.c.bf16 %v372, %v371
        %v410 = vpack.c.bf16 %v374, %v373
        %v411 = vpack.c.bf16 %v376, %v375
        %v412 = vpack.c.bf16 %v378, %v377
        %v413 = vpack.c.bf16 %v380, %v379
        %v414 = vpack.c.bf16 %v382, %v381
        %v415 = vpack.c.bf16 %v384, %v383
        %v416 = vpack.c.bf16 %v386, %v385
        %v417 = vpack.c.bf16 %v388, %v387
        %v418 = vpack.c.bf16 %v390, %v389
        %v419 = vpack.c.bf16 %v392, %v391
        %v420 = vpack.c.bf16 %v394, %v393
        %v421 = vpack.c.bf16 %v396, %v395
        %v422 = vpack.c.bf16 %v398, %v397
        %v423 = vld [vmem:[%s1] sm:$0xff]
        %v424 = vld [vmem:[%s1 + $0x8] sm:$0xff]
        %v427 = vunpack.c.l.b16 %v423
        %v428 = vunpack.c.h.b16 %v423
        %v429 = vunpack.c.l.b16 %v424
        %v430 = vunpack.c.h.b16 %v424
        %v431 = vpack.c.b16 %v429, %v427
        %v432 = vpack.c.b16 %v430, %v428
        %vm435 = vcmask 130048
        %v437 = vsel %vm435, %v399, 0
        %v440 = vsel %vm435, %v400, 0
        %v443 = vsel %vm435, %v401, 0
        %v446 = vsel %vm435, %v402, 0
        %v449 = vsel %vm435, %v403, 0
        %v452 = vsel %vm435, %v404, 0
        %v455 = vsel %vm435, %v405, 0
        %v458 = vsel %vm435, %v406, 0
        %v461 = vsel %vm435, %v407, 0
        %v464 = vsel %vm435, %v408, 0
        %v467 = vsel %vm435, %v409, 0
        %v470 = vsel %vm435, %v410, 0
        %v473 = vsel %vm435, %v411, 0
        %v476 = vsel %vm435, %v412, 0
        %v479 = vsel %vm435, %v413, 0
        %v482 = vsel %vm435, %v414, 0
        %v485 = vsel %vm435, %v415, 0
        %v488 = vsel %vm435, %v416, 0
        %v491 = vsel %vm435, %v417, 0
        %v494 = vsel %vm435, %v418, 0
        %v497 = vsel %vm435, %v419, 0
        %v500 = vsel %vm435, %v420, 0
        %v503 = vsel %vm435, %v421, 0
        %v506 = vsel %vm435, %v422, 0
        %508 = vmatprep.subr.bf16.mxu0 %v432
        %509 = vmatpush1.bf16.msra.mxu0 %v431
        %510 = vmatprep.subr.bf16.mxu0 0
        %511 = vmatpush1.bf16.msra.mxu0 0
        %512 = vmatprep.subr.bf16.mxu0 0
        %513 = vmatpush1.bf16.msra.mxu0 0
        %514 = vmatprep.subr.bf16.mxu0 0
        %515 = vmatpush1.bf16.msra.mxu0 0
        %516 = vmatprep.subr.bf16.mxu0 0
        %517 = vmatpush1.bf16.msra.mxu0 0
        %518 = vmatprep.subr.bf16.mxu0 0
        %519 = vmatpush1.bf16.msra.mxu0 0
        %520 = vmatprep.subr.bf16.mxu0 0
        %521 = vmatpush1.bf16.msra.mxu0 0
        %522 = vmatprep.subr.bf16.mxu0 0
        %523 = vmatpush1.bf16.msra.mxu0 0
        %524 = vmatprep.subr.bf16.mxu0 0
        %525 = vmatpush1.bf16.msra.mxu0 0
        %526 = vmatprep.subr.bf16.mxu0 0
        %527 = vmatpush1.bf16.msra.mxu0 0
        %528 = vmatprep.subr.bf16.mxu0 0
        %529 = vmatpush1.bf16.msra.mxu0 0
        %530 = vmatprep.subr.bf16.mxu0 0
        %531 = vmatpush1.bf16.msra.mxu0 0
        %532 = vmatprep.subr.bf16.mxu0 0
        %533 = vmatpush1.bf16.msra.mxu0 0
        %534 = vmatprep.subr.bf16.mxu0 0
        %535 = vmatpush1.bf16.msra.mxu0 0
        %536 = vmatprep.subr.bf16.mxu0 0
        %537 = vmatpush1.bf16.msra.mxu0 0
        %538 = vmatprep.subr.bf16.mxu0 0
        %539 = vmatpush1.bf16.msra.mxu0 0
        %540 = vmatprep.mubr.bf16.mxu0 0
        %541 = vmatmul.mubr.bf16.gmra.mrb[0].mxu0 %v437
        %v542 = vpop.f32.mrb[0].mxu0
        %v543 = vadd.f32 0.0, %v542
        %v544 = vpop.f32.mrb[0].mxu0
        %v545 = vadd.f32 0.0, %v544
        %v546 = vpop.f32.mrb[0].mxu0
        %v547 = vadd.f32 0.0, %v546
        %v548 = vpop.f32.mrb[0].mxu0
        %v549 = vadd.f32 0.0, %v548
        %550 = vmatprep.mubr.bf16.mxu0 0
        %551 = vmatmul.mubr.bf16.gmra.mrb[0].mxu0 %v440
        %v552 = vpop.f32.mrb[0].mxu0
        %v553 = vadd.f32 0.0, %v552
        %v554 = vpop.f32.mrb[0].mxu0
        %v555 = vadd.f32 0.0, %v554
        %v556 = vpop.f32.mrb[0].mxu0
        %v557 = vadd.f32 0.0, %v556
        %v558 = vpop.f32.mrb[0].mxu0
        %v559 = vadd.f32 0.0, %v558
        %560 = vmatprep.mubr.bf16.mxu0 0
        %561 = vmatmul.mubr.bf16.gmra.mrb[0].mxu0 %v443
        %v562 = vpop.f32.mrb[0].mxu0
        %v563 = vadd.f32 0.0, %v562
        %v564 = vpop.f32.mrb[0].mxu0
        %v565 = vadd.f32 0.0, %v564
        %v566 = vpop.f32.mrb[0].mxu0
        %v567 = vadd.f32 0.0, %v566
        %v568 = vpop.f32.mrb[0].mxu0
        %v569 = vadd.f32 0.0, %v568
        %570 = vmatprep.mubr.bf16.mxu0 0
        %571 = vmatmul.mubr.bf16.gmra.mrb[0].mxu0 %v446
        %v572 = vpop.f32.mrb[0].mxu0
        %v573 = vadd.f32 0.0, %v572
        %v574 = vpop.f32.mrb[0].mxu0
        %v575 = vadd.f32 0.0, %v574
        %v576 = vpop.f32.mrb[0].mxu0
        %v577 = vadd.f32 0.0, %v576
        %v578 = vpop.f32.mrb[0].mxu0
        %v579 = vadd.f32 0.0, %v578
        %580 = vmatprep.mubr.bf16.mxu0 0
        %581 = vmatmul.mubr.bf16.gmra.mrb[0].mxu0 %v449
        %v582 = vpop.f32.mrb[0].mxu0
        %v583 = vadd.f32 0.0, %v582
        %v584 = vpop.f32.mrb[0].mxu0
        %v585 = vadd.f32 0.0, %v584
        %v586 = vpop.f32.mrb[0].mxu0
        %v587 = vadd.f32 0.0, %v586
        %v588 = vpop.f32.mrb[0].mxu0
        %v589 = vadd.f32 0.0, %v588
        %590 = vmatprep.mubr.bf16.mxu0 0
        %591 = vmatmul.mubr.bf16.gmra.mrb[0].mxu0 %v452
        %v592 = vpop.f32.mrb[0].mxu0
        %v593 = vadd.f32 0.0, %v592
        %v594 = vpop.f32.mrb[0].mxu0
        %v595 = vadd.f32 0.0, %v594
        %v596 = vpop.f32.mrb[0].mxu0
        %v597 = vadd.f32 0.0, %v596
        %v598 = vpop.f32.mrb[0].mxu0
        %v599 = vadd.f32 0.0, %v598
        %600 = vmatprep.mubr.bf16.mxu0 0
        %601 = vmatmul.mubr.bf16.gmra.mrb[0].mxu0 %v455
        %v602 = vpop.f32.mrb[0].mxu0
        %v603 = vadd.f32 0.0, %v602
        %v604 = vpop.f32.mrb[0].mxu0
        %v605 = vadd.f32 0.0, %v604
        %v606 = vpop.f32.mrb[0].mxu0
        %v607 = vadd.f32 0.0, %v606
        %v608 = vpop.f32.mrb[0].mxu0
        %v609 = vadd.f32 0.0, %v608
        %610 = vmatprep.mubr.bf16.mxu0 0
        %611 = vmatmul.mubr.bf16.gmra.mrb[0].mxu0 %v458
        %v612 = vpop.f32.mrb[0].mxu0
        %v613 = vadd.f32 0.0, %v612
        %v614 = vpop.f32.mrb[0].mxu0
        %v615 = vadd.f32 0.0, %v614
        %v616 = vpop.f32.mrb[0].mxu0
        %v617 = vadd.f32 0.0, %v616
        %v618 = vpop.f32.mrb[0].mxu0
        %v619 = vadd.f32 0.0, %v618
        %620 = vmatprep.mubr.bf16.mxu0 0
        %621 = vmatmul.mubr.bf16.gmra.mrb[0].mxu0 %v461
        %v622 = vpop.f32.mrb[0].mxu0
        %v623 = vadd.f32 0.0, %v622
        %v624 = vpop.f32.mrb[0].mxu0
        %v625 = vadd.f32 0.0, %v624
        %v626 = vpop.f32.mrb[0].mxu0
        %v627 = vadd.f32 0.0, %v626
        %v628 = vpop.f32.mrb[0].mxu0
        %v629 = vadd.f32 0.0, %v628
        %630 = vmatprep.mubr.bf16.mxu0 0
        %631 = vmatmul.mubr.bf16.gmra.mrb[0].mxu0 %v464
        %v632 = vpop.f32.mrb[0].mxu0
        %v633 = vadd.f32 0.0, %v632
        %v634 = vpop.f32.mrb[0].mxu0
        %v635 = vadd.f32 0.0, %v634
        %v636 = vpop.f32.mrb[0].mxu0
        %v637 = vadd.f32 0.0, %v636
        %v638 = vpop.f32.mrb[0].mxu0
        %v639 = vadd.f32 0.0, %v638
        %640 = vmatprep.mubr.bf16.mxu0 0
        %641 = vmatmul.mubr.bf16.gmra.mrb[0].mxu0 %v467
        %v642 = vpop.f32.mrb[0].mxu0
        %v643 = vadd.f32 0.0, %v642
        %v644 = vpop.f32.mrb[0].mxu0
        %v645 = vadd.f32 0.0, %v644
        %v646 = vpop.f32.mrb[0].mxu0
        %v647 = vadd.f32 0.0, %v646
        %v648 = vpop.f32.mrb[0].mxu0
        %v649 = vadd.f32 0.0, %v648
        %650 = vmatprep.mubr.bf16.mxu0 0
        %651 = vmatmul.mubr.bf16.gmra.mrb[0].mxu0 %v470
        %v652 = vpop.f32.mrb[0].mxu0
        %v653 = vadd.f32 0.0, %v652
        %v654 = vpop.f32.mrb[0].mxu0
        %v655 = vadd.f32 0.0, %v654
        %v656 = vpop.f32.mrb[0].mxu0
        %v657 = vadd.f32 0.0, %v656
        %v658 = vpop.f32.mrb[0].mxu0
        %v659 = vadd.f32 0.0, %v658
        %660 = vmatprep.mubr.bf16.mxu0 0
        %661 = vmatmul.mubr.bf16.gmra.mrb[0].mxu0 %v473
        %v662 = vpop.f32.mrb[0].mxu0
        %v663 = vadd.f32 0.0, %v662
        %v664 = vpop.f32.mrb[0].mxu0
        %v665 = vadd.f32 0.0, %v664
        %v666 = vpop.f32.mrb[0].mxu0
        %v667 = vadd.f32 0.0, %v666
        %v668 = vpop.f32.mrb[0].mxu0
        %v669 = vadd.f32 0.0, %v668
        %670 = vmatprep.mubr.bf16.mxu0 0
        %671 = vmatmul.mubr.bf16.gmra.mrb[0].mxu0 %v476
        %v672 = vpop.f32.mrb[0].mxu0
        %v673 = vadd.f32 0.0, %v672
        %v674 = vpop.f32.mrb[0].mxu0
        %v675 = vadd.f32 0.0, %v674
        %v676 = vpop.f32.mrb[0].mxu0
        %v677 = vadd.f32 0.0, %v676
        %v678 = vpop.f32.mrb[0].mxu0
        %v679 = vadd.f32 0.0, %v678
        %680 = vmatprep.mubr.bf16.mxu0 0
        %681 = vmatmul.mubr.bf16.gmra.mrb[0].mxu0 %v479
        %v682 = vpop.f32.mrb[0].mxu0
        %v683 = vadd.f32 0.0, %v682
        %v684 = vpop.f32.mrb[0].mxu0
        %v685 = vadd.f32 0.0, %v684
        %v686 = vpop.f32.mrb[0].mxu0
        %v687 = vadd.f32 0.0, %v686
        %v688 = vpop.f32.mrb[0].mxu0
        %v689 = vadd.f32 0.0, %v688
        %690 = vmatprep.mubr.bf16.mxu0 0
        %691 = vmatmul.mubr.bf16.gmra.mrb[0].mxu0 %v482
        %v692 = vpop.f32.mrb[0].mxu0
        %v693 = vadd.f32 0.0, %v692
        %v694 = vpop.f32.mrb[0].mxu0
        %v695 = vadd.f32 0.0, %v694
        %v696 = vpop.f32.mrb[0].mxu0
        %v697 = vadd.f32 0.0, %v696
        %v698 = vpop.f32.mrb[0].mxu0
        %v699 = vadd.f32 0.0, %v698
        %700 = vmatprep.mubr.bf16.mxu0 0
        %701 = vmatmul.mubr.bf16.gmra.mrb[0].mxu0 %v485
        %v702 = vpop.f32.mrb[0].mxu0
        %v703 = vadd.f32 0.0, %v702
        %v704 = vpop.f32.mrb[0].mxu0
        %v705 = vadd.f32 0.0, %v704
        %v706 = vpop.f32.mrb[0].mxu0
        %v707 = vadd.f32 0.0, %v706
        %v708 = vpop.f32.mrb[0].mxu0
        %v709 = vadd.f32 0.0, %v708
        %710 = vmatprep.mubr.bf16.mxu0 0
        %711 = vmatmul.mubr.bf16.gmra.mrb[0].mxu0 %v488
        %v712 = vpop.f32.mrb[0].mxu0
        %v713 = vadd.f32 0.0, %v712
        %v714 = vpop.f32.mrb[0].mxu0
        %v715 = vadd.f32 0.0, %v714
        %v716 = vpop.f32.mrb[0].mxu0
        %v717 = vadd.f32 0.0, %v716
        %v718 = vpop.f32.mrb[0].mxu0
        %v719 = vadd.f32 0.0, %v718
        %720 = vmatprep.mubr.bf16.mxu0 0
        %721 = vmatmul.mubr.bf16.gmra.mrb[0].mxu0 %v491
        %v722 = vpop.f32.mrb[0].mxu0
        %v723 = vadd.f32 0.0, %v722
        %v724 = vpop.f32.mrb[0].mxu0
        %v725 = vadd.f32 0.0, %v724
        %v726 = vpop.f32.mrb[0].mxu0
        %v727 = vadd.f32 0.0, %v726
        %v728 = vpop.f32.mrb[0].mxu0
        %v729 = vadd.f32 0.0, %v728
        %730 = vmatprep.mubr.bf16.mxu0 0
        %731 = vmatmul.mubr.bf16.gmra.mrb[0].mxu0 %v494
        %v732 = vpop.f32.mrb[0].mxu0
        %v733 = vadd.f32 0.0, %v732
        %v734 = vpop.f32.mrb[0].mxu0
        %v735 = vadd.f32 0.0, %v734
        %v736 = vpop.f32.mrb[0].mxu0
        %v737 = vadd.f32 0.0, %v736
        %v738 = vpop.f32.mrb[0].mxu0
        %v739 = vadd.f32 0.0, %v738
        %740 = vmatprep.mubr.bf16.mxu0 0
        %741 = vmatmul.mubr.bf16.gmra.mrb[0].mxu0 %v497
        %v742 = vpop.f32.mrb[0].mxu0
        %v743 = vadd.f32 0.0, %v742
        %v744 = vpop.f32.mrb[0].mxu0
        %v745 = vadd.f32 0.0, %v744
        %v746 = vpop.f32.mrb[0].mxu0
        %v747 = vadd.f32 0.0, %v746
        %v748 = vpop.f32.mrb[0].mxu0
        %v749 = vadd.f32 0.0, %v748
        %750 = vmatprep.mubr.bf16.mxu0 0
        %751 = vmatmul.mubr.bf16.gmra.mrb[0].mxu0 %v500
        %v752 = vpop.f32.mrb[0].mxu0
        %v753 = vadd.f32 0.0, %v752
        %v754 = vpop.f32.mrb[0].mxu0
        %v755 = vadd.f32 0.0, %v754
        %v756 = vpop.f32.mrb[0].mxu0
        %v757 = vadd.f32 0.0, %v756
        %v758 = vpop.f32.mrb[0].mxu0
        %v759 = vadd.f32 0.0, %v758
        %760 = vmatprep.mubr.bf16.mxu0 0
        %761 = vmatmul.mubr.bf16.gmra.mrb[0].mxu0 %v503
        %v762 = vpop.f32.mrb[0].mxu0
        %v763 = vadd.f32 0.0, %v762
        %v764 = vpop.f32.mrb[0].mxu0
        %v765 = vadd.f32 0.0, %v764
        %v766 = vpop.f32.mrb[0].mxu0
        %v767 = vadd.f32 0.0, %v766
        %v768 = vpop.f32.mrb[0].mxu0
        %v769 = vadd.f32 0.0, %v768
        %770 = vmatprep.mubr.bf16.mxu0 0
        %771 = vmatmul.mubr.bf16.gmra.mrb[0].mxu0 %v506
        %v772 = vpop.f32.mrb[0].mxu0
        %v773 = vadd.f32 0.0, %v772
        %v774 = vpop.f32.mrb[0].mxu0
        %v775 = vadd.f32 0.0, %v774
        %v776 = vpop.f32.mrb[0].mxu0
        %v777 = vadd.f32 0.0, %v776
        %v778 = vpop.f32.mrb[0].mxu0
        %v779 = vadd.f32 0.0, %v778
        %780 = vdwg.mxu0
        %v781 = vld [vmem:[%s3] sm:$0x1]
        %v783 = vlaneseq
        %v784 = vshrl.u32 %v783, 7
        %v785 = vsub.s32 0, %v784
        %v786 = vrot.slane %v781, %v785
        %v788 = vadd.f32 %v543, %v786
        %v789 = vadd.f32 %v547, %v786
        %v790 = vadd.f32 %v553, %v786
        %v791 = vadd.f32 %v557, %v786
        %v792 = vadd.f32 %v563, %v786
        %v793 = vadd.f32 %v567, %v786
        %v794 = vadd.f32 %v573, %v786
        %v795 = vadd.f32 %v577, %v786
        %v796 = vadd.f32 %v583, %v786
        %v797 = vadd.f32 %v587, %v786
        %v798 = vadd.f32 %v593, %v786
        %v799 = vadd.f32 %v597, %v786
        %v800 = vadd.f32 %v603, %v786
        %v801 = vadd.f32 %v607, %v786
        %v802 = vadd.f32 %v613, %v786
        %v803 = vadd.f32 %v617, %v786
        %v804 = vadd.f32 %v623, %v786
        %v805 = vadd.f32 %v627, %v786
        %v806 = vadd.f32 %v633, %v786
        %v807 = vadd.f32 %v637, %v786
        %v808 = vadd.f32 %v643, %v786
        %v809 = vadd.f32 %v647, %v786
        %v810 = vadd.f32 %v653, %v786
        %v811 = vadd.f32 %v657, %v786
        %v812 = vadd.f32 %v663, %v786
        %v813 = vadd.f32 %v667, %v786
        %v814 = vadd.f32 %v673, %v786
        %v815 = vadd.f32 %v677, %v786
        %v816 = vadd.f32 %v683, %v786
        %v817 = vadd.f32 %v687, %v786
        %v818 = vadd.f32 %v693, %v786
        %v819 = vadd.f32 %v697, %v786
        %v820 = vadd.f32 %v703, %v786
        %v821 = vadd.f32 %v707, %v786
        %v822 = vadd.f32 %v713, %v786
        %v823 = vadd.f32 %v717, %v786
        %v824 = vadd.f32 %v723, %v786
        %v825 = vadd.f32 %v727, %v786
        %v826 = vadd.f32 %v733, %v786
        %v827 = vadd.f32 %v737, %v786
        %v828 = vadd.f32 %v743, %v786
        %v829 = vadd.f32 %v747, %v786
        %v830 = vadd.f32 %v753, %v786
        %v831 = vadd.f32 %v757, %v786
        %v832 = vadd.f32 %v763, %v786
        %v833 = vadd.f32 %v767, %v786
        %v834 = vadd.f32 %v773, %v786
        %v835 = vadd.f32 %v777, %v786
        %v836 = vmax.f32 %v788, 0.0
        %v837 = vmax.f32 %v789, 0.0
        %v838 = vmax.f32 %v790, 0.0
        %v839 = vmax.f32 %v791, 0.0
        %v840 = vmax.f32 %v792, 0.0
        %v841 = vmax.f32 %v793, 0.0
        %v842 = vmax.f32 %v794, 0.0
        %v843 = vmax.f32 %v795, 0.0
        %v844 = vmax.f32 %v796, 0.0
        %v845 = vmax.f32 %v797, 0.0
        %v846 = vmax.f32 %v798, 0.0
        %v847 = vmax.f32 %v799, 0.0
        %v848 = vmax.f32 %v800, 0.0
        %v849 = vmax.f32 %v801, 0.0
        %v850 = vmax.f32 %v802, 0.0
        %v851 = vmax.f32 %v803, 0.0
        %v852 = vmax.f32 %v804, 0.0
        %v853 = vmax.f32 %v805, 0.0
        %v854 = vmax.f32 %v806, 0.0
        %v855 = vmax.f32 %v807, 0.0
        %v856 = vmax.f32 %v808, 0.0
        %v857 = vmax.f32 %v809, 0.0
        %v858 = vmax.f32 %v810, 0.0
        %v859 = vmax.f32 %v811, 0.0
        %v860 = vmax.f32 %v812, 0.0
        %v861 = vmax.f32 %v813, 0.0
        %v862 = vmax.f32 %v814, 0.0
        %v863 = vmax.f32 %v815, 0.0
        %v864 = vmax.f32 %v816, 0.0
        %v865 = vmax.f32 %v817, 0.0
        %v866 = vmax.f32 %v818, 0.0
        %v867 = vmax.f32 %v819, 0.0
        %v868 = vmax.f32 %v820, 0.0
        %v869 = vmax.f32 %v821, 0.0
        %v870 = vmax.f32 %v822, 0.0
        %v871 = vmax.f32 %v823, 0.0
        %v872 = vmax.f32 %v824, 0.0
        %v873 = vmax.f32 %v825, 0.0
        %v874 = vmax.f32 %v826, 0.0
        %v875 = vmax.f32 %v827, 0.0
        %v876 = vmax.f32 %v828, 0.0
        %v877 = vmax.f32 %v829, 0.0
        %v878 = vmax.f32 %v830, 0.0
        %v879 = vmax.f32 %v831, 0.0
        %v880 = vmax.f32 %v832, 0.0
        %v881 = vmax.f32 %v833, 0.0
        %v882 = vmax.f32 %v834, 0.0
        %v883 = vmax.f32 %v835, 0.0
        %v884 = vpack.c.bf16 %v837, %v836
        %v885 = vpack.c.bf16 %v839, %v838
        %v886 = vpack.c.bf16 %v841, %v840
        %v887 = vpack.c.bf16 %v843, %v842
        %v888 = vpack.c.bf16 %v845, %v844
        %v889 = vpack.c.bf16 %v847, %v846
        %v890 = vpack.c.bf16 %v849, %v848
        %v891 = vpack.c.bf16 %v851, %v850
        %v892 = vpack.c.bf16 %v853, %v852
        %v893 = vpack.c.bf16 %v855, %v854
        %v894 = vpack.c.bf16 %v857, %v856
        %v895 = vpack.c.bf16 %v859, %v858
        %v896 = vpack.c.bf16 %v861, %v860
        %v897 = vpack.c.bf16 %v863, %v862
        %v898 = vpack.c.bf16 %v865, %v864
        %v899 = vpack.c.bf16 %v867, %v866
        %v900 = vpack.c.bf16 %v869, %v868
        %v901 = vpack.c.bf16 %v871, %v870
        %v902 = vpack.c.bf16 %v873, %v872
        %v903 = vpack.c.bf16 %v875, %v874
        %v904 = vpack.c.bf16 %v877, %v876
        %v905 = vpack.c.bf16 %v879, %v878
        %v906 = vpack.c.bf16 %v881, %v880
        %v907 = vpack.c.bf16 %v883, %v882
        %v908 = vld [vmem:[%s2] sm:$0xf]
        %v909 = vld [vmem:[%s2 + $0x4] sm:$0xf]
        %v910 = vld [vmem:[%s2 + $0x8] sm:$0xf]
        %v911 = vld [vmem:[%s2 + $0xc] sm:$0xf]
        %v912 = vld [vmem:[%s2 + $0x10] sm:$0xf]
        %v913 = vld [vmem:[%s2 + $0x14] sm:$0xf]
        %v914 = vld [vmem:[%s2 + $0x18] sm:$0xf]
        %v915 = vld [vmem:[%s2 + $0x1c] sm:$0xf]
        %v916 = vld [vmem:[%s2 + $0x20] sm:$0xf]
        %v917 = vld [vmem:[%s2 + $0x24] sm:$0xf]
        %v918 = vld [vmem:[%s2 + $0x28] sm:$0xf]
        %v919 = vld [vmem:[%s2 + $0x2c] sm:$0xf]
        %v920 = vld [vmem:[%s2 + $0x30] sm:$0xf]
        %v921 = vld [vmem:[%s2 + $0x34] sm:$0xf]
        %v922 = vld [vmem:[%s2 + $0x38] sm:$0xf]
        %v923 = vld [vmem:[%s2 + $0x3c] sm:$0xf]
        %s924 = scalar_lea.vmem %s3, 1
        %v925 = vld [vmem:[%s924] sm:$0x1]
        %v927 = vlaneseq
        %v928 = vshrl.u32 %v927, 7
        %v929 = vsub.s32 0, %v928
        %v930 = vrot.slane %v925, %v929
        %v948 = vunpack.c.l.b16 %v908
        %v949 = vunpack.c.l.b16 %v909
        %v950 = vunpack.c.l.b16 %v910
        %v951 = vunpack.c.l.b16 %v911
        %v952 = vunpack.c.l.b16 %v912
        %v953 = vunpack.c.l.b16 %v913
        %v954 = vunpack.c.l.b16 %v914
        %v955 = vunpack.c.l.b16 %v915
        %v956 = vunpack.c.l.b16 %v916
        %v957 = vunpack.c.l.b16 %v917
        %v958 = vunpack.c.l.b16 %v918
        %v959 = vunpack.c.l.b16 %v919
        %v960 = vunpack.c.l.b16 %v920
        %v961 = vunpack.c.l.b16 %v921
        %v962 = vunpack.c.l.b16 %v922
        %v963 = vunpack.c.l.b16 %v923
        %v964 = vpack.c.b16 %v949, %v948
        %v965 = vpack.c.b16 %v951, %v950
        %v966 = vpack.c.b16 %v953, %v952
        %v967 = vpack.c.b16 %v955, %v954
        %v968 = vpack.c.b16 %v957, %v956
        %v969 = vpack.c.b16 %v959, %v958
        %v970 = vpack.c.b16 %v961, %v960
        %v971 = vpack.c.b16 %v963, %v962
        %980 = vmatprep.subr.bf16.mxu0 0
        %981 = vmatpush1.bf16.msra.mxu0 %v964
        %982 = vmatprep.subr.bf16.mxu0 0
        %983 = vmatpush1.bf16.msra.mxu0 %v965
        %984 = vmatprep.subr.bf16.mxu0 0
        %985 = vmatpush1.bf16.msra.mxu0 %v966
        %986 = vmatprep.subr.bf16.mxu0 0
        %987 = vmatpush1.bf16.msra.mxu0 %v967
        %988 = vmatprep.subr.bf16.mxu0 0
        %989 = vmatpush1.bf16.msra.mxu0 %v968
        %990 = vmatprep.subr.bf16.mxu0 0
        %991 = vmatpush1.bf16.msra.mxu0 %v969
        %992 = vmatprep.subr.bf16.mxu0 0
        %993 = vmatpush1.bf16.msra.mxu0 %v970
        %994 = vmatprep.subr.bf16.mxu0 0
        %995 = vmatpush1.bf16.msra.mxu0 %v971
        %996 = vmatprep.subr.bf16.mxu0 0
        %997 = vmatpush1.bf16.msra.mxu0 0
        %998 = vmatprep.subr.bf16.mxu0 0
        %999 = vmatpush1.bf16.msra.mxu0 0
        %1000 = vmatprep.subr.bf16.mxu0 0
        %1001 = vmatpush1.bf16.msra.mxu0 0
        %1002 = vmatprep.subr.bf16.mxu0 0
        %1003 = vmatpush1.bf16.msra.mxu0 0
        %1004 = vmatprep.subr.bf16.mxu0 0
        %1005 = vmatpush1.bf16.msra.mxu0 0
        %1006 = vmatprep.subr.bf16.mxu0 0
        %1007 = vmatpush1.bf16.msra.mxu0 0
        %1008 = vmatprep.subr.bf16.mxu0 0
        %1009 = vmatpush1.bf16.msra.mxu0 0
        %1010 = vmatprep.subr.bf16.mxu0 0
        %1011 = vmatpush1.bf16.msra.mxu0 0
        %1012 = vmatprep.mubr.bf16.mxu0 0
        %1013 = vmatmul.mubr.bf16.gmra.mrb[0].mxu0 %v884
        %v1014 = vpop.f32.mrb[0].mxu0
        %v1015 = vadd.f32 %v930, %v1014
        %v1016 = vpop.f32.mrb[0].mxu0
        %v1017 = vpop.f32.mrb[0].mxu0
        %v1018 = vadd.f32 %v930, %v1017
        %v1019 = vpop.f32.mrb[0].mxu0
        %1020 = vmatprep.mubr.bf16.mxu0 0
        %1021 = vmatmul.mubr.bf16.gmra.mrb[0].mxu0 %v885
        %v1022 = vpop.f32.mrb[0].mxu0
        %v1023 = vadd.f32 %v930, %v1022
        %v1024 = vpop.f32.mrb[0].mxu0
        %v1025 = vpop.f32.mrb[0].mxu0
        %v1026 = vadd.f32 %v930, %v1025
        %v1027 = vpop.f32.mrb[0].mxu0
        %1028 = vmatprep.mubr.bf16.mxu0 0
        %1029 = vmatmul.mubr.bf16.gmra.mrb[0].mxu0 %v886
        %v1030 = vpop.f32.mrb[0].mxu0
        %v1031 = vadd.f32 %v930, %v1030
        %v1032 = vpop.f32.mrb[0].mxu0
        %v1033 = vpop.f32.mrb[0].mxu0
        %v1034 = vadd.f32 %v930, %v1033
        %v1035 = vpop.f32.mrb[0].mxu0
        %1036 = vmatprep.mubr.bf16.mxu0 0
        %1037 = vmatmul.mubr.bf16.gmra.mrb[0].mxu0 %v887
        %v1038 = vpop.f32.mrb[0].mxu0
        %v1039 = vadd.f32 %v930, %v1038
        %v1040 = vpop.f32.mrb[0].mxu0
        %v1041 = vpop.f32.mrb[0].mxu0
        %v1042 = vadd.f32 %v930, %v1041
        %v1043 = vpop.f32.mrb[0].mxu0
        %1044 = vmatprep.mubr.bf16.mxu0 0
        %1045 = vmatmul.mubr.bf16.gmra.mrb[0].mxu0 %v888
        %v1046 = vpop.f32.mrb[0].mxu0
        %v1047 = vadd.f32 %v930, %v1046
        %v1048 = vpop.f32.mrb[0].mxu0
        %v1049 = vpop.f32.mrb[0].mxu0
        %v1050 = vadd.f32 %v930, %v1049
        %v1051 = vpop.f32.mrb[0].mxu0
        %1052 = vmatprep.mubr.bf16.mxu0 0
        %1053 = vmatmul.mubr.bf16.gmra.mrb[0].mxu0 %v889
        %v1054 = vpop.f32.mrb[0].mxu0
        %v1055 = vadd.f32 %v930, %v1054
        %v1056 = vpop.f32.mrb[0].mxu0
        %v1057 = vpop.f32.mrb[0].mxu0
        %v1058 = vadd.f32 %v930, %v1057
        %v1059 = vpop.f32.mrb[0].mxu0
        %1060 = vmatprep.mubr.bf16.mxu0 0
        %1061 = vmatmul.mubr.bf16.gmra.mrb[0].mxu0 %v890
        %v1062 = vpop.f32.mrb[0].mxu0
        %v1063 = vadd.f32 %v930, %v1062
        %v1064 = vpop.f32.mrb[0].mxu0
        %v1065 = vpop.f32.mrb[0].mxu0
        %v1066 = vadd.f32 %v930, %v1065
        %v1067 = vpop.f32.mrb[0].mxu0
        %1068 = vmatprep.mubr.bf16.mxu0 0
        %1069 = vmatmul.mubr.bf16.gmra.mrb[0].mxu0 %v891
        %v1070 = vpop.f32.mrb[0].mxu0
        %v1071 = vadd.f32 %v930, %v1070
        %v1072 = vpop.f32.mrb[0].mxu0
        %v1073 = vpop.f32.mrb[0].mxu0
        %v1074 = vadd.f32 %v930, %v1073
        %v1075 = vpop.f32.mrb[0].mxu0
        %1076 = vmatprep.mubr.bf16.mxu0 0
        %1077 = vmatmul.mubr.bf16.gmra.mrb[0].mxu0 %v892
        %v1078 = vpop.f32.mrb[0].mxu0
        %v1079 = vadd.f32 %v930, %v1078
        %v1080 = vpop.f32.mrb[0].mxu0
        %v1081 = vpop.f32.mrb[0].mxu0
        %v1082 = vadd.f32 %v930, %v1081
        %v1083 = vpop.f32.mrb[0].mxu0
        %1084 = vmatprep.mubr.bf16.mxu0 0
        %1085 = vmatmul.mubr.bf16.gmra.mrb[0].mxu0 %v893
        %v1086 = vpop.f32.mrb[0].mxu0
        %v1087 = vadd.f32 %v930, %v1086
        %v1088 = vpop.f32.mrb[0].mxu0
        %v1089 = vpop.f32.mrb[0].mxu0
        %v1090 = vadd.f32 %v930, %v1089
        %v1091 = vpop.f32.mrb[0].mxu0
        %1092 = vmatprep.mubr.bf16.mxu0 0
        %1093 = vmatmul.mubr.bf16.gmra.mrb[0].mxu0 %v894
        %v1094 = vpop.f32.mrb[0].mxu0
        %v1095 = vadd.f32 %v930, %v1094
        %v1096 = vpop.f32.mrb[0].mxu0
        %v1097 = vpop.f32.mrb[0].mxu0
        %v1098 = vadd.f32 %v930, %v1097
        %v1099 = vpop.f32.mrb[0].mxu0
        %1100 = vmatprep.mubr.bf16.mxu0 0
        %1101 = vmatmul.mubr.bf16.gmra.mrb[0].mxu0 %v895
        %v1102 = vpop.f32.mrb[0].mxu0
        %v1103 = vadd.f32 %v930, %v1102
        %v1104 = vpop.f32.mrb[0].mxu0
        %v1105 = vpop.f32.mrb[0].mxu0
        %v1106 = vadd.f32 %v930, %v1105
        %v1107 = vpop.f32.mrb[0].mxu0
        %1108 = vmatprep.mubr.bf16.mxu0 0
        %1109 = vmatmul.mubr.bf16.gmra.mrb[0].mxu0 %v896
        %v1110 = vpop.f32.mrb[0].mxu0
        %v1111 = vadd.f32 %v930, %v1110
        %v1112 = vpop.f32.mrb[0].mxu0
        %v1113 = vpop.f32.mrb[0].mxu0
        %v1114 = vadd.f32 %v930, %v1113
        %v1115 = vpop.f32.mrb[0].mxu0
        %1116 = vmatprep.mubr.bf16.mxu0 0
        %1117 = vmatmul.mubr.bf16.gmra.mrb[0].mxu0 %v897
        %v1118 = vpop.f32.mrb[0].mxu0
        %v1119 = vadd.f32 %v930, %v1118
        %v1120 = vpop.f32.mrb[0].mxu0
        %v1121 = vpop.f32.mrb[0].mxu0
        %v1122 = vadd.f32 %v930, %v1121
        %v1123 = vpop.f32.mrb[0].mxu0
        %1124 = vmatprep.mubr.bf16.mxu0 0
        %1125 = vmatmul.mubr.bf16.gmra.mrb[0].mxu0 %v898
        %v1126 = vpop.f32.mrb[0].mxu0
        %v1127 = vadd.f32 %v930, %v1126
        %v1128 = vpop.f32.mrb[0].mxu0
        %v1129 = vpop.f32.mrb[0].mxu0
        %v1130 = vadd.f32 %v930, %v1129
        %v1131 = vpop.f32.mrb[0].mxu0
        %1132 = vmatprep.mubr.bf16.mxu0 0
        %1133 = vmatmul.mubr.bf16.gmra.mrb[0].mxu0 %v899
        %v1134 = vpop.f32.mrb[0].mxu0
        %v1135 = vadd.f32 %v930, %v1134
        %v1136 = vpop.f32.mrb[0].mxu0
        %v1137 = vpop.f32.mrb[0].mxu0
        %v1138 = vadd.f32 %v930, %v1137
        %v1139 = vpop.f32.mrb[0].mxu0
        %1140 = vmatprep.mubr.bf16.mxu0 0
        %1141 = vmatmul.mubr.bf16.gmra.mrb[0].mxu0 %v900
        %v1142 = vpop.f32.mrb[0].mxu0
        %v1143 = vadd.f32 %v930, %v1142
        %v1144 = vpop.f32.mrb[0].mxu0
        %v1145 = vpop.f32.mrb[0].mxu0
        %v1146 = vadd.f32 %v930, %v1145
        %v1147 = vpop.f32.mrb[0].mxu0
        %1148 = vmatprep.mubr.bf16.mxu0 0
        %1149 = vmatmul.mubr.bf16.gmra.mrb[0].mxu0 %v901
        %v1150 = vpop.f32.mrb[0].mxu0
        %v1151 = vadd.f32 %v930, %v1150
        %v1152 = vpop.f32.mrb[0].mxu0
        %v1153 = vpop.f32.mrb[0].mxu0
        %v1154 = vadd.f32 %v930, %v1153
        %v1155 = vpop.f32.mrb[0].mxu0
        %1156 = vmatprep.mubr.bf16.mxu0 0
        %1157 = vmatmul.mubr.bf16.gmra.mrb[0].mxu0 %v902
        %v1158 = vpop.f32.mrb[0].mxu0
        %v1159 = vadd.f32 %v930, %v1158
        %v1160 = vpop.f32.mrb[0].mxu0
        %v1161 = vpop.f32.mrb[0].mxu0
        %v1162 = vadd.f32 %v930, %v1161
        %v1163 = vpop.f32.mrb[0].mxu0
        %1164 = vmatprep.mubr.bf16.mxu0 0
        %1165 = vmatmul.mubr.bf16.gmra.mrb[0].mxu0 %v903
        %v1166 = vpop.f32.mrb[0].mxu0
        %v1167 = vadd.f32 %v930, %v1166
        %v1168 = vpop.f32.mrb[0].mxu0
        %v1169 = vpop.f32.mrb[0].mxu0
        %v1170 = vadd.f32 %v930, %v1169
        %v1171 = vpop.f32.mrb[0].mxu0
        %1172 = vmatprep.mubr.bf16.mxu0 0
        %1173 = vmatmul.mubr.bf16.gmra.mrb[0].mxu0 %v904
        %v1174 = vpop.f32.mrb[0].mxu0
        %v1175 = vadd.f32 %v930, %v1174
        %v1176 = vpop.f32.mrb[0].mxu0
        %v1177 = vpop.f32.mrb[0].mxu0
        %v1178 = vadd.f32 %v930, %v1177
        %v1179 = vpop.f32.mrb[0].mxu0
        %1180 = vmatprep.mubr.bf16.mxu0 0
        %1181 = vmatmul.mubr.bf16.gmra.mrb[0].mxu0 %v905
        %v1182 = vpop.f32.mrb[0].mxu0
        %v1183 = vadd.f32 %v930, %v1182
        %v1184 = vpop.f32.mrb[0].mxu0
        %v1185 = vpop.f32.mrb[0].mxu0
        %v1186 = vadd.f32 %v930, %v1185
        %v1187 = vpop.f32.mrb[0].mxu0
        %1188 = vmatprep.mubr.bf16.mxu0 0
        %1189 = vmatmul.mubr.bf16.gmra.mrb[0].mxu0 %v906
        %v1190 = vpop.f32.mrb[0].mxu0
        %v1191 = vadd.f32 %v930, %v1190
        %v1192 = vpop.f32.mrb[0].mxu0
        %v1193 = vpop.f32.mrb[0].mxu0
        %v1194 = vadd.f32 %v930, %v1193
        %v1195 = vpop.f32.mrb[0].mxu0
        %1196 = vmatprep.mubr.bf16.mxu0 0
        %1197 = vmatmul.mubr.bf16.gmra.mrb[0].mxu0 %v907
        %v1198 = vpop.f32.mrb[0].mxu0
        %v1199 = vadd.f32 %v930, %v1198
        %v1200 = vpop.f32.mrb[0].mxu0
        %v1201 = vpop.f32.mrb[0].mxu0
        %v1202 = vadd.f32 %v930, %v1201
        %v1203 = vpop.f32.mrb[0].mxu0
        %1204 = vdwg.mxu0
        %v1205 = vmax.f32 %v1015, 0.0
        %v1206 = vmax.f32 %v1018, 0.0
        %v1207 = vmax.f32 %v1023, 0.0
        %v1208 = vmax.f32 %v1026, 0.0
        %v1209 = vmax.f32 %v1031, 0.0
        %v1210 = vmax.f32 %v1034, 0.0
        %v1211 = vmax.f32 %v1039, 0.0
        %v1212 = vmax.f32 %v1042, 0.0
        %v1213 = vmax.f32 %v1047, 0.0
        %v1214 = vmax.f32 %v1050, 0.0
        %v1215 = vmax.f32 %v1055, 0.0
        %v1216 = vmax.f32 %v1058, 0.0
        %v1217 = vmax.f32 %v1063, 0.0
        %v1218 = vmax.f32 %v1066, 0.0
        %v1219 = vmax.f32 %v1071, 0.0
        %v1220 = vmax.f32 %v1074, 0.0
        %v1221 = vmax.f32 %v1079, 0.0
        %v1222 = vmax.f32 %v1082, 0.0
        %v1223 = vmax.f32 %v1087, 0.0
        %v1224 = vmax.f32 %v1090, 0.0
        %v1225 = vmax.f32 %v1095, 0.0
        %v1226 = vmax.f32 %v1098, 0.0
        %v1227 = vmax.f32 %v1103, 0.0
        %v1228 = vmax.f32 %v1106, 0.0
        %v1229 = vmax.f32 %v1111, 0.0
        %v1230 = vmax.f32 %v1114, 0.0
        %v1231 = vmax.f32 %v1119, 0.0
        %v1232 = vmax.f32 %v1122, 0.0
        %v1233 = vmax.f32 %v1127, 0.0
        %v1234 = vmax.f32 %v1130, 0.0
        %v1235 = vmax.f32 %v1135, 0.0
        %v1236 = vmax.f32 %v1138, 0.0
        %v1237 = vmax.f32 %v1143, 0.0
        %v1238 = vmax.f32 %v1146, 0.0
        %v1239 = vmax.f32 %v1151, 0.0
        %v1240 = vmax.f32 %v1154, 0.0
        %v1241 = vmax.f32 %v1159, 0.0
        %v1242 = vmax.f32 %v1162, 0.0
        %v1243 = vmax.f32 %v1167, 0.0
        %v1244 = vmax.f32 %v1170, 0.0
        %v1245 = vmax.f32 %v1175, 0.0
        %v1246 = vmax.f32 %v1178, 0.0
        %v1247 = vmax.f32 %v1183, 0.0
        %v1248 = vmax.f32 %v1186, 0.0
        %v1249 = vmax.f32 %v1191, 0.0
        %v1250 = vmax.f32 %v1194, 0.0
        %v1251 = vmax.f32 %v1199, 0.0
        %v1252 = vmax.f32 %v1202, 0.0
        %v1253 = vpack.c.bf16 %v1206, %v1205
        %v1254 = vpack.c.bf16 %v1208, %v1207
        %v1255 = vpack.c.bf16 %v1210, %v1209
        %v1256 = vpack.c.bf16 %v1212, %v1211
        %v1257 = vpack.c.bf16 %v1214, %v1213
        %v1258 = vpack.c.bf16 %v1216, %v1215
        %v1259 = vpack.c.bf16 %v1218, %v1217
        %v1260 = vpack.c.bf16 %v1220, %v1219
        %v1261 = vpack.c.bf16 %v1222, %v1221
        %v1262 = vpack.c.bf16 %v1224, %v1223
        %v1263 = vpack.c.bf16 %v1226, %v1225
        %v1264 = vpack.c.bf16 %v1228, %v1227
        %v1265 = vpack.c.bf16 %v1230, %v1229
        %v1266 = vpack.c.bf16 %v1232, %v1231
        %v1267 = vpack.c.bf16 %v1234, %v1233
        %v1268 = vpack.c.bf16 %v1236, %v1235
        %v1269 = vpack.c.bf16 %v1238, %v1237
        %v1270 = vpack.c.bf16 %v1240, %v1239
        %v1271 = vpack.c.bf16 %v1242, %v1241
        %v1272 = vpack.c.bf16 %v1244, %v1243
        %v1273 = vpack.c.bf16 %v1246, %v1245
        %v1274 = vpack.c.bf16 %v1248, %v1247
        %v1275 = vpack.c.bf16 %v1250, %v1249
        %v1276 = vpack.c.bf16 %v1252, %v1251
        %s1277 = scalar_lea.vmem %s2, 64
        %v1278 = vld [vmem:[%s1277] sm:$0xf]
        %v1279 = vld [vmem:[%s1277 + $0x4] sm:$0xf]
        %v1280 = vld [vmem:[%s1277 + $0x8] sm:$0xf]
        %v1281 = vld [vmem:[%s1277 + $0xc] sm:$0xf]
        %v1282 = vld [vmem:[%s1277 + $0x10] sm:$0xf]
        %v1283 = vld [vmem:[%s1277 + $0x14] sm:$0xf]
        %v1284 = vld [vmem:[%s1277 + $0x18] sm:$0xf]
        %v1285 = vld [vmem:[%s1277 + $0x1c] sm:$0xf]
        %v1286 = vld [vmem:[%s1277 + $0x20] sm:$0xf]
        %v1287 = vld [vmem:[%s1277 + $0x24] sm:$0xf]
        %v1288 = vld [vmem:[%s1277 + $0x28] sm:$0xf]
        %v1289 = vld [vmem:[%s1277 + $0x2c] sm:$0xf]
        %v1290 = vld [vmem:[%s1277 + $0x30] sm:$0xf]
        %v1291 = vld [vmem:[%s1277 + $0x34] sm:$0xf]
        %v1292 = vld [vmem:[%s1277 + $0x38] sm:$0xf]
        %v1293 = vld [vmem:[%s1277 + $0x3c] sm:$0xf]
        %s1294 = scalar_lea.vmem %s3, 2
        %v1295 = vld [vmem:[%s1294] sm:$0x1]
        %v1297 = vlaneseq
        %v1298 = vshrl.u32 %v1297, 7
        %v1299 = vsub.s32 0, %v1298
        %v1300 = vrot.slane %v1295, %v1299
        %v1318 = vunpack.c.l.b16 %v1278
        %v1319 = vunpack.c.l.b16 %v1279
        %v1320 = vunpack.c.l.b16 %v1280
        %v1321 = vunpack.c.l.b16 %v1281
        %v1322 = vunpack.c.l.b16 %v1282
        %v1323 = vunpack.c.l.b16 %v1283
        %v1324 = vunpack.c.l.b16 %v1284
        %v1325 = vunpack.c.l.b16 %v1285
        %v1326 = vunpack.c.l.b16 %v1286
        %v1327 = vunpack.c.l.b16 %v1287
        %v1328 = vunpack.c.l.b16 %v1288
        %v1329 = vunpack.c.l.b16 %v1289
        %v1330 = vunpack.c.l.b16 %v1290
        %v1331 = vunpack.c.l.b16 %v1291
        %v1332 = vunpack.c.l.b16 %v1292
        %v1333 = vunpack.c.l.b16 %v1293
        %v1334 = vpack.c.b16 %v1319, %v1318
        %v1335 = vpack.c.b16 %v1321, %v1320
        %v1336 = vpack.c.b16 %v1323, %v1322
        %v1337 = vpack.c.b16 %v1325, %v1324
        %v1338 = vpack.c.b16 %v1327, %v1326
        %v1339 = vpack.c.b16 %v1329, %v1328
        %v1340 = vpack.c.b16 %v1331, %v1330
        %v1341 = vpack.c.b16 %v1333, %v1332
        %1350 = vmatprep.subr.bf16.mxu0 0
        %1351 = vmatpush1.bf16.msra.mxu0 %v1334
        %1352 = vmatprep.subr.bf16.mxu0 0
        %1353 = vmatpush1.bf16.msra.mxu0 %v1335
        %1354 = vmatprep.subr.bf16.mxu0 0
        %1355 = vmatpush1.bf16.msra.mxu0 %v1336
        %1356 = vmatprep.subr.bf16.mxu0 0
        %1357 = vmatpush1.bf16.msra.mxu0 %v1337
        %1358 = vmatprep.subr.bf16.mxu0 0
        %1359 = vmatpush1.bf16.msra.mxu0 %v1338
        %1360 = vmatprep.subr.bf16.mxu0 0
        %1361 = vmatpush1.bf16.msra.mxu0 %v1339
        %1362 = vmatprep.subr.bf16.mxu0 0
        %1363 = vmatpush1.bf16.msra.mxu0 %v1340
        %1364 = vmatprep.subr.bf16.mxu0 0
        %1365 = vmatpush1.bf16.msra.mxu0 %v1341
        %1366 = vmatprep.subr.bf16.mxu0 0
        %1367 = vmatpush1.bf16.msra.mxu0 0
        %1368 = vmatprep.subr.bf16.mxu0 0
        %1369 = vmatpush1.bf16.msra.mxu0 0
        %1370 = vmatprep.subr.bf16.mxu0 0
        %1371 = vmatpush1.bf16.msra.mxu0 0
        %1372 = vmatprep.subr.bf16.mxu0 0
        %1373 = vmatpush1.bf16.msra.mxu0 0
        %1374 = vmatprep.subr.bf16.mxu0 0
        %1375 = vmatpush1.bf16.msra.mxu0 0
        %1376 = vmatprep.subr.bf16.mxu0 0
        %1377 = vmatpush1.bf16.msra.mxu0 0
        %1378 = vmatprep.subr.bf16.mxu0 0
        %1379 = vmatpush1.bf16.msra.mxu0 0
        %1380 = vmatprep.subr.bf16.mxu0 0
        %1381 = vmatpush1.bf16.msra.mxu0 0
        %1382 = vmatprep.mubr.bf16.mxu0 0
        %1383 = vmatmul.mubr.bf16.gmra.mrb[0].mxu0 %v1253
        %v1384 = vpop.f32.mrb[0].mxu0
        %v1385 = vadd.f32 %v1300, %v1384
        %v1386 = vpop.f32.mrb[0].mxu0
        %v1387 = vpop.f32.mrb[0].mxu0
        %v1388 = vadd.f32 %v1300, %v1387
        %v1389 = vpop.f32.mrb[0].mxu0
        %1390 = vmatprep.mubr.bf16.mxu0 0
        %1391 = vmatmul.mubr.bf16.gmra.mrb[0].mxu0 %v1254
        %v1392 = vpop.f32.mrb[0].mxu0
        %v1393 = vadd.f32 %v1300, %v1392
        %v1394 = vpop.f32.mrb[0].mxu0
        %v1395 = vpop.f32.mrb[0].mxu0
        %v1396 = vadd.f32 %v1300, %v1395
        %v1397 = vpop.f32.mrb[0].mxu0
        %1398 = vmatprep.mubr.bf16.mxu0 0
        %1399 = vmatmul.mubr.bf16.gmra.mrb[0].mxu0 %v1255
        %v1400 = vpop.f32.mrb[0].mxu0
        %v1401 = vadd.f32 %v1300, %v1400
        %v1402 = vpop.f32.mrb[0].mxu0
        %v1403 = vpop.f32.mrb[0].mxu0
        %v1404 = vadd.f32 %v1300, %v1403
        %v1405 = vpop.f32.mrb[0].mxu0
        %1406 = vmatprep.mubr.bf16.mxu0 0
        %1407 = vmatmul.mubr.bf16.gmra.mrb[0].mxu0 %v1256
        %v1408 = vpop.f32.mrb[0].mxu0
        %v1409 = vadd.f32 %v1300, %v1408
        %v1410 = vpop.f32.mrb[0].mxu0
        %v1411 = vpop.f32.mrb[0].mxu0
        %v1412 = vadd.f32 %v1300, %v1411
        %v1413 = vpop.f32.mrb[0].mxu0
        %1414 = vmatprep.mubr.bf16.mxu0 0
        %1415 = vmatmul.mubr.bf16.gmra.mrb[0].mxu0 %v1257
        %v1416 = vpop.f32.mrb[0].mxu0
        %v1417 = vadd.f32 %v1300, %v1416
        %v1418 = vpop.f32.mrb[0].mxu0
        %v1419 = vpop.f32.mrb[0].mxu0
        %v1420 = vadd.f32 %v1300, %v1419
        %v1421 = vpop.f32.mrb[0].mxu0
        %1422 = vmatprep.mubr.bf16.mxu0 0
        %1423 = vmatmul.mubr.bf16.gmra.mrb[0].mxu0 %v1258
        %v1424 = vpop.f32.mrb[0].mxu0
        %v1425 = vadd.f32 %v1300, %v1424
        %v1426 = vpop.f32.mrb[0].mxu0
        %v1427 = vpop.f32.mrb[0].mxu0
        %v1428 = vadd.f32 %v1300, %v1427
        %v1429 = vpop.f32.mrb[0].mxu0
        %1430 = vmatprep.mubr.bf16.mxu0 0
        %1431 = vmatmul.mubr.bf16.gmra.mrb[0].mxu0 %v1259
        %v1432 = vpop.f32.mrb[0].mxu0
        %v1433 = vadd.f32 %v1300, %v1432
        %v1434 = vpop.f32.mrb[0].mxu0
        %v1435 = vpop.f32.mrb[0].mxu0
        %v1436 = vadd.f32 %v1300, %v1435
        %v1437 = vpop.f32.mrb[0].mxu0
        %1438 = vmatprep.mubr.bf16.mxu0 0
        %1439 = vmatmul.mubr.bf16.gmra.mrb[0].mxu0 %v1260
        %v1440 = vpop.f32.mrb[0].mxu0
        %v1441 = vadd.f32 %v1300, %v1440
        %v1442 = vpop.f32.mrb[0].mxu0
        %v1443 = vpop.f32.mrb[0].mxu0
        %v1444 = vadd.f32 %v1300, %v1443
        %v1445 = vpop.f32.mrb[0].mxu0
        %1446 = vmatprep.mubr.bf16.mxu0 0
        %1447 = vmatmul.mubr.bf16.gmra.mrb[0].mxu0 %v1261
        %v1448 = vpop.f32.mrb[0].mxu0
        %v1449 = vadd.f32 %v1300, %v1448
        %v1450 = vpop.f32.mrb[0].mxu0
        %v1451 = vpop.f32.mrb[0].mxu0
        %v1452 = vadd.f32 %v1300, %v1451
        %v1453 = vpop.f32.mrb[0].mxu0
        %1454 = vmatprep.mubr.bf16.mxu0 0
        %1455 = vmatmul.mubr.bf16.gmra.mrb[0].mxu0 %v1262
        %v1456 = vpop.f32.mrb[0].mxu0
        %v1457 = vadd.f32 %v1300, %v1456
        %v1458 = vpop.f32.mrb[0].mxu0
        %v1459 = vpop.f32.mrb[0].mxu0
        %v1460 = vadd.f32 %v1300, %v1459
        %v1461 = vpop.f32.mrb[0].mxu0
        %1462 = vmatprep.mubr.bf16.mxu0 0
        %1463 = vmatmul.mubr.bf16.gmra.mrb[0].mxu0 %v1263
        %v1464 = vpop.f32.mrb[0].mxu0
        %v1465 = vadd.f32 %v1300, %v1464
        %v1466 = vpop.f32.mrb[0].mxu0
        %v1467 = vpop.f32.mrb[0].mxu0
        %v1468 = vadd.f32 %v1300, %v1467
        %v1469 = vpop.f32.mrb[0].mxu0
        %1470 = vmatprep.mubr.bf16.mxu0 0
        %1471 = vmatmul.mubr.bf16.gmra.mrb[0].mxu0 %v1264
        %v1472 = vpop.f32.mrb[0].mxu0
        %v1473 = vadd.f32 %v1300, %v1472
        %v1474 = vpop.f32.mrb[0].mxu0
        %v1475 = vpop.f32.mrb[0].mxu0
        %v1476 = vadd.f32 %v1300, %v1475
        %v1477 = vpop.f32.mrb[0].mxu0
        %1478 = vmatprep.mubr.bf16.mxu0 0
        %1479 = vmatmul.mubr.bf16.gmra.mrb[0].mxu0 %v1265
        %v1480 = vpop.f32.mrb[0].mxu0
        %v1481 = vadd.f32 %v1300, %v1480
        %v1482 = vpop.f32.mrb[0].mxu0
        %v1483 = vpop.f32.mrb[0].mxu0
        %v1484 = vadd.f32 %v1300, %v1483
        %v1485 = vpop.f32.mrb[0].mxu0
        %1486 = vmatprep.mubr.bf16.mxu0 0
        %1487 = vmatmul.mubr.bf16.gmra.mrb[0].mxu0 %v1266
        %v1488 = vpop.f32.mrb[0].mxu0
        %v1489 = vadd.f32 %v1300, %v1488
        %v1490 = vpop.f32.mrb[0].mxu0
        %v1491 = vpop.f32.mrb[0].mxu0
        %v1492 = vadd.f32 %v1300, %v1491
        %v1493 = vpop.f32.mrb[0].mxu0
        %1494 = vmatprep.mubr.bf16.mxu0 0
        %1495 = vmatmul.mubr.bf16.gmra.mrb[0].mxu0 %v1267
        %v1496 = vpop.f32.mrb[0].mxu0
        %v1497 = vadd.f32 %v1300, %v1496
        %v1498 = vpop.f32.mrb[0].mxu0
        %v1499 = vpop.f32.mrb[0].mxu0
        %v1500 = vadd.f32 %v1300, %v1499
        %v1501 = vpop.f32.mrb[0].mxu0
        %1502 = vmatprep.mubr.bf16.mxu0 0
        %1503 = vmatmul.mubr.bf16.gmra.mrb[0].mxu0 %v1268
        %v1504 = vpop.f32.mrb[0].mxu0
        %v1505 = vadd.f32 %v1300, %v1504
        %v1506 = vpop.f32.mrb[0].mxu0
        %v1507 = vpop.f32.mrb[0].mxu0
        %v1508 = vadd.f32 %v1300, %v1507
        %v1509 = vpop.f32.mrb[0].mxu0
        %1510 = vmatprep.mubr.bf16.mxu0 0
        %1511 = vmatmul.mubr.bf16.gmra.mrb[0].mxu0 %v1269
        %v1512 = vpop.f32.mrb[0].mxu0
        %v1513 = vadd.f32 %v1300, %v1512
        %v1514 = vpop.f32.mrb[0].mxu0
        %v1515 = vpop.f32.mrb[0].mxu0
        %v1516 = vadd.f32 %v1300, %v1515
        %v1517 = vpop.f32.mrb[0].mxu0
        %1518 = vmatprep.mubr.bf16.mxu0 0
        %1519 = vmatmul.mubr.bf16.gmra.mrb[0].mxu0 %v1270
        %v1520 = vpop.f32.mrb[0].mxu0
        %v1521 = vadd.f32 %v1300, %v1520
        %v1522 = vpop.f32.mrb[0].mxu0
        %v1523 = vpop.f32.mrb[0].mxu0
        %v1524 = vadd.f32 %v1300, %v1523
        %v1525 = vpop.f32.mrb[0].mxu0
        %1526 = vmatprep.mubr.bf16.mxu0 0
        %1527 = vmatmul.mubr.bf16.gmra.mrb[0].mxu0 %v1271
        %v1528 = vpop.f32.mrb[0].mxu0
        %v1529 = vadd.f32 %v1300, %v1528
        %v1530 = vpop.f32.mrb[0].mxu0
        %v1531 = vpop.f32.mrb[0].mxu0
        %v1532 = vadd.f32 %v1300, %v1531
        %v1533 = vpop.f32.mrb[0].mxu0
        %1534 = vmatprep.mubr.bf16.mxu0 0
        %1535 = vmatmul.mubr.bf16.gmra.mrb[0].mxu0 %v1272
        %v1536 = vpop.f32.mrb[0].mxu0
        %v1537 = vadd.f32 %v1300, %v1536
        %v1538 = vpop.f32.mrb[0].mxu0
        %v1539 = vpop.f32.mrb[0].mxu0
        %v1540 = vadd.f32 %v1300, %v1539
        %v1541 = vpop.f32.mrb[0].mxu0
        %1542 = vmatprep.mubr.bf16.mxu0 0
        %1543 = vmatmul.mubr.bf16.gmra.mrb[0].mxu0 %v1273
        %v1544 = vpop.f32.mrb[0].mxu0
        %v1545 = vadd.f32 %v1300, %v1544
        %v1546 = vpop.f32.mrb[0].mxu0
        %v1547 = vpop.f32.mrb[0].mxu0
        %v1548 = vadd.f32 %v1300, %v1547
        %v1549 = vpop.f32.mrb[0].mxu0
        %1550 = vmatprep.mubr.bf16.mxu0 0
        %1551 = vmatmul.mubr.bf16.gmra.mrb[0].mxu0 %v1274
        %v1552 = vpop.f32.mrb[0].mxu0
        %v1553 = vadd.f32 %v1300, %v1552
        %v1554 = vpop.f32.mrb[0].mxu0
        %v1555 = vpop.f32.mrb[0].mxu0
        %v1556 = vadd.f32 %v1300, %v1555
        %v1557 = vpop.f32.mrb[0].mxu0
        %1558 = vmatprep.mubr.bf16.mxu0 0
        %1559 = vmatmul.mubr.bf16.gmra.mrb[0].mxu0 %v1275
        %v1560 = vpop.f32.mrb[0].mxu0
        %v1561 = vadd.f32 %v1300, %v1560
        %v1562 = vpop.f32.mrb[0].mxu0
        %v1563 = vpop.f32.mrb[0].mxu0
        %v1564 = vadd.f32 %v1300, %v1563
        %v1565 = vpop.f32.mrb[0].mxu0
        %1566 = vmatprep.mubr.bf16.mxu0 0
        %1567 = vmatmul.mubr.bf16.gmra.mrb[0].mxu0 %v1276
        %v1568 = vpop.f32.mrb[0].mxu0
        %v1569 = vadd.f32 %v1300, %v1568
        %v1570 = vpop.f32.mrb[0].mxu0
        %v1571 = vpop.f32.mrb[0].mxu0
        %v1572 = vadd.f32 %v1300, %v1571
        %v1573 = vpop.f32.mrb[0].mxu0
        %1574 = vdwg.mxu0
        %v1575 = vmax.f32 %v1385, 0.0
        %v1576 = vmax.f32 %v1388, 0.0
        %v1577 = vmax.f32 %v1393, 0.0
        %v1578 = vmax.f32 %v1396, 0.0
        %v1579 = vmax.f32 %v1401, 0.0
        %v1580 = vmax.f32 %v1404, 0.0
        %v1581 = vmax.f32 %v1409, 0.0
        %v1582 = vmax.f32 %v1412, 0.0
        %v1583 = vmax.f32 %v1417, 0.0
        %v1584 = vmax.f32 %v1420, 0.0
        %v1585 = vmax.f32 %v1425, 0.0
        %v1586 = vmax.f32 %v1428, 0.0
        %v1587 = vmax.f32 %v1433, 0.0
        %v1588 = vmax.f32 %v1436, 0.0
        %v1589 = vmax.f32 %v1441, 0.0
        %v1590 = vmax.f32 %v1444, 0.0
        %v1591 = vmax.f32 %v1449, 0.0
        %v1592 = vmax.f32 %v1452, 0.0
        %v1593 = vmax.f32 %v1457, 0.0
        %v1594 = vmax.f32 %v1460, 0.0
        %v1595 = vmax.f32 %v1465, 0.0
        %v1596 = vmax.f32 %v1468, 0.0
        %v1597 = vmax.f32 %v1473, 0.0
        %v1598 = vmax.f32 %v1476, 0.0
        %v1599 = vmax.f32 %v1481, 0.0
        %v1600 = vmax.f32 %v1484, 0.0
        %v1601 = vmax.f32 %v1489, 0.0
        %v1602 = vmax.f32 %v1492, 0.0
        %v1603 = vmax.f32 %v1497, 0.0
        %v1604 = vmax.f32 %v1500, 0.0
        %v1605 = vmax.f32 %v1505, 0.0
        %v1606 = vmax.f32 %v1508, 0.0
        %v1607 = vmax.f32 %v1513, 0.0
        %v1608 = vmax.f32 %v1516, 0.0
        %v1609 = vmax.f32 %v1521, 0.0
        %v1610 = vmax.f32 %v1524, 0.0
        %v1611 = vmax.f32 %v1529, 0.0
        %v1612 = vmax.f32 %v1532, 0.0
        %v1613 = vmax.f32 %v1537, 0.0
        %v1614 = vmax.f32 %v1540, 0.0
        %v1615 = vmax.f32 %v1545, 0.0
        %v1616 = vmax.f32 %v1548, 0.0
        %v1617 = vmax.f32 %v1553, 0.0
        %v1618 = vmax.f32 %v1556, 0.0
        %v1619 = vmax.f32 %v1561, 0.0
        %v1620 = vmax.f32 %v1564, 0.0
        %v1621 = vmax.f32 %v1569, 0.0
        %v1622 = vmax.f32 %v1572, 0.0
        %v1623 = vpack.c.bf16 %v1576, %v1575
        %v1624 = vpack.c.bf16 %v1578, %v1577
        %v1625 = vpack.c.bf16 %v1580, %v1579
        %v1626 = vpack.c.bf16 %v1582, %v1581
        %v1627 = vpack.c.bf16 %v1584, %v1583
        %v1628 = vpack.c.bf16 %v1586, %v1585
        %v1629 = vpack.c.bf16 %v1588, %v1587
        %v1630 = vpack.c.bf16 %v1590, %v1589
        %v1631 = vpack.c.bf16 %v1592, %v1591
        %v1632 = vpack.c.bf16 %v1594, %v1593
        %v1633 = vpack.c.bf16 %v1596, %v1595
        %v1634 = vpack.c.bf16 %v1598, %v1597
        %v1635 = vpack.c.bf16 %v1600, %v1599
        %v1636 = vpack.c.bf16 %v1602, %v1601
        %v1637 = vpack.c.bf16 %v1604, %v1603
        %v1638 = vpack.c.bf16 %v1606, %v1605
        %v1639 = vpack.c.bf16 %v1608, %v1607
        %v1640 = vpack.c.bf16 %v1610, %v1609
        %v1641 = vpack.c.bf16 %v1612, %v1611
        %v1642 = vpack.c.bf16 %v1614, %v1613
        %v1643 = vpack.c.bf16 %v1616, %v1615
        %v1644 = vpack.c.bf16 %v1618, %v1617
        %v1645 = vpack.c.bf16 %v1620, %v1619
        %v1646 = vpack.c.bf16 %v1622, %v1621
        %s1647 = scalar_lea.vmem %s2, 128
        %v1648 = vld [vmem:[%s1647] sm:$0xf]
        %v1649 = vld [vmem:[%s1647 + $0x4] sm:$0xf]
        %v1650 = vld [vmem:[%s1647 + $0x8] sm:$0xf]
        %v1651 = vld [vmem:[%s1647 + $0xc] sm:$0xf]
        %v1652 = vld [vmem:[%s1647 + $0x10] sm:$0xf]
        %v1653 = vld [vmem:[%s1647 + $0x14] sm:$0xf]
        %v1654 = vld [vmem:[%s1647 + $0x18] sm:$0xf]
        %v1655 = vld [vmem:[%s1647 + $0x1c] sm:$0xf]
        %v1656 = vld [vmem:[%s1647 + $0x20] sm:$0xf]
        %v1657 = vld [vmem:[%s1647 + $0x24] sm:$0xf]
        %v1658 = vld [vmem:[%s1647 + $0x28] sm:$0xf]
        %v1659 = vld [vmem:[%s1647 + $0x2c] sm:$0xf]
        %v1660 = vld [vmem:[%s1647 + $0x30] sm:$0xf]
        %v1661 = vld [vmem:[%s1647 + $0x34] sm:$0xf]
        %v1662 = vld [vmem:[%s1647 + $0x38] sm:$0xf]
        %v1663 = vld [vmem:[%s1647 + $0x3c] sm:$0xf]
        %s1664 = scalar_lea.vmem %s3, 3
        %v1665 = vld [vmem:[%s1664] sm:$0x1]
        %v1667 = vlaneseq
        %v1668 = vshrl.u32 %v1667, 7
        %v1669 = vsub.s32 0, %v1668
        %v1670 = vrot.slane %v1665, %v1669
        %v1688 = vunpack.c.l.b16 %v1648
        %v1689 = vunpack.c.l.b16 %v1649
        %v1690 = vunpack.c.l.b16 %v1650
        %v1691 = vunpack.c.l.b16 %v1651
        %v1692 = vunpack.c.l.b16 %v1652
        %v1693 = vunpack.c.l.b16 %v1653
        %v1694 = vunpack.c.l.b16 %v1654
        %v1695 = vunpack.c.l.b16 %v1655
        %v1696 = vunpack.c.l.b16 %v1656
        %v1697 = vunpack.c.l.b16 %v1657
        %v1698 = vunpack.c.l.b16 %v1658
        %v1699 = vunpack.c.l.b16 %v1659
        %v1700 = vunpack.c.l.b16 %v1660
        %v1701 = vunpack.c.l.b16 %v1661
        %v1702 = vunpack.c.l.b16 %v1662
        %v1703 = vunpack.c.l.b16 %v1663
        %v1704 = vpack.c.b16 %v1689, %v1688
        %v1705 = vpack.c.b16 %v1691, %v1690
        %v1706 = vpack.c.b16 %v1693, %v1692
        %v1707 = vpack.c.b16 %v1695, %v1694
        %v1708 = vpack.c.b16 %v1697, %v1696
        %v1709 = vpack.c.b16 %v1699, %v1698
        %v1710 = vpack.c.b16 %v1701, %v1700
        %v1711 = vpack.c.b16 %v1703, %v1702
        %1720 = vmatprep.subr.bf16.mxu0 0
        %1721 = vmatpush1.bf16.msra.mxu0 %v1704
        %1722 = vmatprep.subr.bf16.mxu0 0
        %1723 = vmatpush1.bf16.msra.mxu0 %v1705
        %1724 = vmatprep.subr.bf16.mxu0 0
        %1725 = vmatpush1.bf16.msra.mxu0 %v1706
        %1726 = vmatprep.subr.bf16.mxu0 0
        %1727 = vmatpush1.bf16.msra.mxu0 %v1707
        %1728 = vmatprep.subr.bf16.mxu0 0
        %1729 = vmatpush1.bf16.msra.mxu0 %v1708
        %1730 = vmatprep.subr.bf16.mxu0 0
        %1731 = vmatpush1.bf16.msra.mxu0 %v1709
        %1732 = vmatprep.subr.bf16.mxu0 0
        %1733 = vmatpush1.bf16.msra.mxu0 %v1710
        %1734 = vmatprep.subr.bf16.mxu0 0
        %1735 = vmatpush1.bf16.msra.mxu0 %v1711
        %1736 = vmatprep.subr.bf16.mxu0 0
        %1737 = vmatpush1.bf16.msra.mxu0 0
        %1738 = vmatprep.subr.bf16.mxu0 0
        %1739 = vmatpush1.bf16.msra.mxu0 0
        %1740 = vmatprep.subr.bf16.mxu0 0
        %1741 = vmatpush1.bf16.msra.mxu0 0
        %1742 = vmatprep.subr.bf16.mxu0 0
        %1743 = vmatpush1.bf16.msra.mxu0 0
        %1744 = vmatprep.subr.bf16.mxu0 0
        %1745 = vmatpush1.bf16.msra.mxu0 0
        %1746 = vmatprep.subr.bf16.mxu0 0
        %1747 = vmatpush1.bf16.msra.mxu0 0
        %1748 = vmatprep.subr.bf16.mxu0 0
        %1749 = vmatpush1.bf16.msra.mxu0 0
        %1750 = vmatprep.subr.bf16.mxu0 0
        %1751 = vmatpush1.bf16.msra.mxu0 0
        %1752 = vmatprep.mubr.bf16.mxu0 0
        %1753 = vmatmul.mubr.bf16.gmra.mrb[0].mxu0 %v1623
        %v1754 = vpop.f32.mrb[0].mxu0
        %v1755 = vadd.f32 %v1670, %v1754
        %v1756 = vpop.f32.mrb[0].mxu0
        %v1757 = vpop.f32.mrb[0].mxu0
        %v1758 = vadd.f32 %v1670, %v1757
        %v1759 = vpop.f32.mrb[0].mxu0
        %1760 = vmatprep.mubr.bf16.mxu0 0
        %1761 = vmatmul.mubr.bf16.gmra.mrb[0].mxu0 %v1624
        %v1762 = vpop.f32.mrb[0].mxu0
        %v1763 = vadd.f32 %v1670, %v1762
        %v1764 = vpop.f32.mrb[0].mxu0
        %v1765 = vpop.f32.mrb[0].mxu0
        %v1766 = vadd.f32 %v1670, %v1765
        %v1767 = vpop.f32.mrb[0].mxu0
        %1768 = vmatprep.mubr.bf16.mxu0 0
        %1769 = vmatmul.mubr.bf16.gmra.mrb[0].mxu0 %v1625
        %v1770 = vpop.f32.mrb[0].mxu0
        %v1771 = vadd.f32 %v1670, %v1770
        %v1772 = vpop.f32.mrb[0].mxu0
        %v1773 = vpop.f32.mrb[0].mxu0
        %v1774 = vadd.f32 %v1670, %v1773
        %v1775 = vpop.f32.mrb[0].mxu0
        %1776 = vmatprep.mubr.bf16.mxu0 0
        %1777 = vmatmul.mubr.bf16.gmra.mrb[0].mxu0 %v1626
        %v1778 = vpop.f32.mrb[0].mxu0
        %v1779 = vadd.f32 %v1670, %v1778
        %v1780 = vpop.f32.mrb[0].mxu0
        %v1781 = vpop.f32.mrb[0].mxu0
        %v1782 = vadd.f32 %v1670, %v1781
        %v1783 = vpop.f32.mrb[0].mxu0
        %1784 = vmatprep.mubr.bf16.mxu0 0
        %1785 = vmatmul.mubr.bf16.gmra.mrb[0].mxu0 %v1627
        %v1786 = vpop.f32.mrb[0].mxu0
        %v1787 = vadd.f32 %v1670, %v1786
        %v1788 = vpop.f32.mrb[0].mxu0
        %v1789 = vpop.f32.mrb[0].mxu0
        %v1790 = vadd.f32 %v1670, %v1789
        %v1791 = vpop.f32.mrb[0].mxu0
        %1792 = vmatprep.mubr.bf16.mxu0 0
        %1793 = vmatmul.mubr.bf16.gmra.mrb[0].mxu0 %v1628
        %v1794 = vpop.f32.mrb[0].mxu0
        %v1795 = vadd.f32 %v1670, %v1794
        %v1796 = vpop.f32.mrb[0].mxu0
        %v1797 = vpop.f32.mrb[0].mxu0
        %v1798 = vadd.f32 %v1670, %v1797
        %v1799 = vpop.f32.mrb[0].mxu0
        %1800 = vmatprep.mubr.bf16.mxu0 0
        %1801 = vmatmul.mubr.bf16.gmra.mrb[0].mxu0 %v1629
        %v1802 = vpop.f32.mrb[0].mxu0
        %v1803 = vadd.f32 %v1670, %v1802
        %v1804 = vpop.f32.mrb[0].mxu0
        %v1805 = vpop.f32.mrb[0].mxu0
        %v1806 = vadd.f32 %v1670, %v1805
        %v1807 = vpop.f32.mrb[0].mxu0
        %1808 = vmatprep.mubr.bf16.mxu0 0
        %1809 = vmatmul.mubr.bf16.gmra.mrb[0].mxu0 %v1630
        %v1810 = vpop.f32.mrb[0].mxu0
        %v1811 = vadd.f32 %v1670, %v1810
        %v1812 = vpop.f32.mrb[0].mxu0
        %v1813 = vpop.f32.mrb[0].mxu0
        %v1814 = vadd.f32 %v1670, %v1813
        %v1815 = vpop.f32.mrb[0].mxu0
        %1816 = vmatprep.mubr.bf16.mxu0 0
        %1817 = vmatmul.mubr.bf16.gmra.mrb[0].mxu0 %v1631
        %v1818 = vpop.f32.mrb[0].mxu0
        %v1819 = vadd.f32 %v1670, %v1818
        %v1820 = vpop.f32.mrb[0].mxu0
        %v1821 = vpop.f32.mrb[0].mxu0
        %v1822 = vadd.f32 %v1670, %v1821
        %v1823 = vpop.f32.mrb[0].mxu0
        %1824 = vmatprep.mubr.bf16.mxu0 0
        %1825 = vmatmul.mubr.bf16.gmra.mrb[0].mxu0 %v1632
        %v1826 = vpop.f32.mrb[0].mxu0
        %v1827 = vadd.f32 %v1670, %v1826
        %v1828 = vpop.f32.mrb[0].mxu0
        %v1829 = vpop.f32.mrb[0].mxu0
        %v1830 = vadd.f32 %v1670, %v1829
        %v1831 = vpop.f32.mrb[0].mxu0
        %1832 = vmatprep.mubr.bf16.mxu0 0
        %1833 = vmatmul.mubr.bf16.gmra.mrb[0].mxu0 %v1633
        %v1834 = vpop.f32.mrb[0].mxu0
        %v1835 = vadd.f32 %v1670, %v1834
        %v1836 = vpop.f32.mrb[0].mxu0
        %v1837 = vpop.f32.mrb[0].mxu0
        %v1838 = vadd.f32 %v1670, %v1837
        %v1839 = vpop.f32.mrb[0].mxu0
        %1840 = vmatprep.mubr.bf16.mxu0 0
        %1841 = vmatmul.mubr.bf16.gmra.mrb[0].mxu0 %v1634
        %v1842 = vpop.f32.mrb[0].mxu0
        %v1843 = vadd.f32 %v1670, %v1842
        %v1844 = vpop.f32.mrb[0].mxu0
        %v1845 = vpop.f32.mrb[0].mxu0
        %v1846 = vadd.f32 %v1670, %v1845
        %v1847 = vpop.f32.mrb[0].mxu0
        %1848 = vmatprep.mubr.bf16.mxu0 0
        %1849 = vmatmul.mubr.bf16.gmra.mrb[0].mxu0 %v1635
        %v1850 = vpop.f32.mrb[0].mxu0
        %v1851 = vadd.f32 %v1670, %v1850
        %v1852 = vpop.f32.mrb[0].mxu0
        %v1853 = vpop.f32.mrb[0].mxu0
        %v1854 = vadd.f32 %v1670, %v1853
        %v1855 = vpop.f32.mrb[0].mxu0
        %1856 = vmatprep.mubr.bf16.mxu0 0
        %1857 = vmatmul.mubr.bf16.gmra.mrb[0].mxu0 %v1636
        %v1858 = vpop.f32.mrb[0].mxu0
        %v1859 = vadd.f32 %v1670, %v1858
        %v1860 = vpop.f32.mrb[0].mxu0
        %v1861 = vpop.f32.mrb[0].mxu0
        %v1862 = vadd.f32 %v1670, %v1861
        %v1863 = vpop.f32.mrb[0].mxu0
        %1864 = vmatprep.mubr.bf16.mxu0 0
        %1865 = vmatmul.mubr.bf16.gmra.mrb[0].mxu0 %v1637
        %v1866 = vpop.f32.mrb[0].mxu0
        %v1867 = vadd.f32 %v1670, %v1866
        %v1868 = vpop.f32.mrb[0].mxu0
        %v1869 = vpop.f32.mrb[0].mxu0
        %v1870 = vadd.f32 %v1670, %v1869
        %v1871 = vpop.f32.mrb[0].mxu0
        %1872 = vmatprep.mubr.bf16.mxu0 0
        %1873 = vmatmul.mubr.bf16.gmra.mrb[0].mxu0 %v1638
        %v1874 = vpop.f32.mrb[0].mxu0
        %v1875 = vadd.f32 %v1670, %v1874
        %v1876 = vpop.f32.mrb[0].mxu0
        %v1877 = vpop.f32.mrb[0].mxu0
        %v1878 = vadd.f32 %v1670, %v1877
        %v1879 = vpop.f32.mrb[0].mxu0
        %1880 = vmatprep.mubr.bf16.mxu0 0
        %1881 = vmatmul.mubr.bf16.gmra.mrb[0].mxu0 %v1639
        %v1882 = vpop.f32.mrb[0].mxu0
        %v1883 = vadd.f32 %v1670, %v1882
        %v1884 = vpop.f32.mrb[0].mxu0
        %v1885 = vpop.f32.mrb[0].mxu0
        %v1886 = vadd.f32 %v1670, %v1885
        %v1887 = vpop.f32.mrb[0].mxu0
        %1888 = vmatprep.mubr.bf16.mxu0 0
        %1889 = vmatmul.mubr.bf16.gmra.mrb[0].mxu0 %v1640
        %v1890 = vpop.f32.mrb[0].mxu0
        %v1891 = vadd.f32 %v1670, %v1890
        %v1892 = vpop.f32.mrb[0].mxu0
        %v1893 = vpop.f32.mrb[0].mxu0
        %v1894 = vadd.f32 %v1670, %v1893
        %v1895 = vpop.f32.mrb[0].mxu0
        %1896 = vmatprep.mubr.bf16.mxu0 0
        %1897 = vmatmul.mubr.bf16.gmra.mrb[0].mxu0 %v1641
        %v1898 = vpop.f32.mrb[0].mxu0
        %v1899 = vadd.f32 %v1670, %v1898
        %v1900 = vpop.f32.mrb[0].mxu0
        %v1901 = vpop.f32.mrb[0].mxu0
        %v1902 = vadd.f32 %v1670, %v1901
        %v1903 = vpop.f32.mrb[0].mxu0
        %1904 = vmatprep.mubr.bf16.mxu0 0
        %1905 = vmatmul.mubr.bf16.gmra.mrb[0].mxu0 %v1642
        %v1906 = vpop.f32.mrb[0].mxu0
        %v1907 = vadd.f32 %v1670, %v1906
        %v1908 = vpop.f32.mrb[0].mxu0
        %v1909 = vpop.f32.mrb[0].mxu0
        %v1910 = vadd.f32 %v1670, %v1909
        %v1911 = vpop.f32.mrb[0].mxu0
        %1912 = vmatprep.mubr.bf16.mxu0 0
        %1913 = vmatmul.mubr.bf16.gmra.mrb[0].mxu0 %v1643
        %v1914 = vpop.f32.mrb[0].mxu0
        %v1915 = vadd.f32 %v1670, %v1914
        %v1916 = vpop.f32.mrb[0].mxu0
        %v1917 = vpop.f32.mrb[0].mxu0
        %v1918 = vadd.f32 %v1670, %v1917
        %v1919 = vpop.f32.mrb[0].mxu0
        %1920 = vmatprep.mubr.bf16.mxu0 0
        %1921 = vmatmul.mubr.bf16.gmra.mrb[0].mxu0 %v1644
        %v1922 = vpop.f32.mrb[0].mxu0
        %v1923 = vadd.f32 %v1670, %v1922
        %v1924 = vpop.f32.mrb[0].mxu0
        %v1925 = vpop.f32.mrb[0].mxu0
        %v1926 = vadd.f32 %v1670, %v1925
        %v1927 = vpop.f32.mrb[0].mxu0
        %1928 = vmatprep.mubr.bf16.mxu0 0
        %1929 = vmatmul.mubr.bf16.gmra.mrb[0].mxu0 %v1645
        %v1930 = vpop.f32.mrb[0].mxu0
        %v1931 = vadd.f32 %v1670, %v1930
        %v1932 = vpop.f32.mrb[0].mxu0
        %v1933 = vpop.f32.mrb[0].mxu0
        %v1934 = vadd.f32 %v1670, %v1933
        %v1935 = vpop.f32.mrb[0].mxu0
        %1936 = vmatprep.mubr.bf16.mxu0 0
        %1937 = vmatmul.mubr.bf16.gmra.mrb[0].mxu0 %v1646
        %v1938 = vpop.f32.mrb[0].mxu0
        %v1939 = vadd.f32 %v1670, %v1938
        %v1940 = vpop.f32.mrb[0].mxu0
        %v1941 = vpop.f32.mrb[0].mxu0
        %v1942 = vadd.f32 %v1670, %v1941
        %v1943 = vpop.f32.mrb[0].mxu0
        %1944 = vdwg.mxu0
        %v1945 = vmax.f32 %v1755, 0.0
        %v1946 = vmax.f32 %v1758, 0.0
        %v1947 = vmax.f32 %v1763, 0.0
        %v1948 = vmax.f32 %v1766, 0.0
        %v1949 = vmax.f32 %v1771, 0.0
        %v1950 = vmax.f32 %v1774, 0.0
        %v1951 = vmax.f32 %v1779, 0.0
        %v1952 = vmax.f32 %v1782, 0.0
        %v1953 = vmax.f32 %v1787, 0.0
        %v1954 = vmax.f32 %v1790, 0.0
        %v1955 = vmax.f32 %v1795, 0.0
        %v1956 = vmax.f32 %v1798, 0.0
        %v1957 = vmax.f32 %v1803, 0.0
        %v1958 = vmax.f32 %v1806, 0.0
        %v1959 = vmax.f32 %v1811, 0.0
        %v1960 = vmax.f32 %v1814, 0.0
        %v1961 = vmax.f32 %v1819, 0.0
        %v1962 = vmax.f32 %v1822, 0.0
        %v1963 = vmax.f32 %v1827, 0.0
        %v1964 = vmax.f32 %v1830, 0.0
        %v1965 = vmax.f32 %v1835, 0.0
        %v1966 = vmax.f32 %v1838, 0.0
        %v1967 = vmax.f32 %v1843, 0.0
        %v1968 = vmax.f32 %v1846, 0.0
        %v1969 = vmax.f32 %v1851, 0.0
        %v1970 = vmax.f32 %v1854, 0.0
        %v1971 = vmax.f32 %v1859, 0.0
        %v1972 = vmax.f32 %v1862, 0.0
        %v1973 = vmax.f32 %v1867, 0.0
        %v1974 = vmax.f32 %v1870, 0.0
        %v1975 = vmax.f32 %v1875, 0.0
        %v1976 = vmax.f32 %v1878, 0.0
        %v1977 = vmax.f32 %v1883, 0.0
        %v1978 = vmax.f32 %v1886, 0.0
        %v1979 = vmax.f32 %v1891, 0.0
        %v1980 = vmax.f32 %v1894, 0.0
        %v1981 = vmax.f32 %v1899, 0.0
        %v1982 = vmax.f32 %v1902, 0.0
        %v1983 = vmax.f32 %v1907, 0.0
        %v1984 = vmax.f32 %v1910, 0.0
        %v1985 = vmax.f32 %v1915, 0.0
        %v1986 = vmax.f32 %v1918, 0.0
        %v1987 = vmax.f32 %v1923, 0.0
        %v1988 = vmax.f32 %v1926, 0.0
        %v1989 = vmax.f32 %v1931, 0.0
        %v1990 = vmax.f32 %v1934, 0.0
        %v1991 = vmax.f32 %v1939, 0.0
        %v1992 = vmax.f32 %v1942, 0.0
        %v1993 = vpack.c.bf16 %v1946, %v1945
        %v1994 = vpack.c.bf16 %v1948, %v1947
        %v1995 = vpack.c.bf16 %v1950, %v1949
        %v1996 = vpack.c.bf16 %v1952, %v1951
        %v1997 = vpack.c.bf16 %v1954, %v1953
        %v1998 = vpack.c.bf16 %v1956, %v1955
        %v1999 = vpack.c.bf16 %v1958, %v1957
        %v2000 = vpack.c.bf16 %v1960, %v1959
        %v2001 = vpack.c.bf16 %v1962, %v1961
        %v2002 = vpack.c.bf16 %v1964, %v1963
        %v2003 = vpack.c.bf16 %v1966, %v1965
        %v2004 = vpack.c.bf16 %v1968, %v1967
        %v2005 = vpack.c.bf16 %v1970, %v1969
        %v2006 = vpack.c.bf16 %v1972, %v1971
        %v2007 = vpack.c.bf16 %v1974, %v1973
        %v2008 = vpack.c.bf16 %v1976, %v1975
        %v2009 = vpack.c.bf16 %v1978, %v1977
        %v2010 = vpack.c.bf16 %v1980, %v1979
        %v2011 = vpack.c.bf16 %v1982, %v1981
        %v2012 = vpack.c.bf16 %v1984, %v1983
        %v2013 = vpack.c.bf16 %v1986, %v1985
        %v2014 = vpack.c.bf16 %v1988, %v1987
        %v2015 = vpack.c.bf16 %v1990, %v1989
        %v2016 = vpack.c.bf16 %v1992, %v1991
        %s2017 = scalar_lea.vmem %s2, 192
        %v2018 = vld [vmem:[%s2017] sm:$0xf]
        %v2019 = vld [vmem:[%s2017 + $0x4] sm:$0xf]
        %v2020 = vld [vmem:[%s2017 + $0x8] sm:$0xf]
        %v2021 = vld [vmem:[%s2017 + $0xc] sm:$0xf]
        %v2022 = vld [vmem:[%s2017 + $0x10] sm:$0xf]
        %v2023 = vld [vmem:[%s2017 + $0x14] sm:$0xf]
        %v2024 = vld [vmem:[%s2017 + $0x18] sm:$0xf]
        %v2025 = vld [vmem:[%s2017 + $0x1c] sm:$0xf]
        %v2026 = vld [vmem:[%s2017 + $0x20] sm:$0xf]
        %v2027 = vld [vmem:[%s2017 + $0x24] sm:$0xf]
        %v2028 = vld [vmem:[%s2017 + $0x28] sm:$0xf]
        %v2029 = vld [vmem:[%s2017 + $0x2c] sm:$0xf]
        %v2030 = vld [vmem:[%s2017 + $0x30] sm:$0xf]
        %v2031 = vld [vmem:[%s2017 + $0x34] sm:$0xf]
        %v2032 = vld [vmem:[%s2017 + $0x38] sm:$0xf]
        %v2033 = vld [vmem:[%s2017 + $0x3c] sm:$0xf]
        %s2034 = scalar_lea.vmem %s3, 4
        %v2035 = vld [vmem:[%s2034] sm:$0x1]
        %v2037 = vlaneseq
        %v2038 = vshrl.u32 %v2037, 7
        %v2039 = vsub.s32 0, %v2038
        %v2040 = vrot.slane %v2035, %v2039
        %v2058 = vunpack.c.l.b16 %v2018
        %v2059 = vunpack.c.l.b16 %v2019
        %v2060 = vunpack.c.l.b16 %v2020
        %v2061 = vunpack.c.l.b16 %v2021
        %v2062 = vunpack.c.l.b16 %v2022
        %v2063 = vunpack.c.l.b16 %v2023
        %v2064 = vunpack.c.l.b16 %v2024
        %v2065 = vunpack.c.l.b16 %v2025
        %v2066 = vunpack.c.l.b16 %v2026
        %v2067 = vunpack.c.l.b16 %v2027
        %v2068 = vunpack.c.l.b16 %v2028
        %v2069 = vunpack.c.l.b16 %v2029
        %v2070 = vunpack.c.l.b16 %v2030
        %v2071 = vunpack.c.l.b16 %v2031
        %v2072 = vunpack.c.l.b16 %v2032
        %v2073 = vunpack.c.l.b16 %v2033
        %v2074 = vpack.c.b16 %v2059, %v2058
        %v2075 = vpack.c.b16 %v2061, %v2060
        %v2076 = vpack.c.b16 %v2063, %v2062
        %v2077 = vpack.c.b16 %v2065, %v2064
        %v2078 = vpack.c.b16 %v2067, %v2066
        %v2079 = vpack.c.b16 %v2069, %v2068
        %v2080 = vpack.c.b16 %v2071, %v2070
        %v2081 = vpack.c.b16 %v2073, %v2072
        %2090 = vmatprep.subr.bf16.mxu0 0
        %2091 = vmatpush1.bf16.msra.mxu0 %v2074
        %2092 = vmatprep.subr.bf16.mxu0 0
        %2093 = vmatpush1.bf16.msra.mxu0 %v2075
        %2094 = vmatprep.subr.bf16.mxu0 0
        %2095 = vmatpush1.bf16.msra.mxu0 %v2076
        %2096 = vmatprep.subr.bf16.mxu0 0
        %2097 = vmatpush1.bf16.msra.mxu0 %v2077
        %2098 = vmatprep.subr.bf16.mxu0 0
        %2099 = vmatpush1.bf16.msra.mxu0 %v2078
        %2100 = vmatprep.subr.bf16.mxu0 0
        %2101 = vmatpush1.bf16.msra.mxu0 %v2079
        %2102 = vmatprep.subr.bf16.mxu0 0
        %2103 = vmatpush1.bf16.msra.mxu0 %v2080
        %2104 = vmatprep.subr.bf16.mxu0 0
        %2105 = vmatpush1.bf16.msra.mxu0 %v2081
        %2106 = vmatprep.subr.bf16.mxu0 0
        %2107 = vmatpush1.bf16.msra.mxu0 0
        %2108 = vmatprep.subr.bf16.mxu0 0
        %2109 = vmatpush1.bf16.msra.mxu0 0
        %2110 = vmatprep.subr.bf16.mxu0 0
        %2111 = vmatpush1.bf16.msra.mxu0 0
        %2112 = vmatprep.subr.bf16.mxu0 0
        %2113 = vmatpush1.bf16.msra.mxu0 0
        %2114 = vmatprep.subr.bf16.mxu0 0
        %2115 = vmatpush1.bf16.msra.mxu0 0
        %2116 = vmatprep.subr.bf16.mxu0 0
        %2117 = vmatpush1.bf16.msra.mxu0 0
        %2118 = vmatprep.subr.bf16.mxu0 0
        %2119 = vmatpush1.bf16.msra.mxu0 0
        %2120 = vmatprep.subr.bf16.mxu0 0
        %2121 = vmatpush1.bf16.msra.mxu0 0
        %2122 = vmatprep.mubr.bf16.mxu0 0
        %2123 = vmatmul.mubr.bf16.gmra.mrb[0].mxu0 %v1993
        %v2124 = vpop.f32.mrb[0].mxu0
        %v2125 = vadd.f32 %v2040, %v2124
        %v2126 = vpop.f32.mrb[0].mxu0
        %v2127 = vpop.f32.mrb[0].mxu0
        %v2128 = vadd.f32 %v2040, %v2127
        %v2129 = vpop.f32.mrb[0].mxu0
        %2130 = vmatprep.mubr.bf16.mxu0 0
        %2131 = vmatmul.mubr.bf16.gmra.mrb[0].mxu0 %v1994
        %v2132 = vpop.f32.mrb[0].mxu0
        %v2133 = vadd.f32 %v2040, %v2132
        %v2134 = vpop.f32.mrb[0].mxu0
        %v2135 = vpop.f32.mrb[0].mxu0
        %v2136 = vadd.f32 %v2040, %v2135
        %v2137 = vpop.f32.mrb[0].mxu0
        %2138 = vmatprep.mubr.bf16.mxu0 0
        %2139 = vmatmul.mubr.bf16.gmra.mrb[0].mxu0 %v1995
        %v2140 = vpop.f32.mrb[0].mxu0
        %v2141 = vadd.f32 %v2040, %v2140
        %v2142 = vpop.f32.mrb[0].mxu0
        %v2143 = vpop.f32.mrb[0].mxu0
        %v2144 = vadd.f32 %v2040, %v2143
        %v2145 = vpop.f32.mrb[0].mxu0
        %2146 = vmatprep.mubr.bf16.mxu0 0
        %2147 = vmatmul.mubr.bf16.gmra.mrb[0].mxu0 %v1996
        %v2148 = vpop.f32.mrb[0].mxu0
        %v2149 = vadd.f32 %v2040, %v2148
        %v2150 = vpop.f32.mrb[0].mxu0
        %v2151 = vpop.f32.mrb[0].mxu0
        %v2152 = vadd.f32 %v2040, %v2151
        %v2153 = vpop.f32.mrb[0].mxu0
        %2154 = vmatprep.mubr.bf16.mxu0 0
        %2155 = vmatmul.mubr.bf16.gmra.mrb[0].mxu0 %v1997
        %v2156 = vpop.f32.mrb[0].mxu0
        %v2157 = vadd.f32 %v2040, %v2156
        %v2158 = vpop.f32.mrb[0].mxu0
        %v2159 = vpop.f32.mrb[0].mxu0
        %v2160 = vadd.f32 %v2040, %v2159
        %v2161 = vpop.f32.mrb[0].mxu0
        %2162 = vmatprep.mubr.bf16.mxu0 0
        %2163 = vmatmul.mubr.bf16.gmra.mrb[0].mxu0 %v1998
        %v2164 = vpop.f32.mrb[0].mxu0
        %v2165 = vadd.f32 %v2040, %v2164
        %v2166 = vpop.f32.mrb[0].mxu0
        %v2167 = vpop.f32.mrb[0].mxu0
        %v2168 = vadd.f32 %v2040, %v2167
        %v2169 = vpop.f32.mrb[0].mxu0
        %2170 = vmatprep.mubr.bf16.mxu0 0
        %2171 = vmatmul.mubr.bf16.gmra.mrb[0].mxu0 %v1999
        %v2172 = vpop.f32.mrb[0].mxu0
        %v2173 = vadd.f32 %v2040, %v2172
        %v2174 = vpop.f32.mrb[0].mxu0
        %v2175 = vpop.f32.mrb[0].mxu0
        %v2176 = vadd.f32 %v2040, %v2175
        %v2177 = vpop.f32.mrb[0].mxu0
        %2178 = vmatprep.mubr.bf16.mxu0 0
        %2179 = vmatmul.mubr.bf16.gmra.mrb[0].mxu0 %v2000
        %v2180 = vpop.f32.mrb[0].mxu0
        %v2181 = vadd.f32 %v2040, %v2180
        %v2182 = vpop.f32.mrb[0].mxu0
        %v2183 = vpop.f32.mrb[0].mxu0
        %v2184 = vadd.f32 %v2040, %v2183
        %v2185 = vpop.f32.mrb[0].mxu0
        %2186 = vmatprep.mubr.bf16.mxu0 0
        %2187 = vmatmul.mubr.bf16.gmra.mrb[0].mxu0 %v2001
        %v2188 = vpop.f32.mrb[0].mxu0
        %v2189 = vadd.f32 %v2040, %v2188
        %v2190 = vpop.f32.mrb[0].mxu0
        %v2191 = vpop.f32.mrb[0].mxu0
        %v2192 = vadd.f32 %v2040, %v2191
        %v2193 = vpop.f32.mrb[0].mxu0
        %2194 = vmatprep.mubr.bf16.mxu0 0
        %2195 = vmatmul.mubr.bf16.gmra.mrb[0].mxu0 %v2002
        %v2196 = vpop.f32.mrb[0].mxu0
        %v2197 = vadd.f32 %v2040, %v2196
        %v2198 = vpop.f32.mrb[0].mxu0
        %v2199 = vpop.f32.mrb[0].mxu0
        %v2200 = vadd.f32 %v2040, %v2199
        %v2201 = vpop.f32.mrb[0].mxu0
        %2202 = vmatprep.mubr.bf16.mxu0 0
        %2203 = vmatmul.mubr.bf16.gmra.mrb[0].mxu0 %v2003
        %v2204 = vpop.f32.mrb[0].mxu0
        %v2205 = vadd.f32 %v2040, %v2204
        %v2206 = vpop.f32.mrb[0].mxu0
        %v2207 = vpop.f32.mrb[0].mxu0
        %v2208 = vadd.f32 %v2040, %v2207
        %v2209 = vpop.f32.mrb[0].mxu0
        %2210 = vmatprep.mubr.bf16.mxu0 0
        %2211 = vmatmul.mubr.bf16.gmra.mrb[0].mxu0 %v2004
        %v2212 = vpop.f32.mrb[0].mxu0
        %v2213 = vadd.f32 %v2040, %v2212
        %v2214 = vpop.f32.mrb[0].mxu0
        %v2215 = vpop.f32.mrb[0].mxu0
        %v2216 = vadd.f32 %v2040, %v2215
        %v2217 = vpop.f32.mrb[0].mxu0
        %2218 = vmatprep.mubr.bf16.mxu0 0
        %2219 = vmatmul.mubr.bf16.gmra.mrb[0].mxu0 %v2005
        %v2220 = vpop.f32.mrb[0].mxu0
        %v2221 = vadd.f32 %v2040, %v2220
        %v2222 = vpop.f32.mrb[0].mxu0
        %v2223 = vpop.f32.mrb[0].mxu0
        %v2224 = vadd.f32 %v2040, %v2223
        %v2225 = vpop.f32.mrb[0].mxu0
        %2226 = vmatprep.mubr.bf16.mxu0 0
        %2227 = vmatmul.mubr.bf16.gmra.mrb[0].mxu0 %v2006
        %v2228 = vpop.f32.mrb[0].mxu0
        %v2229 = vadd.f32 %v2040, %v2228
        %v2230 = vpop.f32.mrb[0].mxu0
        %v2231 = vpop.f32.mrb[0].mxu0
        %v2232 = vadd.f32 %v2040, %v2231
        %v2233 = vpop.f32.mrb[0].mxu0
        %2234 = vmatprep.mubr.bf16.mxu0 0
        %2235 = vmatmul.mubr.bf16.gmra.mrb[0].mxu0 %v2007
        %v2236 = vpop.f32.mrb[0].mxu0
        %v2237 = vadd.f32 %v2040, %v2236
        %v2238 = vpop.f32.mrb[0].mxu0
        %v2239 = vpop.f32.mrb[0].mxu0
        %v2240 = vadd.f32 %v2040, %v2239
        %v2241 = vpop.f32.mrb[0].mxu0
        %2242 = vmatprep.mubr.bf16.mxu0 0
        %2243 = vmatmul.mubr.bf16.gmra.mrb[0].mxu0 %v2008
        %v2244 = vpop.f32.mrb[0].mxu0
        %v2245 = vadd.f32 %v2040, %v2244
        %v2246 = vpop.f32.mrb[0].mxu0
        %v2247 = vpop.f32.mrb[0].mxu0
        %v2248 = vadd.f32 %v2040, %v2247
        %v2249 = vpop.f32.mrb[0].mxu0
        %2250 = vmatprep.mubr.bf16.mxu0 0
        %2251 = vmatmul.mubr.bf16.gmra.mrb[0].mxu0 %v2009
        %v2252 = vpop.f32.mrb[0].mxu0
        %v2253 = vadd.f32 %v2040, %v2252
        %v2254 = vpop.f32.mrb[0].mxu0
        %v2255 = vpop.f32.mrb[0].mxu0
        %v2256 = vadd.f32 %v2040, %v2255
        %v2257 = vpop.f32.mrb[0].mxu0
        %2258 = vmatprep.mubr.bf16.mxu0 0
        %2259 = vmatmul.mubr.bf16.gmra.mrb[0].mxu0 %v2010
        %v2260 = vpop.f32.mrb[0].mxu0
        %v2261 = vadd.f32 %v2040, %v2260
        %v2262 = vpop.f32.mrb[0].mxu0
        %v2263 = vpop.f32.mrb[0].mxu0
        %v2264 = vadd.f32 %v2040, %v2263
        %v2265 = vpop.f32.mrb[0].mxu0
        %2266 = vmatprep.mubr.bf16.mxu0 0
        %2267 = vmatmul.mubr.bf16.gmra.mrb[0].mxu0 %v2011
        %v2268 = vpop.f32.mrb[0].mxu0
        %v2269 = vadd.f32 %v2040, %v2268
        %v2270 = vpop.f32.mrb[0].mxu0
        %v2271 = vpop.f32.mrb[0].mxu0
        %v2272 = vadd.f32 %v2040, %v2271
        %v2273 = vpop.f32.mrb[0].mxu0
        %2274 = vmatprep.mubr.bf16.mxu0 0
        %2275 = vmatmul.mubr.bf16.gmra.mrb[0].mxu0 %v2012
        %v2276 = vpop.f32.mrb[0].mxu0
        %v2277 = vadd.f32 %v2040, %v2276
        %v2278 = vpop.f32.mrb[0].mxu0
        %v2279 = vpop.f32.mrb[0].mxu0
        %v2280 = vadd.f32 %v2040, %v2279
        %v2281 = vpop.f32.mrb[0].mxu0
        %2282 = vmatprep.mubr.bf16.mxu0 0
        %2283 = vmatmul.mubr.bf16.gmra.mrb[0].mxu0 %v2013
        %v2284 = vpop.f32.mrb[0].mxu0
        %v2285 = vadd.f32 %v2040, %v2284
        %v2286 = vpop.f32.mrb[0].mxu0
        %v2287 = vpop.f32.mrb[0].mxu0
        %v2288 = vadd.f32 %v2040, %v2287
        %v2289 = vpop.f32.mrb[0].mxu0
        %2290 = vmatprep.mubr.bf16.mxu0 0
        %2291 = vmatmul.mubr.bf16.gmra.mrb[0].mxu0 %v2014
        %v2292 = vpop.f32.mrb[0].mxu0
        %v2293 = vadd.f32 %v2040, %v2292
        %v2294 = vpop.f32.mrb[0].mxu0
        %v2295 = vpop.f32.mrb[0].mxu0
        %v2296 = vadd.f32 %v2040, %v2295
        %v2297 = vpop.f32.mrb[0].mxu0
        %2298 = vmatprep.mubr.bf16.mxu0 0
        %2299 = vmatmul.mubr.bf16.gmra.mrb[0].mxu0 %v2015
        %v2300 = vpop.f32.mrb[0].mxu0
        %v2301 = vadd.f32 %v2040, %v2300
        %v2302 = vpop.f32.mrb[0].mxu0
        %v2303 = vpop.f32.mrb[0].mxu0
        %v2304 = vadd.f32 %v2040, %v2303
        %v2305 = vpop.f32.mrb[0].mxu0
        %2306 = vmatprep.mubr.bf16.mxu0 0
        %2307 = vmatmul.mubr.bf16.gmra.mrb[0].mxu0 %v2016
        %v2308 = vpop.f32.mrb[0].mxu0
        %v2309 = vadd.f32 %v2040, %v2308
        %v2310 = vpop.f32.mrb[0].mxu0
        %v2311 = vpop.f32.mrb[0].mxu0
        %v2312 = vadd.f32 %v2040, %v2311
        %v2313 = vpop.f32.mrb[0].mxu0
        %2314 = vdwg.mxu0
        %v2315 = vmax.f32 %v2125, 0.0
        %v2316 = vmax.f32 %v2128, 0.0
        %v2317 = vmax.f32 %v2133, 0.0
        %v2318 = vmax.f32 %v2136, 0.0
        %v2319 = vmax.f32 %v2141, 0.0
        %v2320 = vmax.f32 %v2144, 0.0
        %v2321 = vmax.f32 %v2149, 0.0
        %v2322 = vmax.f32 %v2152, 0.0
        %v2323 = vmax.f32 %v2157, 0.0
        %v2324 = vmax.f32 %v2160, 0.0
        %v2325 = vmax.f32 %v2165, 0.0
        %v2326 = vmax.f32 %v2168, 0.0
        %v2327 = vmax.f32 %v2173, 0.0
        %v2328 = vmax.f32 %v2176, 0.0
        %v2329 = vmax.f32 %v2181, 0.0
        %v2330 = vmax.f32 %v2184, 0.0
        %v2331 = vmax.f32 %v2189, 0.0
        %v2332 = vmax.f32 %v2192, 0.0
        %v2333 = vmax.f32 %v2197, 0.0
        %v2334 = vmax.f32 %v2200, 0.0
        %v2335 = vmax.f32 %v2205, 0.0
        %v2336 = vmax.f32 %v2208, 0.0
        %v2337 = vmax.f32 %v2213, 0.0
        %v2338 = vmax.f32 %v2216, 0.0
        %v2339 = vmax.f32 %v2221, 0.0
        %v2340 = vmax.f32 %v2224, 0.0
        %v2341 = vmax.f32 %v2229, 0.0
        %v2342 = vmax.f32 %v2232, 0.0
        %v2343 = vmax.f32 %v2237, 0.0
        %v2344 = vmax.f32 %v2240, 0.0
        %v2345 = vmax.f32 %v2245, 0.0
        %v2346 = vmax.f32 %v2248, 0.0
        %v2347 = vmax.f32 %v2253, 0.0
        %v2348 = vmax.f32 %v2256, 0.0
        %v2349 = vmax.f32 %v2261, 0.0
        %v2350 = vmax.f32 %v2264, 0.0
        %v2351 = vmax.f32 %v2269, 0.0
        %v2352 = vmax.f32 %v2272, 0.0
        %v2353 = vmax.f32 %v2277, 0.0
        %v2354 = vmax.f32 %v2280, 0.0
        %v2355 = vmax.f32 %v2285, 0.0
        %v2356 = vmax.f32 %v2288, 0.0
        %v2357 = vmax.f32 %v2293, 0.0
        %v2358 = vmax.f32 %v2296, 0.0
        %v2359 = vmax.f32 %v2301, 0.0
        %v2360 = vmax.f32 %v2304, 0.0
        %v2361 = vmax.f32 %v2309, 0.0
        %v2362 = vmax.f32 %v2312, 0.0
        %v2363 = vpack.c.bf16 %v2316, %v2315
        %v2364 = vpack.c.bf16 %v2318, %v2317
        %v2365 = vpack.c.bf16 %v2320, %v2319
        %v2366 = vpack.c.bf16 %v2322, %v2321
        %v2367 = vpack.c.bf16 %v2324, %v2323
        %v2368 = vpack.c.bf16 %v2326, %v2325
        %v2369 = vpack.c.bf16 %v2328, %v2327
        %v2370 = vpack.c.bf16 %v2330, %v2329
        %v2371 = vpack.c.bf16 %v2332, %v2331
        %v2372 = vpack.c.bf16 %v2334, %v2333
        %v2373 = vpack.c.bf16 %v2336, %v2335
        %v2374 = vpack.c.bf16 %v2338, %v2337
        %v2375 = vpack.c.bf16 %v2340, %v2339
        %v2376 = vpack.c.bf16 %v2342, %v2341
        %v2377 = vpack.c.bf16 %v2344, %v2343
        %v2378 = vpack.c.bf16 %v2346, %v2345
        %v2379 = vpack.c.bf16 %v2348, %v2347
        %v2380 = vpack.c.bf16 %v2350, %v2349
        %v2381 = vpack.c.bf16 %v2352, %v2351
        %v2382 = vpack.c.bf16 %v2354, %v2353
        %v2383 = vpack.c.bf16 %v2356, %v2355
        %v2384 = vpack.c.bf16 %v2358, %v2357
        %v2385 = vpack.c.bf16 %v2360, %v2359
        %v2386 = vpack.c.bf16 %v2362, %v2361
        %s2387 = scalar_lea.vmem %s2, 256
        %v2388 = vld [vmem:[%s2387] sm:$0xf]
        %v2389 = vld [vmem:[%s2387 + $0x4] sm:$0xf]
        %v2390 = vld [vmem:[%s2387 + $0x8] sm:$0xf]
        %v2391 = vld [vmem:[%s2387 + $0xc] sm:$0xf]
        %v2392 = vld [vmem:[%s2387 + $0x10] sm:$0xf]
        %v2393 = vld [vmem:[%s2387 + $0x14] sm:$0xf]
        %v2394 = vld [vmem:[%s2387 + $0x18] sm:$0xf]
        %v2395 = vld [vmem:[%s2387 + $0x1c] sm:$0xf]
        %v2396 = vld [vmem:[%s2387 + $0x20] sm:$0xf]
        %v2397 = vld [vmem:[%s2387 + $0x24] sm:$0xf]
        %v2398 = vld [vmem:[%s2387 + $0x28] sm:$0xf]
        %v2399 = vld [vmem:[%s2387 + $0x2c] sm:$0xf]
        %v2400 = vld [vmem:[%s2387 + $0x30] sm:$0xf]
        %v2401 = vld [vmem:[%s2387 + $0x34] sm:$0xf]
        %v2402 = vld [vmem:[%s2387 + $0x38] sm:$0xf]
        %v2403 = vld [vmem:[%s2387 + $0x3c] sm:$0xf]
        %v2420 = vunpack.c.l.b16 %v2388
        %v2421 = vunpack.c.l.b16 %v2389
        %v2422 = vunpack.c.l.b16 %v2390
        %v2423 = vunpack.c.l.b16 %v2391
        %v2424 = vunpack.c.l.b16 %v2392
        %v2425 = vunpack.c.l.b16 %v2393
        %v2426 = vunpack.c.l.b16 %v2394
        %v2427 = vunpack.c.l.b16 %v2395
        %v2428 = vunpack.c.l.b16 %v2396
        %v2429 = vunpack.c.l.b16 %v2397
        %v2430 = vunpack.c.l.b16 %v2398
        %v2431 = vunpack.c.l.b16 %v2399
        %v2432 = vunpack.c.l.b16 %v2400
        %v2433 = vunpack.c.l.b16 %v2401
        %v2434 = vunpack.c.l.b16 %v2402
        %v2435 = vunpack.c.l.b16 %v2403
        %v2436 = vpack.c.b16 %v2421, %v2420
        %v2437 = vpack.c.b16 %v2423, %v2422
        %v2438 = vpack.c.b16 %v2425, %v2424
        %v2439 = vpack.c.b16 %v2427, %v2426
        %v2440 = vpack.c.b16 %v2429, %v2428
        %v2441 = vpack.c.b16 %v2431, %v2430
        %v2442 = vpack.c.b16 %v2433, %v2432
        %v2443 = vpack.c.b16 %v2435, %v2434
        %2452 = vmatprep.subr.bf16.mxu0 0
        %2453 = vmatpush1.bf16.msra.mxu0 %v2436
        %2454 = vmatprep.subr.bf16.mxu0 0
        %2455 = vmatpush1.bf16.msra.mxu0 %v2437
        %2456 = vmatprep.subr.bf16.mxu0 0
        %2457 = vmatpush1.bf16.msra.mxu0 %v2438
        %2458 = vmatprep.subr.bf16.mxu0 0
        %2459 = vmatpush1.bf16.msra.mxu0 %v2439
        %2460 = vmatprep.subr.bf16.mxu0 0
        %2461 = vmatpush1.bf16.msra.mxu0 %v2440
        %2462 = vmatprep.subr.bf16.mxu0 0
        %2463 = vmatpush1.bf16.msra.mxu0 %v2441
        %2464 = vmatprep.subr.bf16.mxu0 0
        %2465 = vmatpush1.bf16.msra.mxu0 %v2442
        %2466 = vmatprep.subr.bf16.mxu0 0
        %2467 = vmatpush1.bf16.msra.mxu0 %v2443
        %2468 = vmatprep.subr.bf16.mxu0 0
        %2469 = vmatpush1.bf16.msra.mxu0 0
        %2470 = vmatprep.subr.bf16.mxu0 0
        %2471 = vmatpush1.bf16.msra.mxu0 0
        %2472 = vmatprep.subr.bf16.mxu0 0
        %2473 = vmatpush1.bf16.msra.mxu0 0
        %2474 = vmatprep.subr.bf16.mxu0 0
        %2475 = vmatpush1.bf16.msra.mxu0 0
        %2476 = vmatprep.subr.bf16.mxu0 0
        %2477 = vmatpush1.bf16.msra.mxu0 0
        %2478 = vmatprep.subr.bf16.mxu0 0
        %2479 = vmatpush1.bf16.msra.mxu0 0
        %2480 = vmatprep.subr.bf16.mxu0 0
        %2481 = vmatpush1.bf16.msra.mxu0 0
        %2482 = vmatprep.subr.bf16.mxu0 0
        %2483 = vmatpush1.bf16.msra.mxu0 0
        %2484 = vmatprep.mubr.bf16.mxu0 0
        %2485 = vmatmul.mubr.bf16.gmra.mrb[0].mxu0 %v2363
        %v2486 = vpop.f32.mrb[0].mxu0
        %v2487 = vadd.f32 %v545, %v2486
        %v2488 = vpop.f32.mrb[0].mxu0
        %v2489 = vpop.f32.mrb[0].mxu0
        %v2490 = vadd.f32 %v549, %v2489
        %v2491 = vpop.f32.mrb[0].mxu0
        %2492 = vmatprep.mubr.bf16.mxu0 0
        %2493 = vmatmul.mubr.bf16.gmra.mrb[0].mxu0 %v2364
        %v2494 = vpop.f32.mrb[0].mxu0
        %v2495 = vadd.f32 %v555, %v2494
        %v2496 = vpop.f32.mrb[0].mxu0
        %v2497 = vpop.f32.mrb[0].mxu0
        %v2498 = vadd.f32 %v559, %v2497
        %v2499 = vpop.f32.mrb[0].mxu0
        %2500 = vmatprep.mubr.bf16.mxu0 0
        %2501 = vmatmul.mubr.bf16.gmra.mrb[0].mxu0 %v2365
        %v2502 = vpop.f32.mrb[0].mxu0
        %v2503 = vadd.f32 %v565, %v2502
        %v2504 = vpop.f32.mrb[0].mxu0
        %v2505 = vpop.f32.mrb[0].mxu0
        %v2506 = vadd.f32 %v569, %v2505
        %v2507 = vpop.f32.mrb[0].mxu0
        %2508 = vmatprep.mubr.bf16.mxu0 0
        %2509 = vmatmul.mubr.bf16.gmra.mrb[0].mxu0 %v2366
        %v2510 = vpop.f32.mrb[0].mxu0
        %v2511 = vadd.f32 %v575, %v2510
        %v2512 = vpop.f32.mrb[0].mxu0
        %v2513 = vpop.f32.mrb[0].mxu0
        %v2514 = vadd.f32 %v579, %v2513
        %v2515 = vpop.f32.mrb[0].mxu0
        %2516 = vmatprep.mubr.bf16.mxu0 0
        %2517 = vmatmul.mubr.bf16.gmra.mrb[0].mxu0 %v2367
        %v2518 = vpop.f32.mrb[0].mxu0
        %v2519 = vadd.f32 %v585, %v2518
        %v2520 = vpop.f32.mrb[0].mxu0
        %v2521 = vpop.f32.mrb[0].mxu0
        %v2522 = vadd.f32 %v589, %v2521
        %v2523 = vpop.f32.mrb[0].mxu0
        %2524 = vmatprep.mubr.bf16.mxu0 0
        %2525 = vmatmul.mubr.bf16.gmra.mrb[0].mxu0 %v2368
        %v2526 = vpop.f32.mrb[0].mxu0
        %v2527 = vadd.f32 %v595, %v2526
        %v2528 = vpop.f32.mrb[0].mxu0
        %v2529 = vpop.f32.mrb[0].mxu0
        %v2530 = vadd.f32 %v599, %v2529
        %v2531 = vpop.f32.mrb[0].mxu0
        %2532 = vmatprep.mubr.bf16.mxu0 0
        %2533 = vmatmul.mubr.bf16.gmra.mrb[0].mxu0 %v2369
        %v2534 = vpop.f32.mrb[0].mxu0
        %v2535 = vadd.f32 %v605, %v2534
        %v2536 = vpop.f32.mrb[0].mxu0
        %v2537 = vpop.f32.mrb[0].mxu0
        %v2538 = vadd.f32 %v609, %v2537
        %v2539 = vpop.f32.mrb[0].mxu0
        %2540 = vmatprep.mubr.bf16.mxu0 0
        %2541 = vmatmul.mubr.bf16.gmra.mrb[0].mxu0 %v2370
        %v2542 = vpop.f32.mrb[0].mxu0
        %v2543 = vadd.f32 %v615, %v2542
        %v2544 = vpop.f32.mrb[0].mxu0
        %v2545 = vpop.f32.mrb[0].mxu0
        %v2546 = vadd.f32 %v619, %v2545
        %v2547 = vpop.f32.mrb[0].mxu0
        %2548 = vmatprep.mubr.bf16.mxu0 0
        %2549 = vmatmul.mubr.bf16.gmra.mrb[0].mxu0 %v2371
        %v2550 = vpop.f32.mrb[0].mxu0
        %v2551 = vadd.f32 %v625, %v2550
        %v2552 = vpop.f32.mrb[0].mxu0
        %v2553 = vpop.f32.mrb[0].mxu0
        %v2554 = vadd.f32 %v629, %v2553
        %v2555 = vpop.f32.mrb[0].mxu0
        %2556 = vmatprep.mubr.bf16.mxu0 0
        %2557 = vmatmul.mubr.bf16.gmra.mrb[0].mxu0 %v2372
        %v2558 = vpop.f32.mrb[0].mxu0
        %v2559 = vadd.f32 %v635, %v2558
        %v2560 = vpop.f32.mrb[0].mxu0
        %v2561 = vpop.f32.mrb[0].mxu0
        %v2562 = vadd.f32 %v639, %v2561
        %v2563 = vpop.f32.mrb[0].mxu0
        %2564 = vmatprep.mubr.bf16.mxu0 0
        %2565 = vmatmul.mubr.bf16.gmra.mrb[0].mxu0 %v2373
        %v2566 = vpop.f32.mrb[0].mxu0
        %v2567 = vadd.f32 %v645, %v2566
        %v2568 = vpop.f32.mrb[0].mxu0
        %v2569 = vpop.f32.mrb[0].mxu0
        %v2570 = vadd.f32 %v649, %v2569
        %v2571 = vpop.f32.mrb[0].mxu0
        %2572 = vmatprep.mubr.bf16.mxu0 0
        %2573 = vmatmul.mubr.bf16.gmra.mrb[0].mxu0 %v2374
        %v2574 = vpop.f32.mrb[0].mxu0
        %v2575 = vadd.f32 %v655, %v2574
        %v2576 = vpop.f32.mrb[0].mxu0
        %v2577 = vpop.f32.mrb[0].mxu0
        %v2578 = vadd.f32 %v659, %v2577
        %v2579 = vpop.f32.mrb[0].mxu0
        %2580 = vmatprep.mubr.bf16.mxu0 0
        %2581 = vmatmul.mubr.bf16.gmra.mrb[0].mxu0 %v2375
        %v2582 = vpop.f32.mrb[0].mxu0
        %v2583 = vadd.f32 %v665, %v2582
        %v2584 = vpop.f32.mrb[0].mxu0
        %v2585 = vpop.f32.mrb[0].mxu0
        %v2586 = vadd.f32 %v669, %v2585
        %v2587 = vpop.f32.mrb[0].mxu0
        %2588 = vmatprep.mubr.bf16.mxu0 0
        %2589 = vmatmul.mubr.bf16.gmra.mrb[0].mxu0 %v2376
        %v2590 = vpop.f32.mrb[0].mxu0
        %v2591 = vadd.f32 %v675, %v2590
        %v2592 = vpop.f32.mrb[0].mxu0
        %v2593 = vpop.f32.mrb[0].mxu0
        %v2594 = vadd.f32 %v679, %v2593
        %v2595 = vpop.f32.mrb[0].mxu0
        %2596 = vmatprep.mubr.bf16.mxu0 0
        %2597 = vmatmul.mubr.bf16.gmra.mrb[0].mxu0 %v2377
        %v2598 = vpop.f32.mrb[0].mxu0
        %v2599 = vadd.f32 %v685, %v2598
        %v2600 = vpop.f32.mrb[0].mxu0
        %v2601 = vpop.f32.mrb[0].mxu0
        %v2602 = vadd.f32 %v689, %v2601
        %v2603 = vpop.f32.mrb[0].mxu0
        %2604 = vmatprep.mubr.bf16.mxu0 0
        %2605 = vmatmul.mubr.bf16.gmra.mrb[0].mxu0 %v2378
        %v2606 = vpop.f32.mrb[0].mxu0
        %v2607 = vadd.f32 %v695, %v2606
        %v2608 = vpop.f32.mrb[0].mxu0
        %v2609 = vpop.f32.mrb[0].mxu0
        %v2610 = vadd.f32 %v699, %v2609
        %v2611 = vpop.f32.mrb[0].mxu0
        %2612 = vmatprep.mubr.bf16.mxu0 0
        %2613 = vmatmul.mubr.bf16.gmra.mrb[0].mxu0 %v2379
        %v2614 = vpop.f32.mrb[0].mxu0
        %v2615 = vadd.f32 %v705, %v2614
        %v2616 = vpop.f32.mrb[0].mxu0
        %v2617 = vpop.f32.mrb[0].mxu0
        %v2618 = vadd.f32 %v709, %v2617
        %v2619 = vpop.f32.mrb[0].mxu0
        %2620 = vmatprep.mubr.bf16.mxu0 0
        %2621 = vmatmul.mubr.bf16.gmra.mrb[0].mxu0 %v2380
        %v2622 = vpop.f32.mrb[0].mxu0
        %v2623 = vadd.f32 %v715, %v2622
        %v2624 = vpop.f32.mrb[0].mxu0
        %v2625 = vpop.f32.mrb[0].mxu0
        %v2626 = vadd.f32 %v719, %v2625
        %v2627 = vpop.f32.mrb[0].mxu0
        %2628 = vmatprep.mubr.bf16.mxu0 0
        %2629 = vmatmul.mubr.bf16.gmra.mrb[0].mxu0 %v2381
        %v2630 = vpop.f32.mrb[0].mxu0
        %v2631 = vadd.f32 %v725, %v2630
        %v2632 = vpop.f32.mrb[0].mxu0
        %v2633 = vpop.f32.mrb[0].mxu0
        %v2634 = vadd.f32 %v729, %v2633
        %v2635 = vpop.f32.mrb[0].mxu0
        %2636 = vmatprep.mubr.bf16.mxu0 0
        %2637 = vmatmul.mubr.bf16.gmra.mrb[0].mxu0 %v2382
        %v2638 = vpop.f32.mrb[0].mxu0
        %v2639 = vadd.f32 %v735, %v2638
        %v2640 = vpop.f32.mrb[0].mxu0
        %v2641 = vpop.f32.mrb[0].mxu0
        %v2642 = vadd.f32 %v739, %v2641
        %v2643 = vpop.f32.mrb[0].mxu0
        %2644 = vmatprep.mubr.bf16.mxu0 0
        %2645 = vmatmul.mubr.bf16.gmra.mrb[0].mxu0 %v2383
        %v2646 = vpop.f32.mrb[0].mxu0
        %v2647 = vadd.f32 %v745, %v2646
        %v2648 = vpop.f32.mrb[0].mxu0
        %v2649 = vpop.f32.mrb[0].mxu0
        %v2650 = vadd.f32 %v749, %v2649
        %v2651 = vpop.f32.mrb[0].mxu0
        %2652 = vmatprep.mubr.bf16.mxu0 0
        %2653 = vmatmul.mubr.bf16.gmra.mrb[0].mxu0 %v2384
        %v2654 = vpop.f32.mrb[0].mxu0
        %v2655 = vadd.f32 %v755, %v2654
        %v2656 = vpop.f32.mrb[0].mxu0
        %v2657 = vpop.f32.mrb[0].mxu0
        %v2658 = vadd.f32 %v759, %v2657
        %v2659 = vpop.f32.mrb[0].mxu0
        %2660 = vmatprep.mubr.bf16.mxu0 0
        %2661 = vmatmul.mubr.bf16.gmra.mrb[0].mxu0 %v2385
        %v2662 = vpop.f32.mrb[0].mxu0
        %v2663 = vadd.f32 %v765, %v2662
        %v2664 = vpop.f32.mrb[0].mxu0
        %v2665 = vpop.f32.mrb[0].mxu0
        %v2666 = vadd.f32 %v769, %v2665
        %v2667 = vpop.f32.mrb[0].mxu0
        %2668 = vmatprep.mubr.bf16.mxu0 0
        %2669 = vmatmul.mubr.bf16.gmra.mrb[0].mxu0 %v2386
        %v2670 = vpop.f32.mrb[0].mxu0
        %v2671 = vadd.f32 %v775, %v2670
        %v2672 = vpop.f32.mrb[0].mxu0
        %v2673 = vpop.f32.mrb[0].mxu0
        %v2674 = vadd.f32 %v779, %v2673
        %v2675 = vpop.f32.mrb[0].mxu0
        %2676 = vdwg.mxu0
        %s2677 = scalar_lea.vmem %s3, 5
        %v2678 = vld [vmem:[%s2677] sm:$0x1]
        %v2680 = vlaneseq
        %v2681 = vshrl.u32 %v2680, 7
        %v2682 = vsub.s32 0, %v2681
        %v2683 = vrot.slane %v2678, %v2682
        %v2685 = vadd.f32 %v2487, %v2683
        %v2686 = vadd.f32 %v2490, %v2683
        %v2687 = vadd.f32 %v2495, %v2683
        %v2688 = vadd.f32 %v2498, %v2683
        %v2689 = vadd.f32 %v2503, %v2683
        %v2690 = vadd.f32 %v2506, %v2683
        %v2691 = vadd.f32 %v2511, %v2683
        %v2692 = vadd.f32 %v2514, %v2683
        %v2693 = vadd.f32 %v2519, %v2683
        %v2694 = vadd.f32 %v2522, %v2683
        %v2695 = vadd.f32 %v2527, %v2683
        %v2696 = vadd.f32 %v2530, %v2683
        %v2697 = vadd.f32 %v2535, %v2683
        %v2698 = vadd.f32 %v2538, %v2683
        %v2699 = vadd.f32 %v2543, %v2683
        %v2700 = vadd.f32 %v2546, %v2683
        %v2701 = vadd.f32 %v2551, %v2683
        %v2702 = vadd.f32 %v2554, %v2683
        %v2703 = vadd.f32 %v2559, %v2683
        %v2704 = vadd.f32 %v2562, %v2683
        %v2705 = vadd.f32 %v2567, %v2683
        %v2706 = vadd.f32 %v2570, %v2683
        %v2707 = vadd.f32 %v2575, %v2683
        %v2708 = vadd.f32 %v2578, %v2683
        %v2709 = vadd.f32 %v2583, %v2683
        %v2710 = vadd.f32 %v2586, %v2683
        %v2711 = vadd.f32 %v2591, %v2683
        %v2712 = vadd.f32 %v2594, %v2683
        %v2713 = vadd.f32 %v2599, %v2683
        %v2714 = vadd.f32 %v2602, %v2683
        %v2715 = vadd.f32 %v2607, %v2683
        %v2716 = vadd.f32 %v2610, %v2683
        %v2717 = vadd.f32 %v2615, %v2683
        %v2718 = vadd.f32 %v2618, %v2683
        %v2719 = vadd.f32 %v2623, %v2683
        %v2720 = vadd.f32 %v2626, %v2683
        %v2721 = vadd.f32 %v2631, %v2683
        %v2722 = vadd.f32 %v2634, %v2683
        %v2723 = vadd.f32 %v2639, %v2683
        %v2724 = vadd.f32 %v2642, %v2683
        %v2725 = vadd.f32 %v2647, %v2683
        %v2726 = vadd.f32 %v2650, %v2683
        %v2727 = vadd.f32 %v2655, %v2683
        %v2728 = vadd.f32 %v2658, %v2683
        %v2729 = vadd.f32 %v2663, %v2683
        %v2730 = vadd.f32 %v2666, %v2683
        %v2731 = vadd.f32 %v2671, %v2683
        %v2732 = vadd.f32 %v2674, %v2683
        %v2733 = vmax.f32 %v2685, 0.0
        %v2734 = vmax.f32 %v2686, 0.0
        %v2735 = vmax.f32 %v2687, 0.0
        %v2736 = vmax.f32 %v2688, 0.0
        %v2737 = vmax.f32 %v2689, 0.0
        %v2738 = vmax.f32 %v2690, 0.0
        %v2739 = vmax.f32 %v2691, 0.0
        %v2740 = vmax.f32 %v2692, 0.0
        %v2741 = vmax.f32 %v2693, 0.0
        %v2742 = vmax.f32 %v2694, 0.0
        %v2743 = vmax.f32 %v2695, 0.0
        %v2744 = vmax.f32 %v2696, 0.0
        %v2745 = vmax.f32 %v2697, 0.0
        %v2746 = vmax.f32 %v2698, 0.0
        %v2747 = vmax.f32 %v2699, 0.0
        %v2748 = vmax.f32 %v2700, 0.0
        %v2749 = vmax.f32 %v2701, 0.0
        %v2750 = vmax.f32 %v2702, 0.0
        %v2751 = vmax.f32 %v2703, 0.0
        %v2752 = vmax.f32 %v2704, 0.0
        %v2753 = vmax.f32 %v2705, 0.0
        %v2754 = vmax.f32 %v2706, 0.0
        %v2755 = vmax.f32 %v2707, 0.0
        %v2756 = vmax.f32 %v2708, 0.0
        %v2757 = vmax.f32 %v2709, 0.0
        %v2758 = vmax.f32 %v2710, 0.0
        %v2759 = vmax.f32 %v2711, 0.0
        %v2760 = vmax.f32 %v2712, 0.0
        %v2761 = vmax.f32 %v2713, 0.0
        %v2762 = vmax.f32 %v2714, 0.0
        %v2763 = vmax.f32 %v2715, 0.0
        %v2764 = vmax.f32 %v2716, 0.0
        %v2765 = vmax.f32 %v2717, 0.0
        %v2766 = vmax.f32 %v2718, 0.0
        %v2767 = vmax.f32 %v2719, 0.0
        %v2768 = vmax.f32 %v2720, 0.0
        %v2769 = vmax.f32 %v2721, 0.0
        %v2770 = vmax.f32 %v2722, 0.0
        %v2771 = vmax.f32 %v2723, 0.0
        %v2772 = vmax.f32 %v2724, 0.0
        %v2773 = vmax.f32 %v2725, 0.0
        %v2774 = vmax.f32 %v2726, 0.0
        %v2775 = vmax.f32 %v2727, 0.0
        %v2776 = vmax.f32 %v2728, 0.0
        %v2777 = vmax.f32 %v2729, 0.0
        %v2778 = vmax.f32 %v2730, 0.0
        %v2779 = vmax.f32 %v2731, 0.0
        %v2780 = vmax.f32 %v2732, 0.0
        %v2781 = vpack.c.bf16 %v2734, %v2733
        %v2782 = vpack.c.bf16 %v2736, %v2735
        %v2783 = vpack.c.bf16 %v2738, %v2737
        %v2784 = vpack.c.bf16 %v2740, %v2739
        %v2785 = vpack.c.bf16 %v2742, %v2741
        %v2786 = vpack.c.bf16 %v2744, %v2743
        %v2787 = vpack.c.bf16 %v2746, %v2745
        %v2788 = vpack.c.bf16 %v2748, %v2747
        %v2789 = vpack.c.bf16 %v2750, %v2749
        %v2790 = vpack.c.bf16 %v2752, %v2751
        %v2791 = vpack.c.bf16 %v2754, %v2753
        %v2792 = vpack.c.bf16 %v2756, %v2755
        %v2793 = vpack.c.bf16 %v2758, %v2757
        %v2794 = vpack.c.bf16 %v2760, %v2759
        %v2795 = vpack.c.bf16 %v2762, %v2761
        %v2796 = vpack.c.bf16 %v2764, %v2763
        %v2797 = vpack.c.bf16 %v2766, %v2765
        %v2798 = vpack.c.bf16 %v2768, %v2767
        %v2799 = vpack.c.bf16 %v2770, %v2769
        %v2800 = vpack.c.bf16 %v2772, %v2771
        %v2801 = vpack.c.bf16 %v2774, %v2773
        %v2802 = vpack.c.bf16 %v2776, %v2775
        %v2803 = vpack.c.bf16 %v2778, %v2777
        %v2804 = vpack.c.bf16 %v2780, %v2779
        %s2805 = scalar_lea.vmem %s2, 320
        %v2806 = vld [vmem:[%s2805] sm:$0xf]
        %v2807 = vld [vmem:[%s2805 + $0x4] sm:$0xf]
        %v2808 = vld [vmem:[%s2805 + $0x8] sm:$0xf]
        %v2809 = vld [vmem:[%s2805 + $0xc] sm:$0xf]
        %v2810 = vld [vmem:[%s2805 + $0x10] sm:$0xf]
        %v2811 = vld [vmem:[%s2805 + $0x14] sm:$0xf]
        %v2812 = vld [vmem:[%s2805 + $0x18] sm:$0xf]
        %v2813 = vld [vmem:[%s2805 + $0x1c] sm:$0xf]
        %v2814 = vld [vmem:[%s2805 + $0x20] sm:$0xf]
        %v2815 = vld [vmem:[%s2805 + $0x24] sm:$0xf]
        %v2816 = vld [vmem:[%s2805 + $0x28] sm:$0xf]
        %v2817 = vld [vmem:[%s2805 + $0x2c] sm:$0xf]
        %v2818 = vld [vmem:[%s2805 + $0x30] sm:$0xf]
        %v2819 = vld [vmem:[%s2805 + $0x34] sm:$0xf]
        %v2820 = vld [vmem:[%s2805 + $0x38] sm:$0xf]
        %v2821 = vld [vmem:[%s2805 + $0x3c] sm:$0xf]
        %s2822 = scalar_lea.vmem %s3, 6
        %v2823 = vld [vmem:[%s2822] sm:$0x1]
        %v2825 = vlaneseq
        %v2826 = vshrl.u32 %v2825, 7
        %v2827 = vsub.s32 0, %v2826
        %v2828 = vrot.slane %v2823, %v2827
        %v2846 = vunpack.c.l.b16 %v2806
        %v2847 = vunpack.c.l.b16 %v2807
        %v2848 = vunpack.c.l.b16 %v2808
        %v2849 = vunpack.c.l.b16 %v2809
        %v2850 = vunpack.c.l.b16 %v2810
        %v2851 = vunpack.c.l.b16 %v2811
        %v2852 = vunpack.c.l.b16 %v2812
        %v2853 = vunpack.c.l.b16 %v2813
        %v2854 = vunpack.c.l.b16 %v2814
        %v2855 = vunpack.c.l.b16 %v2815
        %v2856 = vunpack.c.l.b16 %v2816
        %v2857 = vunpack.c.l.b16 %v2817
        %v2858 = vunpack.c.l.b16 %v2818
        %v2859 = vunpack.c.l.b16 %v2819
        %v2860 = vunpack.c.l.b16 %v2820
        %v2861 = vunpack.c.l.b16 %v2821
        %v2862 = vpack.c.b16 %v2847, %v2846
        %v2863 = vpack.c.b16 %v2849, %v2848
        %v2864 = vpack.c.b16 %v2851, %v2850
        %v2865 = vpack.c.b16 %v2853, %v2852
        %v2866 = vpack.c.b16 %v2855, %v2854
        %v2867 = vpack.c.b16 %v2857, %v2856
        %v2868 = vpack.c.b16 %v2859, %v2858
        %v2869 = vpack.c.b16 %v2861, %v2860
        %2878 = vmatprep.subr.bf16.mxu0 0
        %2879 = vmatpush1.bf16.msra.mxu0 %v2862
        %2880 = vmatprep.subr.bf16.mxu0 0
        %2881 = vmatpush1.bf16.msra.mxu0 %v2863
        %2882 = vmatprep.subr.bf16.mxu0 0
        %2883 = vmatpush1.bf16.msra.mxu0 %v2864
        %2884 = vmatprep.subr.bf16.mxu0 0
        %2885 = vmatpush1.bf16.msra.mxu0 %v2865
        %2886 = vmatprep.subr.bf16.mxu0 0
        %2887 = vmatpush1.bf16.msra.mxu0 %v2866
        %2888 = vmatprep.subr.bf16.mxu0 0
        %2889 = vmatpush1.bf16.msra.mxu0 %v2867
        %2890 = vmatprep.subr.bf16.mxu0 0
        %2891 = vmatpush1.bf16.msra.mxu0 %v2868
        %2892 = vmatprep.subr.bf16.mxu0 0
        %2893 = vmatpush1.bf16.msra.mxu0 %v2869
        %2894 = vmatprep.subr.bf16.mxu0 0
        %2895 = vmatpush1.bf16.msra.mxu0 0
        %2896 = vmatprep.subr.bf16.mxu0 0
        %2897 = vmatpush1.bf16.msra.mxu0 0
        %2898 = vmatprep.subr.bf16.mxu0 0
        %2899 = vmatpush1.bf16.msra.mxu0 0
        %2900 = vmatprep.subr.bf16.mxu0 0
        %2901 = vmatpush1.bf16.msra.mxu0 0
        %2902 = vmatprep.subr.bf16.mxu0 0
        %2903 = vmatpush1.bf16.msra.mxu0 0
        %2904 = vmatprep.subr.bf16.mxu0 0
        %2905 = vmatpush1.bf16.msra.mxu0 0
        %2906 = vmatprep.subr.bf16.mxu0 0
        %2907 = vmatpush1.bf16.msra.mxu0 0
        %2908 = vmatprep.subr.bf16.mxu0 0
        %2909 = vmatpush1.bf16.msra.mxu0 0
        %2910 = vmatprep.mubr.bf16.mxu0 0
        %2911 = vmatmul.mubr.bf16.gmra.mrb[0].mxu0 %v2781
        %v2912 = vpop.f32.mrb[0].mxu0
        %v2913 = vadd.f32 %v2828, %v2912
        %v2914 = vpop.f32.mrb[0].mxu0
        %v2915 = vpop.f32.mrb[0].mxu0
        %v2916 = vadd.f32 %v2828, %v2915
        %v2917 = vpop.f32.mrb[0].mxu0
        %2918 = vmatprep.mubr.bf16.mxu0 0
        %2919 = vmatmul.mubr.bf16.gmra.mrb[0].mxu0 %v2782
        %v2920 = vpop.f32.mrb[0].mxu0
        %v2921 = vadd.f32 %v2828, %v2920
        %v2922 = vpop.f32.mrb[0].mxu0
        %v2923 = vpop.f32.mrb[0].mxu0
        %v2924 = vadd.f32 %v2828, %v2923
        %v2925 = vpop.f32.mrb[0].mxu0
        %2926 = vmatprep.mubr.bf16.mxu0 0
        %2927 = vmatmul.mubr.bf16.gmra.mrb[0].mxu0 %v2783
        %v2928 = vpop.f32.mrb[0].mxu0
        %v2929 = vadd.f32 %v2828, %v2928
        %v2930 = vpop.f32.mrb[0].mxu0
        %v2931 = vpop.f32.mrb[0].mxu0
        %v2932 = vadd.f32 %v2828, %v2931
        %v2933 = vpop.f32.mrb[0].mxu0
        %2934 = vmatprep.mubr.bf16.mxu0 0
        %2935 = vmatmul.mubr.bf16.gmra.mrb[0].mxu0 %v2784
        %v2936 = vpop.f32.mrb[0].mxu0
        %v2937 = vadd.f32 %v2828, %v2936
        %v2938 = vpop.f32.mrb[0].mxu0
        %v2939 = vpop.f32.mrb[0].mxu0
        %v2940 = vadd.f32 %v2828, %v2939
        %v2941 = vpop.f32.mrb[0].mxu0
        %2942 = vmatprep.mubr.bf16.mxu0 0
        %2943 = vmatmul.mubr.bf16.gmra.mrb[0].mxu0 %v2785
        %v2944 = vpop.f32.mrb[0].mxu0
        %v2945 = vadd.f32 %v2828, %v2944
        %v2946 = vpop.f32.mrb[0].mxu0
        %v2947 = vpop.f32.mrb[0].mxu0
        %v2948 = vadd.f32 %v2828, %v2947
        %v2949 = vpop.f32.mrb[0].mxu0
        %2950 = vmatprep.mubr.bf16.mxu0 0
        %2951 = vmatmul.mubr.bf16.gmra.mrb[0].mxu0 %v2786
        %v2952 = vpop.f32.mrb[0].mxu0
        %v2953 = vadd.f32 %v2828, %v2952
        %v2954 = vpop.f32.mrb[0].mxu0
        %v2955 = vpop.f32.mrb[0].mxu0
        %v2956 = vadd.f32 %v2828, %v2955
        %v2957 = vpop.f32.mrb[0].mxu0
        %2958 = vmatprep.mubr.bf16.mxu0 0
        %2959 = vmatmul.mubr.bf16.gmra.mrb[0].mxu0 %v2787
        %v2960 = vpop.f32.mrb[0].mxu0
        %v2961 = vadd.f32 %v2828, %v2960
        %v2962 = vpop.f32.mrb[0].mxu0
        %v2963 = vpop.f32.mrb[0].mxu0
        %v2964 = vadd.f32 %v2828, %v2963
        %v2965 = vpop.f32.mrb[0].mxu0
        %2966 = vmatprep.mubr.bf16.mxu0 0
        %2967 = vmatmul.mubr.bf16.gmra.mrb[0].mxu0 %v2788
        %v2968 = vpop.f32.mrb[0].mxu0
        %v2969 = vadd.f32 %v2828, %v2968
        %v2970 = vpop.f32.mrb[0].mxu0
        %v2971 = vpop.f32.mrb[0].mxu0
        %v2972 = vadd.f32 %v2828, %v2971
        %v2973 = vpop.f32.mrb[0].mxu0
        %2974 = vmatprep.mubr.bf16.mxu0 0
        %2975 = vmatmul.mubr.bf16.gmra.mrb[0].mxu0 %v2789
        %v2976 = vpop.f32.mrb[0].mxu0
        %v2977 = vadd.f32 %v2828, %v2976
        %v2978 = vpop.f32.mrb[0].mxu0
        %v2979 = vpop.f32.mrb[0].mxu0
        %v2980 = vadd.f32 %v2828, %v2979
        %v2981 = vpop.f32.mrb[0].mxu0
        %2982 = vmatprep.mubr.bf16.mxu0 0
        %2983 = vmatmul.mubr.bf16.gmra.mrb[0].mxu0 %v2790
        %v2984 = vpop.f32.mrb[0].mxu0
        %v2985 = vadd.f32 %v2828, %v2984
        %v2986 = vpop.f32.mrb[0].mxu0
        %v2987 = vpop.f32.mrb[0].mxu0
        %v2988 = vadd.f32 %v2828, %v2987
        %v2989 = vpop.f32.mrb[0].mxu0
        %2990 = vmatprep.mubr.bf16.mxu0 0
        %2991 = vmatmul.mubr.bf16.gmra.mrb[0].mxu0 %v2791
        %v2992 = vpop.f32.mrb[0].mxu0
        %v2993 = vadd.f32 %v2828, %v2992
        %v2994 = vpop.f32.mrb[0].mxu0
        %v2995 = vpop.f32.mrb[0].mxu0
        %v2996 = vadd.f32 %v2828, %v2995
        %v2997 = vpop.f32.mrb[0].mxu0
        %2998 = vmatprep.mubr.bf16.mxu0 0
        %2999 = vmatmul.mubr.bf16.gmra.mrb[0].mxu0 %v2792
        %v3000 = vpop.f32.mrb[0].mxu0
        %v3001 = vadd.f32 %v2828, %v3000
        %v3002 = vpop.f32.mrb[0].mxu0
        %v3003 = vpop.f32.mrb[0].mxu0
        %v3004 = vadd.f32 %v2828, %v3003
        %v3005 = vpop.f32.mrb[0].mxu0
        %3006 = vmatprep.mubr.bf16.mxu0 0
        %3007 = vmatmul.mubr.bf16.gmra.mrb[0].mxu0 %v2793
        %v3008 = vpop.f32.mrb[0].mxu0
        %v3009 = vadd.f32 %v2828, %v3008
        %v3010 = vpop.f32.mrb[0].mxu0
        %v3011 = vpop.f32.mrb[0].mxu0
        %v3012 = vadd.f32 %v2828, %v3011
        %v3013 = vpop.f32.mrb[0].mxu0
        %3014 = vmatprep.mubr.bf16.mxu0 0
        %3015 = vmatmul.mubr.bf16.gmra.mrb[0].mxu0 %v2794
        %v3016 = vpop.f32.mrb[0].mxu0
        %v3017 = vadd.f32 %v2828, %v3016
        %v3018 = vpop.f32.mrb[0].mxu0
        %v3019 = vpop.f32.mrb[0].mxu0
        %v3020 = vadd.f32 %v2828, %v3019
        %v3021 = vpop.f32.mrb[0].mxu0
        %3022 = vmatprep.mubr.bf16.mxu0 0
        %3023 = vmatmul.mubr.bf16.gmra.mrb[0].mxu0 %v2795
        %v3024 = vpop.f32.mrb[0].mxu0
        %v3025 = vadd.f32 %v2828, %v3024
        %v3026 = vpop.f32.mrb[0].mxu0
        %v3027 = vpop.f32.mrb[0].mxu0
        %v3028 = vadd.f32 %v2828, %v3027
        %v3029 = vpop.f32.mrb[0].mxu0
        %3030 = vmatprep.mubr.bf16.mxu0 0
        %3031 = vmatmul.mubr.bf16.gmra.mrb[0].mxu0 %v2796
        %v3032 = vpop.f32.mrb[0].mxu0
        %v3033 = vadd.f32 %v2828, %v3032
        %v3034 = vpop.f32.mrb[0].mxu0
        %v3035 = vpop.f32.mrb[0].mxu0
        %v3036 = vadd.f32 %v2828, %v3035
        %v3037 = vpop.f32.mrb[0].mxu0
        %3038 = vmatprep.mubr.bf16.mxu0 0
        %3039 = vmatmul.mubr.bf16.gmra.mrb[0].mxu0 %v2797
        %v3040 = vpop.f32.mrb[0].mxu0
        %v3041 = vadd.f32 %v2828, %v3040
        %v3042 = vpop.f32.mrb[0].mxu0
        %v3043 = vpop.f32.mrb[0].mxu0
        %v3044 = vadd.f32 %v2828, %v3043
        %v3045 = vpop.f32.mrb[0].mxu0
        %3046 = vmatprep.mubr.bf16.mxu0 0
        %3047 = vmatmul.mubr.bf16.gmra.mrb[0].mxu0 %v2798
        %v3048 = vpop.f32.mrb[0].mxu0
        %v3049 = vadd.f32 %v2828, %v3048
        %v3050 = vpop.f32.mrb[0].mxu0
        %v3051 = vpop.f32.mrb[0].mxu0
        %v3052 = vadd.f32 %v2828, %v3051
        %v3053 = vpop.f32.mrb[0].mxu0
        %3054 = vmatprep.mubr.bf16.mxu0 0
        %3055 = vmatmul.mubr.bf16.gmra.mrb[0].mxu0 %v2799
        %v3056 = vpop.f32.mrb[0].mxu0
        %v3057 = vadd.f32 %v2828, %v3056
        %v3058 = vpop.f32.mrb[0].mxu0
        %v3059 = vpop.f32.mrb[0].mxu0
        %v3060 = vadd.f32 %v2828, %v3059
        %v3061 = vpop.f32.mrb[0].mxu0
        %3062 = vmatprep.mubr.bf16.mxu0 0
        %3063 = vmatmul.mubr.bf16.gmra.mrb[0].mxu0 %v2800
        %v3064 = vpop.f32.mrb[0].mxu0
        %v3065 = vadd.f32 %v2828, %v3064
        %v3066 = vpop.f32.mrb[0].mxu0
        %v3067 = vpop.f32.mrb[0].mxu0
        %v3068 = vadd.f32 %v2828, %v3067
        %v3069 = vpop.f32.mrb[0].mxu0
        %3070 = vmatprep.mubr.bf16.mxu0 0
        %3071 = vmatmul.mubr.bf16.gmra.mrb[0].mxu0 %v2801
        %v3072 = vpop.f32.mrb[0].mxu0
        %v3073 = vadd.f32 %v2828, %v3072
        %v3074 = vpop.f32.mrb[0].mxu0
        %v3075 = vpop.f32.mrb[0].mxu0
        %v3076 = vadd.f32 %v2828, %v3075
        %v3077 = vpop.f32.mrb[0].mxu0
        %3078 = vmatprep.mubr.bf16.mxu0 0
        %3079 = vmatmul.mubr.bf16.gmra.mrb[0].mxu0 %v2802
        %v3080 = vpop.f32.mrb[0].mxu0
        %v3081 = vadd.f32 %v2828, %v3080
        %v3082 = vpop.f32.mrb[0].mxu0
        %v3083 = vpop.f32.mrb[0].mxu0
        %v3084 = vadd.f32 %v2828, %v3083
        %v3085 = vpop.f32.mrb[0].mxu0
        %3086 = vmatprep.mubr.bf16.mxu0 0
        %3087 = vmatmul.mubr.bf16.gmra.mrb[0].mxu0 %v2803
        %v3088 = vpop.f32.mrb[0].mxu0
        %v3089 = vadd.f32 %v2828, %v3088
        %v3090 = vpop.f32.mrb[0].mxu0
        %v3091 = vpop.f32.mrb[0].mxu0
        %v3092 = vadd.f32 %v2828, %v3091
        %v3093 = vpop.f32.mrb[0].mxu0
        %3094 = vmatprep.mubr.bf16.mxu0 0
        %3095 = vmatmul.mubr.bf16.gmra.mrb[0].mxu0 %v2804
        %v3096 = vpop.f32.mrb[0].mxu0
        %v3097 = vadd.f32 %v2828, %v3096
        %v3098 = vpop.f32.mrb[0].mxu0
        %v3099 = vpop.f32.mrb[0].mxu0
        %v3100 = vadd.f32 %v2828, %v3099
        %v3101 = vpop.f32.mrb[0].mxu0
        %3102 = vdwg.mxu0
        %v3103 = vmax.f32 %v2913, 0.0
        %v3104 = vmax.f32 %v2916, 0.0
        %v3105 = vmax.f32 %v2921, 0.0
        %v3106 = vmax.f32 %v2924, 0.0
        %v3107 = vmax.f32 %v2929, 0.0
        %v3108 = vmax.f32 %v2932, 0.0
        %v3109 = vmax.f32 %v2937, 0.0
        %v3110 = vmax.f32 %v2940, 0.0
        %v3111 = vmax.f32 %v2945, 0.0
        %v3112 = vmax.f32 %v2948, 0.0
        %v3113 = vmax.f32 %v2953, 0.0
        %v3114 = vmax.f32 %v2956, 0.0
        %v3115 = vmax.f32 %v2961, 0.0
        %v3116 = vmax.f32 %v2964, 0.0
        %v3117 = vmax.f32 %v2969, 0.0
        %v3118 = vmax.f32 %v2972, 0.0
        %v3119 = vmax.f32 %v2977, 0.0
        %v3120 = vmax.f32 %v2980, 0.0
        %v3121 = vmax.f32 %v2985, 0.0
        %v3122 = vmax.f32 %v2988, 0.0
        %v3123 = vmax.f32 %v2993, 0.0
        %v3124 = vmax.f32 %v2996, 0.0
        %v3125 = vmax.f32 %v3001, 0.0
        %v3126 = vmax.f32 %v3004, 0.0
        %v3127 = vmax.f32 %v3009, 0.0
        %v3128 = vmax.f32 %v3012, 0.0
        %v3129 = vmax.f32 %v3017, 0.0
        %v3130 = vmax.f32 %v3020, 0.0
        %v3131 = vmax.f32 %v3025, 0.0
        %v3132 = vmax.f32 %v3028, 0.0
        %v3133 = vmax.f32 %v3033, 0.0
        %v3134 = vmax.f32 %v3036, 0.0
        %v3135 = vmax.f32 %v3041, 0.0
        %v3136 = vmax.f32 %v3044, 0.0
        %v3137 = vmax.f32 %v3049, 0.0
        %v3138 = vmax.f32 %v3052, 0.0
        %v3139 = vmax.f32 %v3057, 0.0
        %v3140 = vmax.f32 %v3060, 0.0
        %v3141 = vmax.f32 %v3065, 0.0
        %v3142 = vmax.f32 %v3068, 0.0
        %v3143 = vmax.f32 %v3073, 0.0
        %v3144 = vmax.f32 %v3076, 0.0
        %v3145 = vmax.f32 %v3081, 0.0
        %v3146 = vmax.f32 %v3084, 0.0
        %v3147 = vmax.f32 %v3089, 0.0
        %v3148 = vmax.f32 %v3092, 0.0
        %v3149 = vmax.f32 %v3097, 0.0
        %v3150 = vmax.f32 %v3100, 0.0
        %v3151 = vpack.c.bf16 %v3104, %v3103
        %v3152 = vpack.c.bf16 %v3106, %v3105
        %v3153 = vpack.c.bf16 %v3108, %v3107
        %v3154 = vpack.c.bf16 %v3110, %v3109
        %v3155 = vpack.c.bf16 %v3112, %v3111
        %v3156 = vpack.c.bf16 %v3114, %v3113
        %v3157 = vpack.c.bf16 %v3116, %v3115
        %v3158 = vpack.c.bf16 %v3118, %v3117
        %v3159 = vpack.c.bf16 %v3120, %v3119
        %v3160 = vpack.c.bf16 %v3122, %v3121
        %v3161 = vpack.c.bf16 %v3124, %v3123
        %v3162 = vpack.c.bf16 %v3126, %v3125
        %v3163 = vpack.c.bf16 %v3128, %v3127
        %v3164 = vpack.c.bf16 %v3130, %v3129
        %v3165 = vpack.c.bf16 %v3132, %v3131
        %v3166 = vpack.c.bf16 %v3134, %v3133
        %v3167 = vpack.c.bf16 %v3136, %v3135
        %v3168 = vpack.c.bf16 %v3138, %v3137
        %v3169 = vpack.c.bf16 %v3140, %v3139
        %v3170 = vpack.c.bf16 %v3142, %v3141
        %v3171 = vpack.c.bf16 %v3144, %v3143
        %v3172 = vpack.c.bf16 %v3146, %v3145
        %v3173 = vpack.c.bf16 %v3148, %v3147
        %v3174 = vpack.c.bf16 %v3150, %v3149
        %s3175 = scalar_lea.vmem %s2, 384
        %v3176 = vld [vmem:[%s3175] sm:$0xf]
        %v3177 = vld [vmem:[%s3175 + $0x4] sm:$0xf]
        %v3178 = vld [vmem:[%s3175 + $0x8] sm:$0xf]
        %v3179 = vld [vmem:[%s3175 + $0xc] sm:$0xf]
        %v3180 = vld [vmem:[%s3175 + $0x10] sm:$0xf]
        %v3181 = vld [vmem:[%s3175 + $0x14] sm:$0xf]
        %v3182 = vld [vmem:[%s3175 + $0x18] sm:$0xf]
        %v3183 = vld [vmem:[%s3175 + $0x1c] sm:$0xf]
        %v3184 = vld [vmem:[%s3175 + $0x20] sm:$0xf]
        %v3185 = vld [vmem:[%s3175 + $0x24] sm:$0xf]
        %v3186 = vld [vmem:[%s3175 + $0x28] sm:$0xf]
        %v3187 = vld [vmem:[%s3175 + $0x2c] sm:$0xf]
        %v3188 = vld [vmem:[%s3175 + $0x30] sm:$0xf]
        %v3189 = vld [vmem:[%s3175 + $0x34] sm:$0xf]
        %v3190 = vld [vmem:[%s3175 + $0x38] sm:$0xf]
        %v3191 = vld [vmem:[%s3175 + $0x3c] sm:$0xf]
        %s3192 = scalar_lea.vmem %s3, 7
        %v3193 = vld [vmem:[%s3192] sm:$0x1]
        %v3195 = vlaneseq
        %v3196 = vshrl.u32 %v3195, 7
        %v3197 = vsub.s32 0, %v3196
        %v3198 = vrot.slane %v3193, %v3197
        %v3216 = vunpack.c.l.b16 %v3176
        %v3217 = vunpack.c.l.b16 %v3177
        %v3218 = vunpack.c.l.b16 %v3178
        %v3219 = vunpack.c.l.b16 %v3179
        %v3220 = vunpack.c.l.b16 %v3180
        %v3221 = vunpack.c.l.b16 %v3181
        %v3222 = vunpack.c.l.b16 %v3182
        %v3223 = vunpack.c.l.b16 %v3183
        %v3224 = vunpack.c.l.b16 %v3184
        %v3225 = vunpack.c.l.b16 %v3185
        %v3226 = vunpack.c.l.b16 %v3186
        %v3227 = vunpack.c.l.b16 %v3187
        %v3228 = vunpack.c.l.b16 %v3188
        %v3229 = vunpack.c.l.b16 %v3189
        %v3230 = vunpack.c.l.b16 %v3190
        %v3231 = vunpack.c.l.b16 %v3191
        %v3232 = vpack.c.b16 %v3217, %v3216
        %v3233 = vpack.c.b16 %v3219, %v3218
        %v3234 = vpack.c.b16 %v3221, %v3220
        %v3235 = vpack.c.b16 %v3223, %v3222
        %v3236 = vpack.c.b16 %v3225, %v3224
        %v3237 = vpack.c.b16 %v3227, %v3226
        %v3238 = vpack.c.b16 %v3229, %v3228
        %v3239 = vpack.c.b16 %v3231, %v3230
        %3248 = vmatprep.subr.bf16.mxu0 0
        %3249 = vmatpush1.bf16.msra.mxu0 %v3232
        %3250 = vmatprep.subr.bf16.mxu0 0
        %3251 = vmatpush1.bf16.msra.mxu0 %v3233
        %3252 = vmatprep.subr.bf16.mxu0 0
        %3253 = vmatpush1.bf16.msra.mxu0 %v3234
        %3254 = vmatprep.subr.bf16.mxu0 0
        %3255 = vmatpush1.bf16.msra.mxu0 %v3235
        %3256 = vmatprep.subr.bf16.mxu0 0
        %3257 = vmatpush1.bf16.msra.mxu0 %v3236
        %3258 = vmatprep.subr.bf16.mxu0 0
        %3259 = vmatpush1.bf16.msra.mxu0 %v3237
        %3260 = vmatprep.subr.bf16.mxu0 0
        %3261 = vmatpush1.bf16.msra.mxu0 %v3238
        %3262 = vmatprep.subr.bf16.mxu0 0
        %3263 = vmatpush1.bf16.msra.mxu0 %v3239
        %3264 = vmatprep.subr.bf16.mxu0 0
        %3265 = vmatpush1.bf16.msra.mxu0 0
        %3266 = vmatprep.subr.bf16.mxu0 0
        %3267 = vmatpush1.bf16.msra.mxu0 0
        %3268 = vmatprep.subr.bf16.mxu0 0
        %3269 = vmatpush1.bf16.msra.mxu0 0
        %3270 = vmatprep.subr.bf16.mxu0 0
        %3271 = vmatpush1.bf16.msra.mxu0 0
        %3272 = vmatprep.subr.bf16.mxu0 0
        %3273 = vmatpush1.bf16.msra.mxu0 0
        %3274 = vmatprep.subr.bf16.mxu0 0
        %3275 = vmatpush1.bf16.msra.mxu0 0
        %3276 = vmatprep.subr.bf16.mxu0 0
        %3277 = vmatpush1.bf16.msra.mxu0 0
        %3278 = vmatprep.subr.bf16.mxu0 0
        %3279 = vmatpush1.bf16.msra.mxu0 0
        %3280 = vmatprep.mubr.bf16.mxu0 0
        %3281 = vmatmul.mubr.bf16.gmra.mrb[0].mxu0 %v3151
        %v3282 = vpop.f32.mrb[0].mxu0
        %v3283 = vadd.f32 %v3198, %v3282
        %v3284 = vpop.f32.mrb[0].mxu0
        %v3285 = vpop.f32.mrb[0].mxu0
        %v3286 = vadd.f32 %v3198, %v3285
        %v3287 = vpop.f32.mrb[0].mxu0
        %3288 = vmatprep.mubr.bf16.mxu0 0
        %3289 = vmatmul.mubr.bf16.gmra.mrb[0].mxu0 %v3152
        %v3290 = vpop.f32.mrb[0].mxu0
        %v3291 = vadd.f32 %v3198, %v3290
        %v3292 = vpop.f32.mrb[0].mxu0
        %v3293 = vpop.f32.mrb[0].mxu0
        %v3294 = vadd.f32 %v3198, %v3293
        %v3295 = vpop.f32.mrb[0].mxu0
        %3296 = vmatprep.mubr.bf16.mxu0 0
        %3297 = vmatmul.mubr.bf16.gmra.mrb[0].mxu0 %v3153
        %v3298 = vpop.f32.mrb[0].mxu0
        %v3299 = vadd.f32 %v3198, %v3298
        %v3300 = vpop.f32.mrb[0].mxu0
        %v3301 = vpop.f32.mrb[0].mxu0
        %v3302 = vadd.f32 %v3198, %v3301
        %v3303 = vpop.f32.mrb[0].mxu0
        %3304 = vmatprep.mubr.bf16.mxu0 0
        %3305 = vmatmul.mubr.bf16.gmra.mrb[0].mxu0 %v3154
        %v3306 = vpop.f32.mrb[0].mxu0
        %v3307 = vadd.f32 %v3198, %v3306
        %v3308 = vpop.f32.mrb[0].mxu0
        %v3309 = vpop.f32.mrb[0].mxu0
        %v3310 = vadd.f32 %v3198, %v3309
        %v3311 = vpop.f32.mrb[0].mxu0
        %3312 = vmatprep.mubr.bf16.mxu0 0
        %3313 = vmatmul.mubr.bf16.gmra.mrb[0].mxu0 %v3155
        %v3314 = vpop.f32.mrb[0].mxu0
        %v3315 = vadd.f32 %v3198, %v3314
        %v3316 = vpop.f32.mrb[0].mxu0
        %v3317 = vpop.f32.mrb[0].mxu0
        %v3318 = vadd.f32 %v3198, %v3317
        %v3319 = vpop.f32.mrb[0].mxu0
        %3320 = vmatprep.mubr.bf16.mxu0 0
        %3321 = vmatmul.mubr.bf16.gmra.mrb[0].mxu0 %v3156
        %v3322 = vpop.f32.mrb[0].mxu0
        %v3323 = vadd.f32 %v3198, %v3322
        %v3324 = vpop.f32.mrb[0].mxu0
        %v3325 = vpop.f32.mrb[0].mxu0
        %v3326 = vadd.f32 %v3198, %v3325
        %v3327 = vpop.f32.mrb[0].mxu0
        %3328 = vmatprep.mubr.bf16.mxu0 0
        %3329 = vmatmul.mubr.bf16.gmra.mrb[0].mxu0 %v3157
        %v3330 = vpop.f32.mrb[0].mxu0
        %v3331 = vadd.f32 %v3198, %v3330
        %v3332 = vpop.f32.mrb[0].mxu0
        %v3333 = vpop.f32.mrb[0].mxu0
        %v3334 = vadd.f32 %v3198, %v3333
        %v3335 = vpop.f32.mrb[0].mxu0
        %3336 = vmatprep.mubr.bf16.mxu0 0
        %3337 = vmatmul.mubr.bf16.gmra.mrb[0].mxu0 %v3158
        %v3338 = vpop.f32.mrb[0].mxu0
        %v3339 = vadd.f32 %v3198, %v3338
        %v3340 = vpop.f32.mrb[0].mxu0
        %v3341 = vpop.f32.mrb[0].mxu0
        %v3342 = vadd.f32 %v3198, %v3341
        %v3343 = vpop.f32.mrb[0].mxu0
        %3344 = vmatprep.mubr.bf16.mxu0 0
        %3345 = vmatmul.mubr.bf16.gmra.mrb[0].mxu0 %v3159
        %v3346 = vpop.f32.mrb[0].mxu0
        %v3347 = vadd.f32 %v3198, %v3346
        %v3348 = vpop.f32.mrb[0].mxu0
        %v3349 = vpop.f32.mrb[0].mxu0
        %v3350 = vadd.f32 %v3198, %v3349
        %v3351 = vpop.f32.mrb[0].mxu0
        %3352 = vmatprep.mubr.bf16.mxu0 0
        %3353 = vmatmul.mubr.bf16.gmra.mrb[0].mxu0 %v3160
        %v3354 = vpop.f32.mrb[0].mxu0
        %v3355 = vadd.f32 %v3198, %v3354
        %v3356 = vpop.f32.mrb[0].mxu0
        %v3357 = vpop.f32.mrb[0].mxu0
        %v3358 = vadd.f32 %v3198, %v3357
        %v3359 = vpop.f32.mrb[0].mxu0
        %3360 = vmatprep.mubr.bf16.mxu0 0
        %3361 = vmatmul.mubr.bf16.gmra.mrb[0].mxu0 %v3161
        %v3362 = vpop.f32.mrb[0].mxu0
        %v3363 = vadd.f32 %v3198, %v3362
        %v3364 = vpop.f32.mrb[0].mxu0
        %v3365 = vpop.f32.mrb[0].mxu0
        %v3366 = vadd.f32 %v3198, %v3365
        %v3367 = vpop.f32.mrb[0].mxu0
        %3368 = vmatprep.mubr.bf16.mxu0 0
        %3369 = vmatmul.mubr.bf16.gmra.mrb[0].mxu0 %v3162
        %v3370 = vpop.f32.mrb[0].mxu0
        %v3371 = vadd.f32 %v3198, %v3370
        %v3372 = vpop.f32.mrb[0].mxu0
        %v3373 = vpop.f32.mrb[0].mxu0
        %v3374 = vadd.f32 %v3198, %v3373
        %v3375 = vpop.f32.mrb[0].mxu0
        %3376 = vmatprep.mubr.bf16.mxu0 0
        %3377 = vmatmul.mubr.bf16.gmra.mrb[0].mxu0 %v3163
        %v3378 = vpop.f32.mrb[0].mxu0
        %v3379 = vadd.f32 %v3198, %v3378
        %v3380 = vpop.f32.mrb[0].mxu0
        %v3381 = vpop.f32.mrb[0].mxu0
        %v3382 = vadd.f32 %v3198, %v3381
        %v3383 = vpop.f32.mrb[0].mxu0
        %3384 = vmatprep.mubr.bf16.mxu0 0
        %3385 = vmatmul.mubr.bf16.gmra.mrb[0].mxu0 %v3164
        %v3386 = vpop.f32.mrb[0].mxu0
        %v3387 = vadd.f32 %v3198, %v3386
        %v3388 = vpop.f32.mrb[0].mxu0
        %v3389 = vpop.f32.mrb[0].mxu0
        %v3390 = vadd.f32 %v3198, %v3389
        %v3391 = vpop.f32.mrb[0].mxu0
        %3392 = vmatprep.mubr.bf16.mxu0 0
        %3393 = vmatmul.mubr.bf16.gmra.mrb[0].mxu0 %v3165
        %v3394 = vpop.f32.mrb[0].mxu0
        %v3395 = vadd.f32 %v3198, %v3394
        %v3396 = vpop.f32.mrb[0].mxu0
        %v3397 = vpop.f32.mrb[0].mxu0
        %v3398 = vadd.f32 %v3198, %v3397
        %v3399 = vpop.f32.mrb[0].mxu0
        %3400 = vmatprep.mubr.bf16.mxu0 0
        %3401 = vmatmul.mubr.bf16.gmra.mrb[0].mxu0 %v3166
        %v3402 = vpop.f32.mrb[0].mxu0
        %v3403 = vadd.f32 %v3198, %v3402
        %v3404 = vpop.f32.mrb[0].mxu0
        %v3405 = vpop.f32.mrb[0].mxu0
        %v3406 = vadd.f32 %v3198, %v3405
        %v3407 = vpop.f32.mrb[0].mxu0
        %3408 = vmatprep.mubr.bf16.mxu0 0
        %3409 = vmatmul.mubr.bf16.gmra.mrb[0].mxu0 %v3167
        %v3410 = vpop.f32.mrb[0].mxu0
        %v3411 = vadd.f32 %v3198, %v3410
        %v3412 = vpop.f32.mrb[0].mxu0
        %v3413 = vpop.f32.mrb[0].mxu0
        %v3414 = vadd.f32 %v3198, %v3413
        %v3415 = vpop.f32.mrb[0].mxu0
        %3416 = vmatprep.mubr.bf16.mxu0 0
        %3417 = vmatmul.mubr.bf16.gmra.mrb[0].mxu0 %v3168
        %v3418 = vpop.f32.mrb[0].mxu0
        %v3419 = vadd.f32 %v3198, %v3418
        %v3420 = vpop.f32.mrb[0].mxu0
        %v3421 = vpop.f32.mrb[0].mxu0
        %v3422 = vadd.f32 %v3198, %v3421
        %v3423 = vpop.f32.mrb[0].mxu0
        %3424 = vmatprep.mubr.bf16.mxu0 0
        %3425 = vmatmul.mubr.bf16.gmra.mrb[0].mxu0 %v3169
        %v3426 = vpop.f32.mrb[0].mxu0
        %v3427 = vadd.f32 %v3198, %v3426
        %v3428 = vpop.f32.mrb[0].mxu0
        %v3429 = vpop.f32.mrb[0].mxu0
        %v3430 = vadd.f32 %v3198, %v3429
        %v3431 = vpop.f32.mrb[0].mxu0
        %3432 = vmatprep.mubr.bf16.mxu0 0
        %3433 = vmatmul.mubr.bf16.gmra.mrb[0].mxu0 %v3170
        %v3434 = vpop.f32.mrb[0].mxu0
        %v3435 = vadd.f32 %v3198, %v3434
        %v3436 = vpop.f32.mrb[0].mxu0
        %v3437 = vpop.f32.mrb[0].mxu0
        %v3438 = vadd.f32 %v3198, %v3437
        %v3439 = vpop.f32.mrb[0].mxu0
        %3440 = vmatprep.mubr.bf16.mxu0 0
        %3441 = vmatmul.mubr.bf16.gmra.mrb[0].mxu0 %v3171
        %v3442 = vpop.f32.mrb[0].mxu0
        %v3443 = vadd.f32 %v3198, %v3442
        %v3444 = vpop.f32.mrb[0].mxu0
        %v3445 = vpop.f32.mrb[0].mxu0
        %v3446 = vadd.f32 %v3198, %v3445
        %v3447 = vpop.f32.mrb[0].mxu0
        %3448 = vmatprep.mubr.bf16.mxu0 0
        %3449 = vmatmul.mubr.bf16.gmra.mrb[0].mxu0 %v3172
        %v3450 = vpop.f32.mrb[0].mxu0
        %v3451 = vadd.f32 %v3198, %v3450
        %v3452 = vpop.f32.mrb[0].mxu0
        %v3453 = vpop.f32.mrb[0].mxu0
        %v3454 = vadd.f32 %v3198, %v3453
        %v3455 = vpop.f32.mrb[0].mxu0
        %3456 = vmatprep.mubr.bf16.mxu0 0
        %3457 = vmatmul.mubr.bf16.gmra.mrb[0].mxu0 %v3173
        %v3458 = vpop.f32.mrb[0].mxu0
        %v3459 = vadd.f32 %v3198, %v3458
        %v3460 = vpop.f32.mrb[0].mxu0
        %v3461 = vpop.f32.mrb[0].mxu0
        %v3462 = vadd.f32 %v3198, %v3461
        %v3463 = vpop.f32.mrb[0].mxu0
        %3464 = vmatprep.mubr.bf16.mxu0 0
        %3465 = vmatmul.mubr.bf16.gmra.mrb[0].mxu0 %v3174
        %v3466 = vpop.f32.mrb[0].mxu0
        %v3467 = vadd.f32 %v3198, %v3466
        %v3468 = vpop.f32.mrb[0].mxu0
        %v3469 = vpop.f32.mrb[0].mxu0
        %v3470 = vadd.f32 %v3198, %v3469
        %v3471 = vpop.f32.mrb[0].mxu0
        %3472 = vdwg.mxu0
        %v3473 = vmax.f32 %v3283, 0.0
        %v3474 = vmax.f32 %v3286, 0.0
        %v3475 = vmax.f32 %v3291, 0.0
        %v3476 = vmax.f32 %v3294, 0.0
        %v3477 = vmax.f32 %v3299, 0.0
        %v3478 = vmax.f32 %v3302, 0.0
        %v3479 = vmax.f32 %v3307, 0.0
        %v3480 = vmax.f32 %v3310, 0.0
        %v3481 = vmax.f32 %v3315, 0.0
        %v3482 = vmax.f32 %v3318, 0.0
        %v3483 = vmax.f32 %v3323, 0.0
        %v3484 = vmax.f32 %v3326, 0.0
        %v3485 = vmax.f32 %v3331, 0.0
        %v3486 = vmax.f32 %v3334, 0.0
        %v3487 = vmax.f32 %v3339, 0.0
        %v3488 = vmax.f32 %v3342, 0.0
        %v3489 = vmax.f32 %v3347, 0.0
        %v3490 = vmax.f32 %v3350, 0.0
        %v3491 = vmax.f32 %v3355, 0.0
        %v3492 = vmax.f32 %v3358, 0.0
        %v3493 = vmax.f32 %v3363, 0.0
        %v3494 = vmax.f32 %v3366, 0.0
        %v3495 = vmax.f32 %v3371, 0.0
        %v3496 = vmax.f32 %v3374, 0.0
        %v3497 = vmax.f32 %v3379, 0.0
        %v3498 = vmax.f32 %v3382, 0.0
        %v3499 = vmax.f32 %v3387, 0.0
        %v3500 = vmax.f32 %v3390, 0.0
        %v3501 = vmax.f32 %v3395, 0.0
        %v3502 = vmax.f32 %v3398, 0.0
        %v3503 = vmax.f32 %v3403, 0.0
        %v3504 = vmax.f32 %v3406, 0.0
        %v3505 = vmax.f32 %v3411, 0.0
        %v3506 = vmax.f32 %v3414, 0.0
        %v3507 = vmax.f32 %v3419, 0.0
        %v3508 = vmax.f32 %v3422, 0.0
        %v3509 = vmax.f32 %v3427, 0.0
        %v3510 = vmax.f32 %v3430, 0.0
        %v3511 = vmax.f32 %v3435, 0.0
        %v3512 = vmax.f32 %v3438, 0.0
        %v3513 = vmax.f32 %v3443, 0.0
        %v3514 = vmax.f32 %v3446, 0.0
        %v3515 = vmax.f32 %v3451, 0.0
        %v3516 = vmax.f32 %v3454, 0.0
        %v3517 = vmax.f32 %v3459, 0.0
        %v3518 = vmax.f32 %v3462, 0.0
        %v3519 = vmax.f32 %v3467, 0.0
        %v3520 = vmax.f32 %v3470, 0.0
        %v3521 = vpack.c.bf16 %v3474, %v3473
        %v3522 = vpack.c.bf16 %v3476, %v3475
        %v3523 = vpack.c.bf16 %v3478, %v3477
        %v3524 = vpack.c.bf16 %v3480, %v3479
        %v3525 = vpack.c.bf16 %v3482, %v3481
        %v3526 = vpack.c.bf16 %v3484, %v3483
        %v3527 = vpack.c.bf16 %v3486, %v3485
        %v3528 = vpack.c.bf16 %v3488, %v3487
        %v3529 = vpack.c.bf16 %v3490, %v3489
        %v3530 = vpack.c.bf16 %v3492, %v3491
        %v3531 = vpack.c.bf16 %v3494, %v3493
        %v3532 = vpack.c.bf16 %v3496, %v3495
        %v3533 = vpack.c.bf16 %v3498, %v3497
        %v3534 = vpack.c.bf16 %v3500, %v3499
        %v3535 = vpack.c.bf16 %v3502, %v3501
        %v3536 = vpack.c.bf16 %v3504, %v3503
        %v3537 = vpack.c.bf16 %v3506, %v3505
        %v3538 = vpack.c.bf16 %v3508, %v3507
        %v3539 = vpack.c.bf16 %v3510, %v3509
        %v3540 = vpack.c.bf16 %v3512, %v3511
        %v3541 = vpack.c.bf16 %v3514, %v3513
        %v3542 = vpack.c.bf16 %v3516, %v3515
        %v3543 = vpack.c.bf16 %v3518, %v3517
        %v3544 = vpack.c.bf16 %v3520, %v3519
        %v3545 = vld [vmem:[%s4] sm:$0xf]
        %v3546 = vld [vmem:[%s4 + $0x4] sm:$0xf]
        %v3547 = vld [vmem:[%s4 + $0x8] sm:$0xf]
        %v3548 = vld [vmem:[%s4 + $0xc] sm:$0xf]
        %v3549 = vld [vmem:[%s4 + $0x10] sm:$0xf]
        %v3550 = vld [vmem:[%s4 + $0x14] sm:$0xf]
        %v3551 = vld [vmem:[%s4 + $0x18] sm:$0xf]
        %v3552 = vld [vmem:[%s4 + $0x1c] sm:$0xf]
        %v3553 = vld [vmem:[%s4 + $0x20] sm:$0xf]
        %v3554 = vld [vmem:[%s4 + $0x24] sm:$0xf]
        %v3555 = vld [vmem:[%s4 + $0x28] sm:$0xf]
        %v3556 = vld [vmem:[%s4 + $0x2c] sm:$0xf]
        %v3557 = vld [vmem:[%s4 + $0x30] sm:$0xf]
        %v3558 = vld [vmem:[%s4 + $0x34] sm:$0xf]
        %v3559 = vld [vmem:[%s4 + $0x38] sm:$0xf]
        %v3560 = vld [vmem:[%s4 + $0x3c] sm:$0xf]
        %v3561 = vld [vmem:[#allocation2] sm:$0x1]
        %v3563 = vlaneseq
        %v3564 = vshrl.u32 %v3563, 7
        %v3565 = vsub.s32 0, %v3564
        %v3566 = vrot.slane %v3561, %v3565
        %v3584 = vunpack.c.l.b16 %v3545
        %v3585 = vunpack.c.l.b16 %v3546
        %v3586 = vunpack.c.l.b16 %v3547
        %v3587 = vunpack.c.l.b16 %v3548
        %v3588 = vunpack.c.l.b16 %v3549
        %v3589 = vunpack.c.l.b16 %v3550
        %v3590 = vunpack.c.l.b16 %v3551
        %v3591 = vunpack.c.l.b16 %v3552
        %v3592 = vunpack.c.l.b16 %v3553
        %v3593 = vunpack.c.l.b16 %v3554
        %v3594 = vunpack.c.l.b16 %v3555
        %v3595 = vunpack.c.l.b16 %v3556
        %v3596 = vunpack.c.l.b16 %v3557
        %v3597 = vunpack.c.l.b16 %v3558
        %v3598 = vunpack.c.l.b16 %v3559
        %v3599 = vunpack.c.l.b16 %v3560
        %v3600 = vpack.c.b16 %v3585, %v3584
        %v3601 = vpack.c.b16 %v3587, %v3586
        %v3602 = vpack.c.b16 %v3589, %v3588
        %v3603 = vpack.c.b16 %v3591, %v3590
        %v3604 = vpack.c.b16 %v3593, %v3592
        %v3605 = vpack.c.b16 %v3595, %v3594
        %v3606 = vpack.c.b16 %v3597, %v3596
        %v3607 = vpack.c.b16 %v3599, %v3598
        %3616 = vmatprep.subr.bf16.mxu0 0
        %3617 = vmatpush1.bf16.msra.mxu0 %v3600
        %3618 = vmatprep.subr.bf16.mxu0 0
        %3619 = vmatpush1.bf16.msra.mxu0 %v3601
        %3620 = vmatprep.subr.bf16.mxu0 0
        %3621 = vmatpush1.bf16.msra.mxu0 %v3602
        %3622 = vmatprep.subr.bf16.mxu0 0
        %3623 = vmatpush1.bf16.msra.mxu0 %v3603
        %3624 = vmatprep.subr.bf16.mxu0 0
        %3625 = vmatpush1.bf16.msra.mxu0 %v3604
        %3626 = vmatprep.subr.bf16.mxu0 0
        %3627 = vmatpush1.bf16.msra.mxu0 %v3605
        %3628 = vmatprep.subr.bf16.mxu0 0
        %3629 = vmatpush1.bf16.msra.mxu0 %v3606
        %3630 = vmatprep.subr.bf16.mxu0 0
        %3631 = vmatpush1.bf16.msra.mxu0 %v3607
        %3632 = vmatprep.subr.bf16.mxu0 0
        %3633 = vmatpush1.bf16.msra.mxu0 0
        %3634 = vmatprep.subr.bf16.mxu0 0
        %3635 = vmatpush1.bf16.msra.mxu0 0
        %3636 = vmatprep.subr.bf16.mxu0 0
        %3637 = vmatpush1.bf16.msra.mxu0 0
        %3638 = vmatprep.subr.bf16.mxu0 0
        %3639 = vmatpush1.bf16.msra.mxu0 0
        %3640 = vmatprep.subr.bf16.mxu0 0
        %3641 = vmatpush1.bf16.msra.mxu0 0
        %3642 = vmatprep.subr.bf16.mxu0 0
        %3643 = vmatpush1.bf16.msra.mxu0 0
        %3644 = vmatprep.subr.bf16.mxu0 0
        %3645 = vmatpush1.bf16.msra.mxu0 0
        %3646 = vmatprep.subr.bf16.mxu0 0
        %3647 = vmatpush1.bf16.msra.mxu0 0
        %3648 = vmatprep.mubr.bf16.mxu0 0
        %3649 = vmatmul.mubr.bf16.gmra.mrb[0].mxu0 %v3521
        %v3650 = vpop.f32.mrb[0].mxu0
        %v3651 = vadd.f32 %v3566, %v3650
        %v3652 = vpop.f32.mrb[0].mxu0
        %v3653 = vpop.f32.mrb[0].mxu0
        %v3654 = vadd.f32 %v3566, %v3653
        %v3655 = vpop.f32.mrb[0].mxu0
        %3656 = vmatprep.mubr.bf16.mxu0 0
        %3657 = vmatmul.mubr.bf16.gmra.mrb[0].mxu0 %v3522
        %v3658 = vpop.f32.mrb[0].mxu0
        %v3659 = vadd.f32 %v3566, %v3658
        %v3660 = vpop.f32.mrb[0].mxu0
        %v3661 = vpop.f32.mrb[0].mxu0
        %v3662 = vadd.f32 %v3566, %v3661
        %v3663 = vpop.f32.mrb[0].mxu0
        %3664 = vmatprep.mubr.bf16.mxu0 0
        %3665 = vmatmul.mubr.bf16.gmra.mrb[0].mxu0 %v3523
        %v3666 = vpop.f32.mrb[0].mxu0
        %v3667 = vadd.f32 %v3566, %v3666
        %v3668 = vpop.f32.mrb[0].mxu0
        %v3669 = vpop.f32.mrb[0].mxu0
        %v3670 = vadd.f32 %v3566, %v3669
        %v3671 = vpop.f32.mrb[0].mxu0
        %3672 = vmatprep.mubr.bf16.mxu0 0
        %3673 = vmatmul.mubr.bf16.gmra.mrb[0].mxu0 %v3524
        %v3674 = vpop.f32.mrb[0].mxu0
        %v3675 = vadd.f32 %v3566, %v3674
        %v3676 = vpop.f32.mrb[0].mxu0
        %v3677 = vpop.f32.mrb[0].mxu0
        %v3678 = vadd.f32 %v3566, %v3677
        %v3679 = vpop.f32.mrb[0].mxu0
        %3680 = vmatprep.mubr.bf16.mxu0 0
        %3681 = vmatmul.mubr.bf16.gmra.mrb[0].mxu0 %v3525
        %v3682 = vpop.f32.mrb[0].mxu0
        %v3683 = vadd.f32 %v3566, %v3682
        %v3684 = vpop.f32.mrb[0].mxu0
        %v3685 = vpop.f32.mrb[0].mxu0
        %v3686 = vadd.f32 %v3566, %v3685
        %v3687 = vpop.f32.mrb[0].mxu0
        %3688 = vmatprep.mubr.bf16.mxu0 0
        %3689 = vmatmul.mubr.bf16.gmra.mrb[0].mxu0 %v3526
        %v3690 = vpop.f32.mrb[0].mxu0
        %v3691 = vadd.f32 %v3566, %v3690
        %v3692 = vpop.f32.mrb[0].mxu0
        %v3693 = vpop.f32.mrb[0].mxu0
        %v3694 = vadd.f32 %v3566, %v3693
        %v3695 = vpop.f32.mrb[0].mxu0
        %3696 = vmatprep.mubr.bf16.mxu0 0
        %3697 = vmatmul.mubr.bf16.gmra.mrb[0].mxu0 %v3527
        %v3698 = vpop.f32.mrb[0].mxu0
        %v3699 = vadd.f32 %v3566, %v3698
        %v3700 = vpop.f32.mrb[0].mxu0
        %v3701 = vpop.f32.mrb[0].mxu0
        %v3702 = vadd.f32 %v3566, %v3701
        %v3703 = vpop.f32.mrb[0].mxu0
        %3704 = vmatprep.mubr.bf16.mxu0 0
        %3705 = vmatmul.mubr.bf16.gmra.mrb[0].mxu0 %v3528
        %v3706 = vpop.f32.mrb[0].mxu0
        %v3707 = vadd.f32 %v3566, %v3706
        %v3708 = vpop.f32.mrb[0].mxu0
        %v3709 = vpop.f32.mrb[0].mxu0
        %v3710 = vadd.f32 %v3566, %v3709
        %v3711 = vpop.f32.mrb[0].mxu0
        %3712 = vmatprep.mubr.bf16.mxu0 0
        %3713 = vmatmul.mubr.bf16.gmra.mrb[0].mxu0 %v3529
        %v3714 = vpop.f32.mrb[0].mxu0
        %v3715 = vadd.f32 %v3566, %v3714
        %v3716 = vpop.f32.mrb[0].mxu0
        %v3717 = vpop.f32.mrb[0].mxu0
        %v3718 = vadd.f32 %v3566, %v3717
        %v3719 = vpop.f32.mrb[0].mxu0
        %3720 = vmatprep.mubr.bf16.mxu0 0
        %3721 = vmatmul.mubr.bf16.gmra.mrb[0].mxu0 %v3530
        %v3722 = vpop.f32.mrb[0].mxu0
        %v3723 = vadd.f32 %v3566, %v3722
        %v3724 = vpop.f32.mrb[0].mxu0
        %v3725 = vpop.f32.mrb[0].mxu0
        %v3726 = vadd.f32 %v3566, %v3725
        %v3727 = vpop.f32.mrb[0].mxu0
        %3728 = vmatprep.mubr.bf16.mxu0 0
        %3729 = vmatmul.mubr.bf16.gmra.mrb[0].mxu0 %v3531
        %v3730 = vpop.f32.mrb[0].mxu0
        %v3731 = vadd.f32 %v3566, %v3730
        %v3732 = vpop.f32.mrb[0].mxu0
        %v3733 = vpop.f32.mrb[0].mxu0
        %v3734 = vadd.f32 %v3566, %v3733
        %v3735 = vpop.f32.mrb[0].mxu0
        %3736 = vmatprep.mubr.bf16.mxu0 0
        %3737 = vmatmul.mubr.bf16.gmra.mrb[0].mxu0 %v3532
        %v3738 = vpop.f32.mrb[0].mxu0
        %v3739 = vadd.f32 %v3566, %v3738
        %v3740 = vpop.f32.mrb[0].mxu0
        %v3741 = vpop.f32.mrb[0].mxu0
        %v3742 = vadd.f32 %v3566, %v3741
        %v3743 = vpop.f32.mrb[0].mxu0
        %3744 = vmatprep.mubr.bf16.mxu0 0
        %3745 = vmatmul.mubr.bf16.gmra.mrb[0].mxu0 %v3533
        %v3746 = vpop.f32.mrb[0].mxu0
        %v3747 = vadd.f32 %v3566, %v3746
        %v3748 = vpop.f32.mrb[0].mxu0
        %v3749 = vpop.f32.mrb[0].mxu0
        %v3750 = vadd.f32 %v3566, %v3749
        %v3751 = vpop.f32.mrb[0].mxu0
        %3752 = vmatprep.mubr.bf16.mxu0 0
        %3753 = vmatmul.mubr.bf16.gmra.mrb[0].mxu0 %v3534
        %v3754 = vpop.f32.mrb[0].mxu0
        %v3755 = vadd.f32 %v3566, %v3754
        %v3756 = vpop.f32.mrb[0].mxu0
        %v3757 = vpop.f32.mrb[0].mxu0
        %v3758 = vadd.f32 %v3566, %v3757
        %v3759 = vpop.f32.mrb[0].mxu0
        %3760 = vmatprep.mubr.bf16.mxu0 0
        %3761 = vmatmul.mubr.bf16.gmra.mrb[0].mxu0 %v3535
        %v3762 = vpop.f32.mrb[0].mxu0
        %v3763 = vadd.f32 %v3566, %v3762
        %v3764 = vpop.f32.mrb[0].mxu0
        %v3765 = vpop.f32.mrb[0].mxu0
        %v3766 = vadd.f32 %v3566, %v3765
        %v3767 = vpop.f32.mrb[0].mxu0
        %3768 = vmatprep.mubr.bf16.mxu0 0
        %3769 = vmatmul.mubr.bf16.gmra.mrb[0].mxu0 %v3536
        %v3770 = vpop.f32.mrb[0].mxu0
        %v3771 = vadd.f32 %v3566, %v3770
        %v3772 = vpop.f32.mrb[0].mxu0
        %v3773 = vpop.f32.mrb[0].mxu0
        %v3774 = vadd.f32 %v3566, %v3773
        %v3775 = vpop.f32.mrb[0].mxu0
        %3776 = vmatprep.mubr.bf16.mxu0 0
        %3777 = vmatmul.mubr.bf16.gmra.mrb[0].mxu0 %v3537
        %v3778 = vpop.f32.mrb[0].mxu0
        %v3779 = vadd.f32 %v3566, %v3778
        %v3780 = vpop.f32.mrb[0].mxu0
        %v3781 = vpop.f32.mrb[0].mxu0
        %v3782 = vadd.f32 %v3566, %v3781
        %v3783 = vpop.f32.mrb[0].mxu0
        %3784 = vmatprep.mubr.bf16.mxu0 0
        %3785 = vmatmul.mubr.bf16.gmra.mrb[0].mxu0 %v3538
        %v3786 = vpop.f32.mrb[0].mxu0
        %v3787 = vadd.f32 %v3566, %v3786
        %v3788 = vpop.f32.mrb[0].mxu0
        %v3789 = vpop.f32.mrb[0].mxu0
        %v3790 = vadd.f32 %v3566, %v3789
        %v3791 = vpop.f32.mrb[0].mxu0
        %3792 = vmatprep.mubr.bf16.mxu0 0
        %3793 = vmatmul.mubr.bf16.gmra.mrb[0].mxu0 %v3539
        %v3794 = vpop.f32.mrb[0].mxu0
        %v3795 = vadd.f32 %v3566, %v3794
        %v3796 = vpop.f32.mrb[0].mxu0
        %v3797 = vpop.f32.mrb[0].mxu0
        %v3798 = vadd.f32 %v3566, %v3797
        %v3799 = vpop.f32.mrb[0].mxu0
        %3800 = vmatprep.mubr.bf16.mxu0 0
        %3801 = vmatmul.mubr.bf16.gmra.mrb[0].mxu0 %v3540
        %v3802 = vpop.f32.mrb[0].mxu0
        %v3803 = vadd.f32 %v3566, %v3802
        %v3804 = vpop.f32.mrb[0].mxu0
        %v3805 = vpop.f32.mrb[0].mxu0
        %v3806 = vadd.f32 %v3566, %v3805
        %v3807 = vpop.f32.mrb[0].mxu0
        %3808 = vmatprep.mubr.bf16.mxu0 0
        %3809 = vmatmul.mubr.bf16.gmra.mrb[0].mxu0 %v3541
        %v3810 = vpop.f32.mrb[0].mxu0
        %v3811 = vadd.f32 %v3566, %v3810
        %v3812 = vpop.f32.mrb[0].mxu0
        %v3813 = vpop.f32.mrb[0].mxu0
        %v3814 = vadd.f32 %v3566, %v3813
        %v3815 = vpop.f32.mrb[0].mxu0
        %3816 = vmatprep.mubr.bf16.mxu0 0
        %3817 = vmatmul.mubr.bf16.gmra.mrb[0].mxu0 %v3542
        %v3818 = vpop.f32.mrb[0].mxu0
        %v3819 = vadd.f32 %v3566, %v3818
        %v3820 = vpop.f32.mrb[0].mxu0
        %v3821 = vpop.f32.mrb[0].mxu0
        %v3822 = vadd.f32 %v3566, %v3821
        %v3823 = vpop.f32.mrb[0].mxu0
        %3824 = vmatprep.mubr.bf16.mxu0 0
        %3825 = vmatmul.mubr.bf16.gmra.mrb[0].mxu0 %v3543
        %v3826 = vpop.f32.mrb[0].mxu0
        %v3827 = vadd.f32 %v3566, %v3826
        %v3828 = vpop.f32.mrb[0].mxu0
        %v3829 = vpop.f32.mrb[0].mxu0
        %v3830 = vadd.f32 %v3566, %v3829
        %v3831 = vpop.f32.mrb[0].mxu0
        %3832 = vmatprep.mubr.bf16.mxu0 0
        %3833 = vmatmul.mubr.bf16.gmra.mrb[0].mxu0 %v3544
        %v3834 = vpop.f32.mrb[0].mxu0
        %v3835 = vadd.f32 %v3566, %v3834
        %v3836 = vpop.f32.mrb[0].mxu0
        %v3837 = vpop.f32.mrb[0].mxu0
        %v3838 = vadd.f32 %v3566, %v3837
        %v3839 = vpop.f32.mrb[0].mxu0
        %3840 = vdwg.mxu0
        %v3841 = vld [vmem:[%s6] sm:$0xf]
        %v3842 = vld [vmem:[%s6 + $0x4] sm:$0xf]
        %v3843 = vld [vmem:[%s6 + $0x8] sm:$0xf]
        %v3844 = vld [vmem:[%s6 + $0xc] sm:$0xf]
        %v3845 = vld [vmem:[%s6 + $0x10] sm:$0xf]
        %v3846 = vld [vmem:[%s6 + $0x14] sm:$0xf]
        %v3847 = vld [vmem:[%s6 + $0x18] sm:$0xf]
        %v3848 = vld [vmem:[%s6 + $0x1c] sm:$0xf]
        %v3849 = vld [vmem:[%s6 + $0x20] sm:$0xf]
        %v3850 = vld [vmem:[%s6 + $0x24] sm:$0xf]
        %v3851 = vld [vmem:[%s6 + $0x28] sm:$0xf]
        %v3852 = vld [vmem:[%s6 + $0x2c] sm:$0xf]
        %v3853 = vld [vmem:[%s6 + $0x30] sm:$0xf]
        %v3854 = vld [vmem:[%s6 + $0x34] sm:$0xf]
        %v3855 = vld [vmem:[%s6 + $0x38] sm:$0xf]
        %v3856 = vld [vmem:[%s6 + $0x3c] sm:$0xf]
        %v3857 = vld [vmem:[%s7] sm:$0x1]
        %v3859 = vlaneseq
        %v3860 = vshrl.u32 %v3859, 7
        %v3861 = vsub.s32 0, %v3860
        %v3862 = vrot.slane %v3857, %v3861
        %v3880 = vunpack.c.l.b16 %v3841
        %v3881 = vunpack.c.l.b16 %v3842
        %v3882 = vunpack.c.l.b16 %v3843
        %v3883 = vunpack.c.l.b16 %v3844
        %v3884 = vunpack.c.l.b16 %v3845
        %v3885 = vunpack.c.l.b16 %v3846
        %v3886 = vunpack.c.l.b16 %v3847
        %v3887 = vunpack.c.l.b16 %v3848
        %v3888 = vunpack.c.l.b16 %v3849
        %v3889 = vunpack.c.l.b16 %v3850
        %v3890 = vunpack.c.l.b16 %v3851
        %v3891 = vunpack.c.l.b16 %v3852
        %v3892 = vunpack.c.l.b16 %v3853
        %v3893 = vunpack.c.l.b16 %v3854
        %v3894 = vunpack.c.l.b16 %v3855
        %v3895 = vunpack.c.l.b16 %v3856
        %v3896 = vpack.c.b16 %v3881, %v3880
        %v3897 = vpack.c.b16 %v3883, %v3882
        %v3898 = vpack.c.b16 %v3885, %v3884
        %v3899 = vpack.c.b16 %v3887, %v3886
        %v3900 = vpack.c.b16 %v3889, %v3888
        %v3901 = vpack.c.b16 %v3891, %v3890
        %v3902 = vpack.c.b16 %v3893, %v3892
        %v3903 = vpack.c.b16 %v3895, %v3894
        %3912 = vmatprep.subr.bf16.mxu0 0
        %3913 = vmatpush1.bf16.msra.mxu0 %v3896
        %3914 = vmatprep.subr.bf16.mxu0 0
        %3915 = vmatpush1.bf16.msra.mxu0 %v3897
        %3916 = vmatprep.subr.bf16.mxu0 0
        %3917 = vmatpush1.bf16.msra.mxu0 %v3898
        %3918 = vmatprep.subr.bf16.mxu0 0
        %3919 = vmatpush1.bf16.msra.mxu0 %v3899
        %3920 = vmatprep.subr.bf16.mxu0 0
        %3921 = vmatpush1.bf16.msra.mxu0 %v3900
        %3922 = vmatprep.subr.bf16.mxu0 0
        %3923 = vmatpush1.bf16.msra.mxu0 %v3901
        %3924 = vmatprep.subr.bf16.mxu0 0
        %3925 = vmatpush1.bf16.msra.mxu0 %v3902
        %3926 = vmatprep.subr.bf16.mxu0 0
        %3927 = vmatpush1.bf16.msra.mxu0 %v3903
        %3928 = vmatprep.subr.bf16.mxu0 0
        %3929 = vmatpush1.bf16.msra.mxu0 0
        %3930 = vmatprep.subr.bf16.mxu0 0
        %3931 = vmatpush1.bf16.msra.mxu0 0
        %3932 = vmatprep.subr.bf16.mxu0 0
        %3933 = vmatpush1.bf16.msra.mxu0 0
        %3934 = vmatprep.subr.bf16.mxu0 0
        %3935 = vmatpush1.bf16.msra.mxu0 0
        %3936 = vmatprep.subr.bf16.mxu0 0
        %3937 = vmatpush1.bf16.msra.mxu0 0
        %3938 = vmatprep.subr.bf16.mxu0 0
        %3939 = vmatpush1.bf16.msra.mxu0 0
        %3940 = vmatprep.subr.bf16.mxu0 0
        %3941 = vmatpush1.bf16.msra.mxu0 0
        %3942 = vmatprep.subr.bf16.mxu0 0
        %3943 = vmatpush1.bf16.msra.mxu0 0
        %3944 = vmatprep.mubr.bf16.mxu0 0
        %3945 = vmatmul.mubr.bf16.gmra.mrb[0].mxu0 %v3521
        %v3946 = vpop.f32.mrb[0].mxu0
        %v3947 = vadd.f32 %v3862, %v3946
        %v3948 = vpop.f32.mrb[0].mxu0
        %v3949 = vpop.f32.mrb[0].mxu0
        %v3950 = vadd.f32 %v3862, %v3949
        %v3951 = vpop.f32.mrb[0].mxu0
        %3952 = vmatprep.mubr.bf16.mxu0 0
        %3953 = vmatmul.mubr.bf16.gmra.mrb[0].mxu0 %v3522
        %v3954 = vpop.f32.mrb[0].mxu0
        %v3955 = vadd.f32 %v3862, %v3954
        %v3956 = vpop.f32.mrb[0].mxu0
        %v3957 = vpop.f32.mrb[0].mxu0
        %v3958 = vadd.f32 %v3862, %v3957
        %v3959 = vpop.f32.mrb[0].mxu0
        %3960 = vmatprep.mubr.bf16.mxu0 0
        %3961 = vmatmul.mubr.bf16.gmra.mrb[0].mxu0 %v3523
        %v3962 = vpop.f32.mrb[0].mxu0
        %v3963 = vadd.f32 %v3862, %v3962
        %v3964 = vpop.f32.mrb[0].mxu0
        %v3965 = vpop.f32.mrb[0].mxu0
        %v3966 = vadd.f32 %v3862, %v3965
        %v3967 = vpop.f32.mrb[0].mxu0
        %3968 = vmatprep.mubr.bf16.mxu0 0
        %3969 = vmatmul.mubr.bf16.gmra.mrb[0].mxu0 %v3524
        %v3970 = vpop.f32.mrb[0].mxu0
        %v3971 = vadd.f32 %v3862, %v3970
        %v3972 = vpop.f32.mrb[0].mxu0
        %v3973 = vpop.f32.mrb[0].mxu0
        %v3974 = vadd.f32 %v3862, %v3973
        %v3975 = vpop.f32.mrb[0].mxu0
        %3976 = vmatprep.mubr.bf16.mxu0 0
        %3977 = vmatmul.mubr.bf16.gmra.mrb[0].mxu0 %v3525
        %v3978 = vpop.f32.mrb[0].mxu0
        %v3979 = vadd.f32 %v3862, %v3978
        %v3980 = vpop.f32.mrb[0].mxu0
        %v3981 = vpop.f32.mrb[0].mxu0
        %v3982 = vadd.f32 %v3862, %v3981
        %v3983 = vpop.f32.mrb[0].mxu0
        %3984 = vmatprep.mubr.bf16.mxu0 0
        %3985 = vmatmul.mubr.bf16.gmra.mrb[0].mxu0 %v3526
        %v3986 = vpop.f32.mrb[0].mxu0
        %v3987 = vadd.f32 %v3862, %v3986
        %v3988 = vpop.f32.mrb[0].mxu0
        %v3989 = vpop.f32.mrb[0].mxu0
        %v3990 = vadd.f32 %v3862, %v3989
        %v3991 = vpop.f32.mrb[0].mxu0
        %3992 = vmatprep.mubr.bf16.mxu0 0
        %3993 = vmatmul.mubr.bf16.gmra.mrb[0].mxu0 %v3527
        %v3994 = vpop.f32.mrb[0].mxu0
        %v3995 = vadd.f32 %v3862, %v3994
        %v3996 = vpop.f32.mrb[0].mxu0
        %v3997 = vpop.f32.mrb[0].mxu0
        %v3998 = vadd.f32 %v3862, %v3997
        %v3999 = vpop.f32.mrb[0].mxu0
        %4000 = vmatprep.mubr.bf16.mxu0 0
        %4001 = vmatmul.mubr.bf16.gmra.mrb[0].mxu0 %v3528
        %v4002 = vpop.f32.mrb[0].mxu0
        %v4003 = vadd.f32 %v3862, %v4002
        %v4004 = vpop.f32.mrb[0].mxu0
        %v4005 = vpop.f32.mrb[0].mxu0
        %v4006 = vadd.f32 %v3862, %v4005
        %v4007 = vpop.f32.mrb[0].mxu0
        %4008 = vmatprep.mubr.bf16.mxu0 0
        %4009 = vmatmul.mubr.bf16.gmra.mrb[0].mxu0 %v3529
        %v4010 = vpop.f32.mrb[0].mxu0
        %v4011 = vadd.f32 %v3862, %v4010
        %v4012 = vpop.f32.mrb[0].mxu0
        %v4013 = vpop.f32.mrb[0].mxu0
        %v4014 = vadd.f32 %v3862, %v4013
        %v4015 = vpop.f32.mrb[0].mxu0
        %4016 = vmatprep.mubr.bf16.mxu0 0
        %4017 = vmatmul.mubr.bf16.gmra.mrb[0].mxu0 %v3530
        %v4018 = vpop.f32.mrb[0].mxu0
        %v4019 = vadd.f32 %v3862, %v4018
        %v4020 = vpop.f32.mrb[0].mxu0
        %v4021 = vpop.f32.mrb[0].mxu0
        %v4022 = vadd.f32 %v3862, %v4021
        %v4023 = vpop.f32.mrb[0].mxu0
        %4024 = vmatprep.mubr.bf16.mxu0 0
        %4025 = vmatmul.mubr.bf16.gmra.mrb[0].mxu0 %v3531
        %v4026 = vpop.f32.mrb[0].mxu0
        %v4027 = vadd.f32 %v3862, %v4026
        %v4028 = vpop.f32.mrb[0].mxu0
        %v4029 = vpop.f32.mrb[0].mxu0
        %v4030 = vadd.f32 %v3862, %v4029
        %v4031 = vpop.f32.mrb[0].mxu0
        %4032 = vmatprep.mubr.bf16.mxu0 0
        %4033 = vmatmul.mubr.bf16.gmra.mrb[0].mxu0 %v3532
        %v4034 = vpop.f32.mrb[0].mxu0
        %v4035 = vadd.f32 %v3862, %v4034
        %v4036 = vpop.f32.mrb[0].mxu0
        %v4037 = vpop.f32.mrb[0].mxu0
        %v4038 = vadd.f32 %v3862, %v4037
        %v4039 = vpop.f32.mrb[0].mxu0
        %4040 = vmatprep.mubr.bf16.mxu0 0
        %4041 = vmatmul.mubr.bf16.gmra.mrb[0].mxu0 %v3533
        %v4042 = vpop.f32.mrb[0].mxu0
        %v4043 = vadd.f32 %v3862, %v4042
        %v4044 = vpop.f32.mrb[0].mxu0
        %v4045 = vpop.f32.mrb[0].mxu0
        %v4046 = vadd.f32 %v3862, %v4045
        %v4047 = vpop.f32.mrb[0].mxu0
        %4048 = vmatprep.mubr.bf16.mxu0 0
        %4049 = vmatmul.mubr.bf16.gmra.mrb[0].mxu0 %v3534
        %v4050 = vpop.f32.mrb[0].mxu0
        %v4051 = vadd.f32 %v3862, %v4050
        %v4052 = vpop.f32.mrb[0].mxu0
        %v4053 = vpop.f32.mrb[0].mxu0
        %v4054 = vadd.f32 %v3862, %v4053
        %v4055 = vpop.f32.mrb[0].mxu0
        %4056 = vmatprep.mubr.bf16.mxu0 0
        %4057 = vmatmul.mubr.bf16.gmra.mrb[0].mxu0 %v3535
        %v4058 = vpop.f32.mrb[0].mxu0
        %v4059 = vadd.f32 %v3862, %v4058
        %v4060 = vpop.f32.mrb[0].mxu0
        %v4061 = vpop.f32.mrb[0].mxu0
        %v4062 = vadd.f32 %v3862, %v4061
        %v4063 = vpop.f32.mrb[0].mxu0
        %4064 = vmatprep.mubr.bf16.mxu0 0
        %4065 = vmatmul.mubr.bf16.gmra.mrb[0].mxu0 %v3536
        %v4066 = vpop.f32.mrb[0].mxu0
        %v4067 = vadd.f32 %v3862, %v4066
        %v4068 = vpop.f32.mrb[0].mxu0
        %v4069 = vpop.f32.mrb[0].mxu0
        %v4070 = vadd.f32 %v3862, %v4069
        %v4071 = vpop.f32.mrb[0].mxu0
        %4072 = vmatprep.mubr.bf16.mxu0 0
        %4073 = vmatmul.mubr.bf16.gmra.mrb[0].mxu0 %v3537
        %v4074 = vpop.f32.mrb[0].mxu0
        %v4075 = vadd.f32 %v3862, %v4074
        %v4076 = vpop.f32.mrb[0].mxu0
        %v4077 = vpop.f32.mrb[0].mxu0
        %v4078 = vadd.f32 %v3862, %v4077
        %v4079 = vpop.f32.mrb[0].mxu0
        %4080 = vmatprep.mubr.bf16.mxu0 0
        %4081 = vmatmul.mubr.bf16.gmra.mrb[0].mxu0 %v3538
        %v4082 = vpop.f32.mrb[0].mxu0
        %v4083 = vadd.f32 %v3862, %v4082
        %v4084 = vpop.f32.mrb[0].mxu0
        %v4085 = vpop.f32.mrb[0].mxu0
        %v4086 = vadd.f32 %v3862, %v4085
        %v4087 = vpop.f32.mrb[0].mxu0
        %4088 = vmatprep.mubr.bf16.mxu0 0
        %4089 = vmatmul.mubr.bf16.gmra.mrb[0].mxu0 %v3539
        %v4090 = vpop.f32.mrb[0].mxu0
        %v4091 = vadd.f32 %v3862, %v4090
        %v4092 = vpop.f32.mrb[0].mxu0
        %v4093 = vpop.f32.mrb[0].mxu0
        %v4094 = vadd.f32 %v3862, %v4093
        %v4095 = vpop.f32.mrb[0].mxu0
        %4096 = vmatprep.mubr.bf16.mxu0 0
        %4097 = vmatmul.mubr.bf16.gmra.mrb[0].mxu0 %v3540
        %v4098 = vpop.f32.mrb[0].mxu0
        %v4099 = vadd.f32 %v3862, %v4098
        %v4100 = vpop.f32.mrb[0].mxu0
        %v4101 = vpop.f32.mrb[0].mxu0
        %v4102 = vadd.f32 %v3862, %v4101
        %v4103 = vpop.f32.mrb[0].mxu0
        %4104 = vmatprep.mubr.bf16.mxu0 0
        %4105 = vmatmul.mubr.bf16.gmra.mrb[0].mxu0 %v3541
        %v4106 = vpop.f32.mrb[0].mxu0
        %v4107 = vadd.f32 %v3862, %v4106
        %v4108 = vpop.f32.mrb[0].mxu0
        %v4109 = vpop.f32.mrb[0].mxu0
        %v4110 = vadd.f32 %v3862, %v4109
        %v4111 = vpop.f32.mrb[0].mxu0
        %4112 = vmatprep.mubr.bf16.mxu0 0
        %4113 = vmatmul.mubr.bf16.gmra.mrb[0].mxu0 %v3542
        %v4114 = vpop.f32.mrb[0].mxu0
        %v4115 = vadd.f32 %v3862, %v4114
        %v4116 = vpop.f32.mrb[0].mxu0
        %v4117 = vpop.f32.mrb[0].mxu0
        %v4118 = vadd.f32 %v3862, %v4117
        %v4119 = vpop.f32.mrb[0].mxu0
        %4120 = vmatprep.mubr.bf16.mxu0 0
        %4121 = vmatmul.mubr.bf16.gmra.mrb[0].mxu0 %v3543
        %v4122 = vpop.f32.mrb[0].mxu0
        %v4123 = vadd.f32 %v3862, %v4122
        %v4124 = vpop.f32.mrb[0].mxu0
        %v4125 = vpop.f32.mrb[0].mxu0
        %v4126 = vadd.f32 %v3862, %v4125
        %v4127 = vpop.f32.mrb[0].mxu0
        %4128 = vmatprep.mubr.bf16.mxu0 0
        %4129 = vmatmul.mubr.bf16.gmra.mrb[0].mxu0 %v3544
        %v4130 = vpop.f32.mrb[0].mxu0
        %v4131 = vadd.f32 %v3862, %v4130
        %v4132 = vpop.f32.mrb[0].mxu0
        %v4133 = vpop.f32.mrb[0].mxu0
        %v4134 = vadd.f32 %v3862, %v4133
        %v4135 = vpop.f32.mrb[0].mxu0
        %4136 = vdwg.mxu0
        %v4137 = vmin.f32 %v3651, 20.0
        %v4138 = vmin.f32 %v3654, 20.0
        %v4139 = vmin.f32 %v3659, 20.0
        %v4140 = vmin.f32 %v3662, 20.0
        %v4141 = vmin.f32 %v3667, 20.0
        %v4142 = vmin.f32 %v3670, 20.0
        %v4143 = vmin.f32 %v3675, 20.0
        %v4144 = vmin.f32 %v3678, 20.0
        %v4145 = vmin.f32 %v3683, 20.0
        %v4146 = vmin.f32 %v3686, 20.0
        %v4147 = vmin.f32 %v3691, 20.0
        %v4148 = vmin.f32 %v3694, 20.0
        %v4149 = vmin.f32 %v3699, 20.0
        %v4150 = vmin.f32 %v3702, 20.0
        %v4151 = vmin.f32 %v3707, 20.0
        %v4152 = vmin.f32 %v3710, 20.0
        %v4153 = vmin.f32 %v3715, 20.0
        %v4154 = vmin.f32 %v3718, 20.0
        %v4155 = vmin.f32 %v3723, 20.0
        %v4156 = vmin.f32 %v3726, 20.0
        %v4157 = vmin.f32 %v3731, 20.0
        %v4158 = vmin.f32 %v3734, 20.0
        %v4159 = vmin.f32 %v3739, 20.0
        %v4160 = vmin.f32 %v3742, 20.0
        %v4161 = vmin.f32 %v3747, 20.0
        %v4162 = vmin.f32 %v3750, 20.0
        %v4163 = vmin.f32 %v3755, 20.0
        %v4164 = vmin.f32 %v3758, 20.0
        %v4165 = vmin.f32 %v3763, 20.0
        %v4166 = vmin.f32 %v3766, 20.0
        %v4167 = vmin.f32 %v3771, 20.0
        %v4168 = vmin.f32 %v3774, 20.0
        %v4169 = vmin.f32 %v3779, 20.0
        %v4170 = vmin.f32 %v3782, 20.0
        %v4171 = vmin.f32 %v3787, 20.0
        %v4172 = vmin.f32 %v3790, 20.0
        %v4173 = vmin.f32 %v3795, 20.0
        %v4174 = vmin.f32 %v3798, 20.0
        %v4175 = vmin.f32 %v3803, 20.0
        %v4176 = vmin.f32 %v3806, 20.0
        %v4177 = vmin.f32 %v3811, 20.0
        %v4178 = vmin.f32 %v3814, 20.0
        %v4179 = vmin.f32 %v3819, 20.0
        %v4180 = vmin.f32 %v3822, 20.0
        %v4181 = vmin.f32 %v3827, 20.0
        %v4182 = vmin.f32 %v3830, 20.0
        %v4183 = vmin.f32 %v3835, 20.0
        %v4184 = vmin.f32 %v3838, 20.0
        %vm4185 = vcmp.gt.f32.partialorder %v3651, 20.0
        %vm4186 = vcmp.gt.f32.partialorder %v3654, 20.0
        %vm4187 = vcmp.gt.f32.partialorder %v3659, 20.0
        %vm4188 = vcmp.gt.f32.partialorder %v3662, 20.0
        %vm4189 = vcmp.gt.f32.partialorder %v3667, 20.0
        %vm4190 = vcmp.gt.f32.partialorder %v3670, 20.0
        %vm4191 = vcmp.gt.f32.partialorder %v3675, 20.0
        %vm4192 = vcmp.gt.f32.partialorder %v3678, 20.0
        %vm4193 = vcmp.gt.f32.partialorder %v3683, 20.0
        %vm4194 = vcmp.gt.f32.partialorder %v3686, 20.0
        %vm4195 = vcmp.gt.f32.partialorder %v3691, 20.0
        %vm4196 = vcmp.gt.f32.partialorder %v3694, 20.0
        %vm4197 = vcmp.gt.f32.partialorder %v3699, 20.0
        %vm4198 = vcmp.gt.f32.partialorder %v3702, 20.0
        %vm4199 = vcmp.gt.f32.partialorder %v3707, 20.0
        %vm4200 = vcmp.gt.f32.partialorder %v3710, 20.0
        %vm4201 = vcmp.gt.f32.partialorder %v3715, 20.0
        %vm4202 = vcmp.gt.f32.partialorder %v3718, 20.0
        %vm4203 = vcmp.gt.f32.partialorder %v3723, 20.0
        %vm4204 = vcmp.gt.f32.partialorder %v3726, 20.0
        %vm4205 = vcmp.gt.f32.partialorder %v3731, 20.0
        %vm4206 = vcmp.gt.f32.partialorder %v3734, 20.0
        %vm4207 = vcmp.gt.f32.partialorder %v3739, 20.0
        %vm4208 = vcmp.gt.f32.partialorder %v3742, 20.0
        %vm4209 = vcmp.gt.f32.partialorder %v3747, 20.0
        %vm4210 = vcmp.gt.f32.partialorder %v3750, 20.0
        %vm4211 = vcmp.gt.f32.partialorder %v3755, 20.0
        %vm4212 = vcmp.gt.f32.partialorder %v3758, 20.0
        %vm4213 = vcmp.gt.f32.partialorder %v3763, 20.0
        %vm4214 = vcmp.gt.f32.partialorder %v3766, 20.0
        %vm4215 = vcmp.gt.f32.partialorder %v3771, 20.0
        %vm4216 = vcmp.gt.f32.partialorder %v3774, 20.0
        %vm4217 = vcmp.gt.f32.partialorder %v3779, 20.0
        %vm4218 = vcmp.gt.f32.partialorder %v3782, 20.0
        %vm4219 = vcmp.gt.f32.partialorder %v3787, 20.0
        %vm4220 = vcmp.gt.f32.partialorder %v3790, 20.0
        %vm4221 = vcmp.gt.f32.partialorder %v3795, 20.0
        %vm4222 = vcmp.gt.f32.partialorder %v3798, 20.0
        %vm4223 = vcmp.gt.f32.partialorder %v3803, 20.0
        %vm4224 = vcmp.gt.f32.partialorder %v3806, 20.0
        %vm4225 = vcmp.gt.f32.partialorder %v3811, 20.0
        %vm4226 = vcmp.gt.f32.partialorder %v3814, 20.0
        %vm4227 = vcmp.gt.f32.partialorder %v3819, 20.0
        %vm4228 = vcmp.gt.f32.partialorder %v3822, 20.0
        %vm4229 = vcmp.gt.f32.partialorder %v3827, 20.0
        %vm4230 = vcmp.gt.f32.partialorder %v3830, 20.0
        %vm4231 = vcmp.gt.f32.partialorder %v3835, 20.0
        %vm4232 = vcmp.gt.f32.partialorder %v3838, 20.0
        %v4233 = vmul.f32 %v4137, 1.442695
        %v4234 = vpow.pop %v4233
        %v4235 = vmul.f32 %v4138, 1.442695
        %v4236 = vpow.pop %v4235
        %v4237 = vmul.f32 %v4139, 1.442695
        %v4238 = vpow.pop %v4237
        %v4239 = vmul.f32 %v4140, 1.442695
        %v4240 = vpow.pop %v4239
        %v4241 = vmul.f32 %v4141, 1.442695
        %v4242 = vpow.pop %v4241
        %v4243 = vmul.f32 %v4142, 1.442695
        %v4244 = vpow.pop %v4243
        %v4245 = vmul.f32 %v4143, 1.442695
        %v4246 = vpow.pop %v4245
        %v4247 = vmul.f32 %v4144, 1.442695
        %v4248 = vpow.pop %v4247
        %v4249 = vmul.f32 %v4145, 1.442695
        %v4250 = vpow.pop %v4249
        %v4251 = vmul.f32 %v4146, 1.442695
        %v4252 = vpow.pop %v4251
        %v4253 = vmul.f32 %v4147, 1.442695
        %v4254 = vpow.pop %v4253
        %v4255 = vmul.f32 %v4148, 1.442695
        %v4256 = vpow.pop %v4255
        %v4257 = vmul.f32 %v4149, 1.442695
        %v4258 = vpow.pop %v4257
        %v4259 = vmul.f32 %v4150, 1.442695
        %v4260 = vpow.pop %v4259
        %v4261 = vmul.f32 %v4151, 1.442695
        %v4262 = vpow.pop %v4261
        %v4263 = vmul.f32 %v4152, 1.442695
        %v4264 = vpow.pop %v4263
        %v4265 = vmul.f32 %v4153, 1.442695
        %v4266 = vpow.pop %v4265
        %v4267 = vmul.f32 %v4154, 1.442695
        %v4268 = vpow.pop %v4267
        %v4269 = vmul.f32 %v4155, 1.442695
        %v4270 = vpow.pop %v4269
        %v4271 = vmul.f32 %v4156, 1.442695
        %v4272 = vpow.pop %v4271
        %v4273 = vmul.f32 %v4157, 1.442695
        %v4274 = vpow.pop %v4273
        %v4275 = vmul.f32 %v4158, 1.442695
        %v4276 = vpow.pop %v4275
        %v4277 = vmul.f32 %v4159, 1.442695
        %v4278 = vpow.pop %v4277
        %v4279 = vmul.f32 %v4160, 1.442695
        %v4280 = vpow.pop %v4279
        %v4281 = vmul.f32 %v4161, 1.442695
        %v4282 = vpow.pop %v4281
        %v4283 = vmul.f32 %v4162, 1.442695
        %v4284 = vpow.pop %v4283
        %v4285 = vmul.f32 %v4163, 1.442695
        %v4286 = vpow.pop %v4285
        %v4287 = vmul.f32 %v4164, 1.442695
        %v4288 = vpow.pop %v4287
        %v4289 = vmul.f32 %v4165, 1.442695
        %v4290 = vpow.pop %v4289
        %v4291 = vmul.f32 %v4166, 1.442695
        %v4292 = vpow.pop %v4291
        %v4293 = vmul.f32 %v4167, 1.442695
        %v4294 = vpow.pop %v4293
        %v4295 = vmul.f32 %v4168, 1.442695
        %v4296 = vpow.pop %v4295
        %v4297 = vmul.f32 %v4169, 1.442695
        %v4298 = vpow.pop %v4297
        %v4299 = vmul.f32 %v4170, 1.442695
        %v4300 = vpow.pop %v4299
        %v4301 = vmul.f32 %v4171, 1.442695
        %v4302 = vpow.pop %v4301
        %v4303 = vmul.f32 %v4172, 1.442695
        %v4304 = vpow.pop %v4303
        %v4305 = vmul.f32 %v4173, 1.442695
        %v4306 = vpow.pop %v4305
        %v4307 = vmul.f32 %v4174, 1.442695
        %v4308 = vpow.pop %v4307
        %v4309 = vmul.f32 %v4175, 1.442695
        %v4310 = vpow.pop %v4309
        %v4311 = vmul.f32 %v4176, 1.442695
        %v4312 = vpow.pop %v4311
        %v4313 = vmul.f32 %v4177, 1.442695
        %v4314 = vpow.pop %v4313
        %v4315 = vmul.f32 %v4178, 1.442695
        %v4316 = vpow.pop %v4315
        %v4317 = vmul.f32 %v4179, 1.442695
        %v4318 = vpow.pop %v4317
        %v4319 = vmul.f32 %v4180, 1.442695
        %v4320 = vpow.pop %v4319
        %v4321 = vmul.f32 %v4181, 1.442695
        %v4322 = vpow.pop %v4321
        %v4323 = vmul.f32 %v4182, 1.442695
        %v4324 = vpow.pop %v4323
        %v4325 = vmul.f32 %v4183, 1.442695
        %v4326 = vpow.pop %v4325
        %v4327 = vmul.f32 %v4184, 1.442695
        %v4328 = vpow.pop %v4327
        %v4329 = vadd.f32 %v4234, 1.0
        %v4330 = vlog2.pop %v4329
        %v4331 = vmul.f32 %v4330, 0.6931472
        %v4332 = vmul.f32 -0.5, %v4234
        %v4333 = vadd.f32 %v4332, 1.0
        %v4334 = vmul.f32 %v4333, %v4234
        %v4335 = vand.u32 2147483647, %v4234
        %vm4336 = vcmp.lt.f32.partialorder %v4335, 0.0004427343
        %v4337 = vsel %vm4336, %v4334, %v4331
        %v4338 = vadd.f32 %v4236, 1.0
        %v4339 = vlog2.pop %v4338
        %v4340 = vmul.f32 %v4339, 0.6931472
        %v4341 = vmul.f32 -0.5, %v4236
        %v4342 = vadd.f32 %v4341, 1.0
        %v4343 = vmul.f32 %v4342, %v4236
        %v4344 = vand.u32 2147483647, %v4236
        %vm4345 = vcmp.lt.f32.partialorder %v4344, 0.0004427343
        %v4346 = vsel %vm4345, %v4343, %v4340
        %v4347 = vadd.f32 %v4238, 1.0
        %v4348 = vlog2.pop %v4347
        %v4349 = vmul.f32 %v4348, 0.6931472
        %v4350 = vmul.f32 -0.5, %v4238
        %v4351 = vadd.f32 %v4350, 1.0
        %v4352 = vmul.f32 %v4351, %v4238
        %v4353 = vand.u32 2147483647, %v4238
        %vm4354 = vcmp.lt.f32.partialorder %v4353, 0.0004427343
        %v4355 = vsel %vm4354, %v4352, %v4349
        %v4356 = vadd.f32 %v4240, 1.0
        %v4357 = vlog2.pop %v4356
        %v4358 = vmul.f32 %v4357, 0.6931472
        %v4359 = vmul.f32 -0.5, %v4240
        %v4360 = vadd.f32 %v4359, 1.0
        %v4361 = vmul.f32 %v4360, %v4240
        %v4362 = vand.u32 2147483647, %v4240
        %vm4363 = vcmp.lt.f32.partialorder %v4362, 0.0004427343
        %v4364 = vsel %vm4363, %v4361, %v4358
        %v4365 = vadd.f32 %v4242, 1.0
        %v4366 = vlog2.pop %v4365
        %v4367 = vmul.f32 %v4366, 0.6931472
        %v4368 = vmul.f32 -0.5, %v4242
        %v4369 = vadd.f32 %v4368, 1.0
        %v4370 = vmul.f32 %v4369, %v4242
        %v4371 = vand.u32 2147483647, %v4242
        %vm4372 = vcmp.lt.f32.partialorder %v4371, 0.0004427343
        %v4373 = vsel %vm4372, %v4370, %v4367
        %v4374 = vadd.f32 %v4244, 1.0
        %v4375 = vlog2.pop %v4374
        %v4376 = vmul.f32 %v4375, 0.6931472
        %v4377 = vmul.f32 -0.5, %v4244
        %v4378 = vadd.f32 %v4377, 1.0
        %v4379 = vmul.f32 %v4378, %v4244
        %v4380 = vand.u32 2147483647, %v4244
        %vm4381 = vcmp.lt.f32.partialorder %v4380, 0.0004427343
        %v4382 = vsel %vm4381, %v4379, %v4376
        %v4383 = vadd.f32 %v4246, 1.0
        %v4384 = vlog2.pop %v4383
        %v4385 = vmul.f32 %v4384, 0.6931472
        %v4386 = vmul.f32 -0.5, %v4246
        %v4387 = vadd.f32 %v4386, 1.0
        %v4388 = vmul.f32 %v4387, %v4246
        %v4389 = vand.u32 2147483647, %v4246
        %vm4390 = vcmp.lt.f32.partialorder %v4389, 0.0004427343
        %v4391 = vsel %vm4390, %v4388, %v4385
        %v4392 = vadd.f32 %v4248, 1.0
        %v4393 = vlog2.pop %v4392
        %v4394 = vmul.f32 %v4393, 0.6931472
        %v4395 = vmul.f32 -0.5, %v4248
        %v4396 = vadd.f32 %v4395, 1.0
        %v4397 = vmul.f32 %v4396, %v4248
        %v4398 = vand.u32 2147483647, %v4248
        %vm4399 = vcmp.lt.f32.partialorder %v4398, 0.0004427343
        %v4400 = vsel %vm4399, %v4397, %v4394
        %v4401 = vadd.f32 %v4250, 1.0
        %v4402 = vlog2.pop %v4401
        %v4403 = vmul.f32 %v4402, 0.6931472
        %v4404 = vmul.f32 -0.5, %v4250
        %v4405 = vadd.f32 %v4404, 1.0
        %v4406 = vmul.f32 %v4405, %v4250
        %v4407 = vand.u32 2147483647, %v4250
        %vm4408 = vcmp.lt.f32.partialorder %v4407, 0.0004427343
        %v4409 = vsel %vm4408, %v4406, %v4403
        %v4410 = vadd.f32 %v4252, 1.0
        %v4411 = vlog2.pop %v4410
        %v4412 = vmul.f32 %v4411, 0.6931472
        %v4413 = vmul.f32 -0.5, %v4252
        %v4414 = vadd.f32 %v4413, 1.0
        %v4415 = vmul.f32 %v4414, %v4252
        %v4416 = vand.u32 2147483647, %v4252
        %vm4417 = vcmp.lt.f32.partialorder %v4416, 0.0004427343
        %v4418 = vsel %vm4417, %v4415, %v4412
        %v4419 = vadd.f32 %v4254, 1.0
        %v4420 = vlog2.pop %v4419
        %v4421 = vmul.f32 %v4420, 0.6931472
        %v4422 = vmul.f32 -0.5, %v4254
        %v4423 = vadd.f32 %v4422, 1.0
        %v4424 = vmul.f32 %v4423, %v4254
        %v4425 = vand.u32 2147483647, %v4254
        %vm4426 = vcmp.lt.f32.partialorder %v4425, 0.0004427343
        %v4427 = vsel %vm4426, %v4424, %v4421
        %v4428 = vadd.f32 %v4256, 1.0
        %v4429 = vlog2.pop %v4428
        %v4430 = vmul.f32 %v4429, 0.6931472
        %v4431 = vmul.f32 -0.5, %v4256
        %v4432 = vadd.f32 %v4431, 1.0
        %v4433 = vmul.f32 %v4432, %v4256
        %v4434 = vand.u32 2147483647, %v4256
        %vm4435 = vcmp.lt.f32.partialorder %v4434, 0.0004427343
        %v4436 = vsel %vm4435, %v4433, %v4430
        %v4437 = vadd.f32 %v4258, 1.0
        %v4438 = vlog2.pop %v4437
        %v4439 = vmul.f32 %v4438, 0.6931472
        %v4440 = vmul.f32 -0.5, %v4258
        %v4441 = vadd.f32 %v4440, 1.0
        %v4442 = vmul.f32 %v4441, %v4258
        %v4443 = vand.u32 2147483647, %v4258
        %vm4444 = vcmp.lt.f32.partialorder %v4443, 0.0004427343
        %v4445 = vsel %vm4444, %v4442, %v4439
        %v4446 = vadd.f32 %v4260, 1.0
        %v4447 = vlog2.pop %v4446
        %v4448 = vmul.f32 %v4447, 0.6931472
        %v4449 = vmul.f32 -0.5, %v4260
        %v4450 = vadd.f32 %v4449, 1.0
        %v4451 = vmul.f32 %v4450, %v4260
        %v4452 = vand.u32 2147483647, %v4260
        %vm4453 = vcmp.lt.f32.partialorder %v4452, 0.0004427343
        %v4454 = vsel %vm4453, %v4451, %v4448
        %v4455 = vadd.f32 %v4262, 1.0
        %v4456 = vlog2.pop %v4455
        %v4457 = vmul.f32 %v4456, 0.6931472
        %v4458 = vmul.f32 -0.5, %v4262
        %v4459 = vadd.f32 %v4458, 1.0
        %v4460 = vmul.f32 %v4459, %v4262
        %v4461 = vand.u32 2147483647, %v4262
        %vm4462 = vcmp.lt.f32.partialorder %v4461, 0.0004427343
        %v4463 = vsel %vm4462, %v4460, %v4457
        %v4464 = vadd.f32 %v4264, 1.0
        %v4465 = vlog2.pop %v4464
        %v4466 = vmul.f32 %v4465, 0.6931472
        %v4467 = vmul.f32 -0.5, %v4264
        %v4468 = vadd.f32 %v4467, 1.0
        %v4469 = vmul.f32 %v4468, %v4264
        %v4470 = vand.u32 2147483647, %v4264
        %vm4471 = vcmp.lt.f32.partialorder %v4470, 0.0004427343
        %v4472 = vsel %vm4471, %v4469, %v4466
        %v4473 = vadd.f32 %v4266, 1.0
        %v4474 = vlog2.pop %v4473
        %v4475 = vmul.f32 %v4474, 0.6931472
        %v4476 = vmul.f32 -0.5, %v4266
        %v4477 = vadd.f32 %v4476, 1.0
        %v4478 = vmul.f32 %v4477, %v4266
        %v4479 = vand.u32 2147483647, %v4266
        %vm4480 = vcmp.lt.f32.partialorder %v4479, 0.0004427343
        %v4481 = vsel %vm4480, %v4478, %v4475
        %v4482 = vadd.f32 %v4268, 1.0
        %v4483 = vlog2.pop %v4482
        %v4484 = vmul.f32 %v4483, 0.6931472
        %v4485 = vmul.f32 -0.5, %v4268
        %v4486 = vadd.f32 %v4485, 1.0
        %v4487 = vmul.f32 %v4486, %v4268
        %v4488 = vand.u32 2147483647, %v4268
        %vm4489 = vcmp.lt.f32.partialorder %v4488, 0.0004427343
        %v4490 = vsel %vm4489, %v4487, %v4484
        %v4491 = vadd.f32 %v4270, 1.0
        %v4492 = vlog2.pop %v4491
        %v4493 = vmul.f32 %v4492, 0.6931472
        %v4494 = vmul.f32 -0.5, %v4270
        %v4495 = vadd.f32 %v4494, 1.0
        %v4496 = vmul.f32 %v4495, %v4270
        %v4497 = vand.u32 2147483647, %v4270
        %vm4498 = vcmp.lt.f32.partialorder %v4497, 0.0004427343
        %v4499 = vsel %vm4498, %v4496, %v4493
        %v4500 = vadd.f32 %v4272, 1.0
        %v4501 = vlog2.pop %v4500
        %v4502 = vmul.f32 %v4501, 0.6931472
        %v4503 = vmul.f32 -0.5, %v4272
        %v4504 = vadd.f32 %v4503, 1.0
        %v4505 = vmul.f32 %v4504, %v4272
        %v4506 = vand.u32 2147483647, %v4272
        %vm4507 = vcmp.lt.f32.partialorder %v4506, 0.0004427343
        %v4508 = vsel %vm4507, %v4505, %v4502
        %v4509 = vadd.f32 %v4274, 1.0
        %v4510 = vlog2.pop %v4509
        %v4511 = vmul.f32 %v4510, 0.6931472
        %v4512 = vmul.f32 -0.5, %v4274
        %v4513 = vadd.f32 %v4512, 1.0
        %v4514 = vmul.f32 %v4513, %v4274
        %v4515 = vand.u32 2147483647, %v4274
        %vm4516 = vcmp.lt.f32.partialorder %v4515, 0.0004427343
        %v4517 = vsel %vm4516, %v4514, %v4511
        %v4518 = vadd.f32 %v4276, 1.0
        %v4519 = vlog2.pop %v4518
        %v4520 = vmul.f32 %v4519, 0.6931472
        %v4521 = vmul.f32 -0.5, %v4276
        %v4522 = vadd.f32 %v4521, 1.0
        %v4523 = vmul.f32 %v4522, %v4276
        %v4524 = vand.u32 2147483647, %v4276
        %vm4525 = vcmp.lt.f32.partialorder %v4524, 0.0004427343
        %v4526 = vsel %vm4525, %v4523, %v4520
        %v4527 = vadd.f32 %v4278, 1.0
        %v4528 = vlog2.pop %v4527
        %v4529 = vmul.f32 %v4528, 0.6931472
        %v4530 = vmul.f32 -0.5, %v4278
        %v4531 = vadd.f32 %v4530, 1.0
        %v4532 = vmul.f32 %v4531, %v4278
        %v4533 = vand.u32 2147483647, %v4278
        %vm4534 = vcmp.lt.f32.partialorder %v4533, 0.0004427343
        %v4535 = vsel %vm4534, %v4532, %v4529
        %v4536 = vadd.f32 %v4280, 1.0
        %v4537 = vlog2.pop %v4536
        %v4538 = vmul.f32 %v4537, 0.6931472
        %v4539 = vmul.f32 -0.5, %v4280
        %v4540 = vadd.f32 %v4539, 1.0
        %v4541 = vmul.f32 %v4540, %v4280
        %v4542 = vand.u32 2147483647, %v4280
        %vm4543 = vcmp.lt.f32.partialorder %v4542, 0.0004427343
        %v4544 = vsel %vm4543, %v4541, %v4538
        %v4545 = vadd.f32 %v4282, 1.0
        %v4546 = vlog2.pop %v4545
        %v4547 = vmul.f32 %v4546, 0.6931472
        %v4548 = vmul.f32 -0.5, %v4282
        %v4549 = vadd.f32 %v4548, 1.0
        %v4550 = vmul.f32 %v4549, %v4282
        %v4551 = vand.u32 2147483647, %v4282
        %vm4552 = vcmp.lt.f32.partialorder %v4551, 0.0004427343
        %v4553 = vsel %vm4552, %v4550, %v4547
        %v4554 = vadd.f32 %v4284, 1.0
        %v4555 = vlog2.pop %v4554
        %v4556 = vmul.f32 %v4555, 0.6931472
        %v4557 = vmul.f32 -0.5, %v4284
        %v4558 = vadd.f32 %v4557, 1.0
        %v4559 = vmul.f32 %v4558, %v4284
        %v4560 = vand.u32 2147483647, %v4284
        %vm4561 = vcmp.lt.f32.partialorder %v4560, 0.0004427343
        %v4562 = vsel %vm4561, %v4559, %v4556
        %v4563 = vadd.f32 %v4286, 1.0
        %v4564 = vlog2.pop %v4563
        %v4565 = vmul.f32 %v4564, 0.6931472
        %v4566 = vmul.f32 -0.5, %v4286
        %v4567 = vadd.f32 %v4566, 1.0
        %v4568 = vmul.f32 %v4567, %v4286
        %v4569 = vand.u32 2147483647, %v4286
        %vm4570 = vcmp.lt.f32.partialorder %v4569, 0.0004427343
        %v4571 = vsel %vm4570, %v4568, %v4565
        %v4572 = vadd.f32 %v4288, 1.0
        %v4573 = vlog2.pop %v4572
        %v4574 = vmul.f32 %v4573, 0.6931472
        %v4575 = vmul.f32 -0.5, %v4288
        %v4576 = vadd.f32 %v4575, 1.0
        %v4577 = vmul.f32 %v4576, %v4288
        %v4578 = vand.u32 2147483647, %v4288
        %vm4579 = vcmp.lt.f32.partialorder %v4578, 0.0004427343
        %v4580 = vsel %vm4579, %v4577, %v4574
        %v4581 = vadd.f32 %v4290, 1.0
        %v4582 = vlog2.pop %v4581
        %v4583 = vmul.f32 %v4582, 0.6931472
        %v4584 = vmul.f32 -0.5, %v4290
        %v4585 = vadd.f32 %v4584, 1.0
        %v4586 = vmul.f32 %v4585, %v4290
        %v4587 = vand.u32 2147483647, %v4290
        %vm4588 = vcmp.lt.f32.partialorder %v4587, 0.0004427343
        %v4589 = vsel %vm4588, %v4586, %v4583
        %v4590 = vadd.f32 %v4292, 1.0
        %v4591 = vlog2.pop %v4590
        %v4592 = vmul.f32 %v4591, 0.6931472
        %v4593 = vmul.f32 -0.5, %v4292
        %v4594 = vadd.f32 %v4593, 1.0
        %v4595 = vmul.f32 %v4594, %v4292
        %v4596 = vand.u32 2147483647, %v4292
        %vm4597 = vcmp.lt.f32.partialorder %v4596, 0.0004427343
        %v4598 = vsel %vm4597, %v4595, %v4592
        %v4599 = vadd.f32 %v4294, 1.0
        %v4600 = vlog2.pop %v4599
        %v4601 = vmul.f32 %v4600, 0.6931472
        %v4602 = vmul.f32 -0.5, %v4294
        %v4603 = vadd.f32 %v4602, 1.0
        %v4604 = vmul.f32 %v4603, %v4294
        %v4605 = vand.u32 2147483647, %v4294
        %vm4606 = vcmp.lt.f32.partialorder %v4605, 0.0004427343
        %v4607 = vsel %vm4606, %v4604, %v4601
        %v4608 = vadd.f32 %v4296, 1.0
        %v4609 = vlog2.pop %v4608
        %v4610 = vmul.f32 %v4609, 0.6931472
        %v4611 = vmul.f32 -0.5, %v4296
        %v4612 = vadd.f32 %v4611, 1.0
        %v4613 = vmul.f32 %v4612, %v4296
        %v4614 = vand.u32 2147483647, %v4296
        %vm4615 = vcmp.lt.f32.partialorder %v4614, 0.0004427343
        %v4616 = vsel %vm4615, %v4613, %v4610
        %v4617 = vadd.f32 %v4298, 1.0
        %v4618 = vlog2.pop %v4617
        %v4619 = vmul.f32 %v4618, 0.6931472
        %v4620 = vmul.f32 -0.5, %v4298
        %v4621 = vadd.f32 %v4620, 1.0
        %v4622 = vmul.f32 %v4621, %v4298
        %v4623 = vand.u32 2147483647, %v4298
        %vm4624 = vcmp.lt.f32.partialorder %v4623, 0.0004427343
        %v4625 = vsel %vm4624, %v4622, %v4619
        %v4626 = vadd.f32 %v4300, 1.0
        %v4627 = vlog2.pop %v4626
        %v4628 = vmul.f32 %v4627, 0.6931472
        %v4629 = vmul.f32 -0.5, %v4300
        %v4630 = vadd.f32 %v4629, 1.0
        %v4631 = vmul.f32 %v4630, %v4300
        %v4632 = vand.u32 2147483647, %v4300
        %vm4633 = vcmp.lt.f32.partialorder %v4632, 0.0004427343
        %v4634 = vsel %vm4633, %v4631, %v4628
        %v4635 = vadd.f32 %v4302, 1.0
        %v4636 = vlog2.pop %v4635
        %v4637 = vmul.f32 %v4636, 0.6931472
        %v4638 = vmul.f32 -0.5, %v4302
        %v4639 = vadd.f32 %v4638, 1.0
        %v4640 = vmul.f32 %v4639, %v4302
        %v4641 = vand.u32 2147483647, %v4302
        %vm4642 = vcmp.lt.f32.partialorder %v4641, 0.0004427343
        %v4643 = vsel %vm4642, %v4640, %v4637
        %v4644 = vadd.f32 %v4304, 1.0
        %v4645 = vlog2.pop %v4644
        %v4646 = vmul.f32 %v4645, 0.6931472
        %v4647 = vmul.f32 -0.5, %v4304
        %v4648 = vadd.f32 %v4647, 1.0
        %v4649 = vmul.f32 %v4648, %v4304
        %v4650 = vand.u32 2147483647, %v4304
        %vm4651 = vcmp.lt.f32.partialorder %v4650, 0.0004427343
        %v4652 = vsel %vm4651, %v4649, %v4646
        %v4653 = vadd.f32 %v4306, 1.0
        %v4654 = vlog2.pop %v4653
        %v4655 = vmul.f32 %v4654, 0.6931472
        %v4656 = vmul.f32 -0.5, %v4306
        %v4657 = vadd.f32 %v4656, 1.0
        %v4658 = vmul.f32 %v4657, %v4306
        %v4659 = vand.u32 2147483647, %v4306
        %vm4660 = vcmp.lt.f32.partialorder %v4659, 0.0004427343
        %v4661 = vsel %vm4660, %v4658, %v4655
        %v4662 = vadd.f32 %v4308, 1.0
        %v4663 = vlog2.pop %v4662
        %v4664 = vmul.f32 %v4663, 0.6931472
        %v4665 = vmul.f32 -0.5, %v4308
        %v4666 = vadd.f32 %v4665, 1.0
        %v4667 = vmul.f32 %v4666, %v4308
        %v4668 = vand.u32 2147483647, %v4308
        %vm4669 = vcmp.lt.f32.partialorder %v4668, 0.0004427343
        %v4670 = vsel %vm4669, %v4667, %v4664
        %v4671 = vadd.f32 %v4310, 1.0
        %v4672 = vlog2.pop %v4671
        %v4673 = vmul.f32 %v4672, 0.6931472
        %v4674 = vmul.f32 -0.5, %v4310
        %v4675 = vadd.f32 %v4674, 1.0
        %v4676 = vmul.f32 %v4675, %v4310
        %v4677 = vand.u32 2147483647, %v4310
        %vm4678 = vcmp.lt.f32.partialorder %v4677, 0.0004427343
        %v4679 = vsel %vm4678, %v4676, %v4673
        %v4680 = vadd.f32 %v4312, 1.0
        %v4681 = vlog2.pop %v4680
        %v4682 = vmul.f32 %v4681, 0.6931472
        %v4683 = vmul.f32 -0.5, %v4312
        %v4684 = vadd.f32 %v4683, 1.0
        %v4685 = vmul.f32 %v4684, %v4312
        %v4686 = vand.u32 2147483647, %v4312
        %vm4687 = vcmp.lt.f32.partialorder %v4686, 0.0004427343
        %v4688 = vsel %vm4687, %v4685, %v4682
        %v4689 = vadd.f32 %v4314, 1.0
        %v4690 = vlog2.pop %v4689
        %v4691 = vmul.f32 %v4690, 0.6931472
        %v4692 = vmul.f32 -0.5, %v4314
        %v4693 = vadd.f32 %v4692, 1.0
        %v4694 = vmul.f32 %v4693, %v4314
        %v4695 = vand.u32 2147483647, %v4314
        %vm4696 = vcmp.lt.f32.partialorder %v4695, 0.0004427343
        %v4697 = vsel %vm4696, %v4694, %v4691
        %v4698 = vadd.f32 %v4316, 1.0
        %v4699 = vlog2.pop %v4698
        %v4700 = vmul.f32 %v4699, 0.6931472
        %v4701 = vmul.f32 -0.5, %v4316
        %v4702 = vadd.f32 %v4701, 1.0
        %v4703 = vmul.f32 %v4702, %v4316
        %v4704 = vand.u32 2147483647, %v4316
        %vm4705 = vcmp.lt.f32.partialorder %v4704, 0.0004427343
        %v4706 = vsel %vm4705, %v4703, %v4700
        %v4707 = vadd.f32 %v4318, 1.0
        %v4708 = vlog2.pop %v4707
        %v4709 = vmul.f32 %v4708, 0.6931472
        %v4710 = vmul.f32 -0.5, %v4318
        %v4711 = vadd.f32 %v4710, 1.0
        %v4712 = vmul.f32 %v4711, %v4318
        %v4713 = vand.u32 2147483647, %v4318
        %vm4714 = vcmp.lt.f32.partialorder %v4713, 0.0004427343
        %v4715 = vsel %vm4714, %v4712, %v4709
        %v4716 = vadd.f32 %v4320, 1.0
        %v4717 = vlog2.pop %v4716
        %v4718 = vmul.f32 %v4717, 0.6931472
        %v4719 = vmul.f32 -0.5, %v4320
        %v4720 = vadd.f32 %v4719, 1.0
        %v4721 = vmul.f32 %v4720, %v4320
        %v4722 = vand.u32 2147483647, %v4320
        %vm4723 = vcmp.lt.f32.partialorder %v4722, 0.0004427343
        %v4724 = vsel %vm4723, %v4721, %v4718
        %v4725 = vadd.f32 %v4322, 1.0
        %v4726 = vlog2.pop %v4725
        %v4727 = vmul.f32 %v4726, 0.6931472
        %v4728 = vmul.f32 -0.5, %v4322
        %v4729 = vadd.f32 %v4728, 1.0
        %v4730 = vmul.f32 %v4729, %v4322
        %v4731 = vand.u32 2147483647, %v4322
        %vm4732 = vcmp.lt.f32.partialorder %v4731, 0.0004427343
        %v4733 = vsel %vm4732, %v4730, %v4727
        %v4734 = vadd.f32 %v4324, 1.0
        %v4735 = vlog2.pop %v4734
        %v4736 = vmul.f32 %v4735, 0.6931472
        %v4737 = vmul.f32 -0.5, %v4324
        %v4738 = vadd.f32 %v4737, 1.0
        %v4739 = vmul.f32 %v4738, %v4324
        %v4740 = vand.u32 2147483647, %v4324
        %vm4741 = vcmp.lt.f32.partialorder %v4740, 0.0004427343
        %v4742 = vsel %vm4741, %v4739, %v4736
        %v4743 = vadd.f32 %v4326, 1.0
        %v4744 = vlog2.pop %v4743
        %v4745 = vmul.f32 %v4744, 0.6931472
        %v4746 = vmul.f32 -0.5, %v4326
        %v4747 = vadd.f32 %v4746, 1.0
        %v4748 = vmul.f32 %v4747, %v4326
        %v4749 = vand.u32 2147483647, %v4326
        %vm4750 = vcmp.lt.f32.partialorder %v4749, 0.0004427343
        %v4751 = vsel %vm4750, %v4748, %v4745
        %v4752 = vadd.f32 %v4328, 1.0
        %v4753 = vlog2.pop %v4752
        %v4754 = vmul.f32 %v4753, 0.6931472
        %v4755 = vmul.f32 -0.5, %v4328
        %v4756 = vadd.f32 %v4755, 1.0
        %v4757 = vmul.f32 %v4756, %v4328
        %v4758 = vand.u32 2147483647, %v4328
        %vm4759 = vcmp.lt.f32.partialorder %v4758, 0.0004427343
        %v4760 = vsel %vm4759, %v4757, %v4754
        %v4761 = vsel %vm4185, %v3651, %v4337
        %v4762 = vsel %vm4186, %v3654, %v4346
        %v4763 = vsel %vm4187, %v3659, %v4355
        %v4764 = vsel %vm4188, %v3662, %v4364
        %v4765 = vsel %vm4189, %v3667, %v4373
        %v4766 = vsel %vm4190, %v3670, %v4382
        %v4767 = vsel %vm4191, %v3675, %v4391
        %v4768 = vsel %vm4192, %v3678, %v4400
        %v4769 = vsel %vm4193, %v3683, %v4409
        %v4770 = vsel %vm4194, %v3686, %v4418
        %v4771 = vsel %vm4195, %v3691, %v4427
        %v4772 = vsel %vm4196, %v3694, %v4436
        %v4773 = vsel %vm4197, %v3699, %v4445
        %v4774 = vsel %vm4198, %v3702, %v4454
        %v4775 = vsel %vm4199, %v3707, %v4463
        %v4776 = vsel %vm4200, %v3710, %v4472
        %v4777 = vsel %vm4201, %v3715, %v4481
        %v4778 = vsel %vm4202, %v3718, %v4490
        %v4779 = vsel %vm4203, %v3723, %v4499
        %v4780 = vsel %vm4204, %v3726, %v4508
        %v4781 = vsel %vm4205, %v3731, %v4517
        %v4782 = vsel %vm4206, %v3734, %v4526
        %v4783 = vsel %vm4207, %v3739, %v4535
        %v4784 = vsel %vm4208, %v3742, %v4544
        %v4785 = vsel %vm4209, %v3747, %v4553
        %v4786 = vsel %vm4210, %v3750, %v4562
        %v4787 = vsel %vm4211, %v3755, %v4571
        %v4788 = vsel %vm4212, %v3758, %v4580
        %v4789 = vsel %vm4213, %v3763, %v4589
        %v4790 = vsel %vm4214, %v3766, %v4598
        %v4791 = vsel %vm4215, %v3771, %v4607
        %v4792 = vsel %vm4216, %v3774, %v4616
        %v4793 = vsel %vm4217, %v3779, %v4625
        %v4794 = vsel %vm4218, %v3782, %v4634
        %v4795 = vsel %vm4219, %v3787, %v4643
        %v4796 = vsel %vm4220, %v3790, %v4652
        %v4797 = vsel %vm4221, %v3795, %v4661
        %v4798 = vsel %vm4222, %v3798, %v4670
        %v4799 = vsel %vm4223, %v3803, %v4679
        %v4800 = vsel %vm4224, %v3806, %v4688
        %v4801 = vsel %vm4225, %v3811, %v4697
        %v4802 = vsel %vm4226, %v3814, %v4706
        %v4803 = vsel %vm4227, %v3819, %v4715
        %v4804 = vsel %vm4228, %v3822, %v4724
        %v4805 = vsel %vm4229, %v3827, %v4733
        %v4806 = vsel %vm4230, %v3830, %v4742
        %v4807 = vsel %vm4231, %v3835, %v4751
        %v4808 = vsel %vm4232, %v3838, %v4760
        %vm4809 = vcmask 7168
        %4810 = vst.msk [vmem:[%s347] sm:$0xff] %vm4809, %v4761
        %4811 = vst.msk [vmem:[%s347 + $0x8] sm:$0xff] %vm4809, %v4762
        %4812 = vst.msk [vmem:[%s347 + $0x10] sm:$0xff] %vm4809, %v4763
        %4813 = vst.msk [vmem:[%s347 + $0x18] sm:$0xff] %vm4809, %v4764
        %4814 = vst.msk [vmem:[%s347 + $0x20] sm:$0xff] %vm4809, %v4765
        %4815 = vst.msk [vmem:[%s347 + $0x28] sm:$0xff] %vm4809, %v4766
        %4816 = vst.msk [vmem:[%s347 + $0x30] sm:$0xff] %vm4809, %v4767
        %4817 = vst.msk [vmem:[%s347 + $0x38] sm:$0xff] %vm4809, %v4768
        %4818 = vst.msk [vmem:[%s347 + $0x40] sm:$0xff] %vm4809, %v4769
        %4819 = vst.msk [vmem:[%s347 + $0x48] sm:$0xff] %vm4809, %v4770
        %4820 = vst.msk [vmem:[%s347 + $0x50] sm:$0xff] %vm4809, %v4771
        %4821 = vst.msk [vmem:[%s347 + $0x58] sm:$0xff] %vm4809, %v4772
        %4822 = vst.msk [vmem:[%s347 + $0x60] sm:$0xff] %vm4809, %v4773
        %4823 = vst.msk [vmem:[%s347 + $0x68] sm:$0xff] %vm4809, %v4774
        %4824 = vst.msk [vmem:[%s347 + $0x70] sm:$0xff] %vm4809, %v4775
        %4825 = vst.msk [vmem:[%s347 + $0x78] sm:$0xff] %vm4809, %v4776
        %4826 = vst.msk [vmem:[%s347 + $0x80] sm:$0xff] %vm4809, %v4777
        %4827 = vst.msk [vmem:[%s347 + $0x88] sm:$0xff] %vm4809, %v4778
        %4828 = vst.msk [vmem:[%s347 + $0x90] sm:$0xff] %vm4809, %v4779
        %4829 = vst.msk [vmem:[%s347 + $0x98] sm:$0xff] %vm4809, %v4780
        %4830 = vst.msk [vmem:[%s347 + $0xa0] sm:$0xff] %vm4809, %v4781
        %4831 = vst.msk [vmem:[%s347 + $0xa8] sm:$0xff] %vm4809, %v4782
        %4832 = vst.msk [vmem:[%s347 + $0xb0] sm:$0xff] %vm4809, %v4783
        %4833 = vst.msk [vmem:[%s347 + $0xb8] sm:$0xff] %vm4809, %v4784
        %4834 = vst.msk [vmem:[%s347 + $0xc0] sm:$0xff] %vm4809, %v4785
        %4835 = vst.msk [vmem:[%s347 + $0xc8] sm:$0xff] %vm4809, %v4786
        %4836 = vst.msk [vmem:[%s347 + $0xd0] sm:$0xff] %vm4809, %v4787
        %4837 = vst.msk [vmem:[%s347 + $0xd8] sm:$0xff] %vm4809, %v4788
        %4838 = vst.msk [vmem:[%s347 + $0xe0] sm:$0xff] %vm4809, %v4789
        %4839 = vst.msk [vmem:[%s347 + $0xe8] sm:$0xff] %vm4809, %v4790
        %4840 = vst.msk [vmem:[%s347 + $0xf0] sm:$0xff] %vm4809, %v4791
        %4841 = vst.msk [vmem:[%s347 + $0xf8] sm:$0xff] %vm4809, %v4792
        %4842 = vst.msk [vmem:[%s347 + $0x100] sm:$0xff] %vm4809, %v4793
        %4843 = vst.msk [vmem:[%s347 + $0x108] sm:$0xff] %vm4809, %v4794
        %4844 = vst.msk [vmem:[%s347 + $0x110] sm:$0xff] %vm4809, %v4795
        %4845 = vst.msk [vmem:[%s347 + $0x118] sm:$0xff] %vm4809, %v4796
        %4846 = vst.msk [vmem:[%s347 + $0x120] sm:$0xff] %vm4809, %v4797
        %4847 = vst.msk [vmem:[%s347 + $0x128] sm:$0xff] %vm4809, %v4798
        %4848 = vst.msk [vmem:[%s347 + $0x130] sm:$0xff] %vm4809, %v4799
        %4849 = vst.msk [vmem:[%s347 + $0x138] sm:$0xff] %vm4809, %v4800
        %4850 = vst.msk [vmem:[%s347 + $0x140] sm:$0xff] %vm4809, %v4801
        %4851 = vst.msk [vmem:[%s347 + $0x148] sm:$0xff] %vm4809, %v4802
        %4852 = vst.msk [vmem:[%s347 + $0x150] sm:$0xff] %vm4809, %v4803
        %4853 = vst.msk [vmem:[%s347 + $0x158] sm:$0xff] %vm4809, %v4804
        %4854 = vst.msk [vmem:[%s347 + $0x160] sm:$0xff] %vm4809, %v4805
        %4855 = vst.msk [vmem:[%s347 + $0x168] sm:$0xff] %vm4809, %v4806
        %4856 = vst.msk [vmem:[%s347 + $0x170] sm:$0xff] %vm4809, %v4807
        %4857 = vst.msk [vmem:[%s347 + $0x178] sm:$0xff] %vm4809, %v4808
        %4858 = vst [vmem:[%s336] sm:$0xff] %v3947
        %4859 = vst [vmem:[%s336 + $0x8] sm:$0xff] %v3950
        %4860 = vst [vmem:[%s336 + $0x10] sm:$0xff] %v3955
        %4861 = vst [vmem:[%s336 + $0x18] sm:$0xff] %v3958
        %4862 = vst [vmem:[%s336 + $0x20] sm:$0xff] %v3963
        %4863 = vst [vmem:[%s336 + $0x28] sm:$0xff] %v3966
        %4864 = vst [vmem:[%s336 + $0x30] sm:$0xff] %v3971
        %4865 = vst [vmem:[%s336 + $0x38] sm:$0xff] %v3974
        %4866 = vst [vmem:[%s336 + $0x40] sm:$0xff] %v3979
        %4867 = vst [vmem:[%s336 + $0x48] sm:$0xff] %v3982
        %4868 = vst [vmem:[%s336 + $0x50] sm:$0xff] %v3987
        %4869 = vst [vmem:[%s336 + $0x58] sm:$0xff] %v3990
        %4870 = vst [vmem:[%s336 + $0x60] sm:$0xff] %v3995
        %4871 = vst [vmem:[%s336 + $0x68] sm:$0xff] %v3998
        %4872 = vst [vmem:[%s336 + $0x70] sm:$0xff] %v4003
        %4873 = vst [vmem:[%s336 + $0x78] sm:$0xff] %v4006
        %4874 = vst [vmem:[%s336 + $0x80] sm:$0xff] %v4011
        %4875 = vst [vmem:[%s336 + $0x88] sm:$0xff] %v4014
        %4876 = vst [vmem:[%s336 + $0x90] sm:$0xff] %v4019
        %4877 = vst [vmem:[%s336 + $0x98] sm:$0xff] %v4022
        %4878 = vst [vmem:[%s336 + $0xa0] sm:$0xff] %v4027
        %4879 = vst [vmem:[%s336 + $0xa8] sm:$0xff] %v4030
        %4880 = vst [vmem:[%s336 + $0xb0] sm:$0xff] %v4035
        %4881 = vst [vmem:[%s336 + $0xb8] sm:$0xff] %v4038
        %4882 = vst [vmem:[%s336 + $0xc0] sm:$0xff] %v4043
        %4883 = vst [vmem:[%s336 + $0xc8] sm:$0xff] %v4046
        %4884 = vst [vmem:[%s336 + $0xd0] sm:$0xff] %v4051
        %4885 = vst [vmem:[%s336 + $0xd8] sm:$0xff] %v4054
        %4886 = vst [vmem:[%s336 + $0xe0] sm:$0xff] %v4059
        %4887 = vst [vmem:[%s336 + $0xe8] sm:$0xff] %v4062
        %4888 = vst [vmem:[%s336 + $0xf0] sm:$0xff] %v4067
        %4889 = vst [vmem:[%s336 + $0xf8] sm:$0xff] %v4070
        %4890 = vst [vmem:[%s336 + $0x100] sm:$0xff] %v4075
        %4891 = vst [vmem:[%s336 + $0x108] sm:$0xff] %v4078
        %4892 = vst [vmem:[%s336 + $0x110] sm:$0xff] %v4083
        %4893 = vst [vmem:[%s336 + $0x118] sm:$0xff] %v4086
        %4894 = vst [vmem:[%s336 + $0x120] sm:$0xff] %v4091
        %4895 = vst [vmem:[%s336 + $0x128] sm:$0xff] %v4094
        %4896 = vst [vmem:[%s336 + $0x130] sm:$0xff] %v4099
        %4897 = vst [vmem:[%s336 + $0x138] sm:$0xff] %v4102
        %4898 = vst [vmem:[%s336 + $0x140] sm:$0xff] %v4107
        %4899 = vst [vmem:[%s336 + $0x148] sm:$0xff] %v4110
        %4900 = vst [vmem:[%s336 + $0x150] sm:$0xff] %v4115
        %4901 = vst [vmem:[%s336 + $0x158] sm:$0xff] %v4118
        %4902 = vst [vmem:[%s336 + $0x160] sm:$0xff] %v4123
        %4903 = vst [vmem:[%s336 + $0x168] sm:$0xff] %v4126
        %4904 = vst [vmem:[%s336 + $0x170] sm:$0xff] %v4131
        %4905 = vst [vmem:[%s336 + $0x178] sm:$0xff] %v4134
        %s4906 = smul.u32 48, %s26
        %p4907 = scmp.lt.s32.totalorder %s4906, 95
        %s4908 = scalar_select %p4907, %s4906, 95
        %s4909 = smul.addr %s4908, 8
        %s4910 = scalar_lea.vmem %s8, %s4909
        %s4911 = sand.u32 %s233, 1
        %s4912 = scalar_lea.sflag [#allocation4], %s4911
        %s4913 = sand.u32 %s233, 1
        %s4914 = smul.addr %s4913, 384
        %s4915 = scalar_lea.vmem [#allocation3], %s4914
        // Predicated region
        $region53: #{tpu_custom_call.1} parent=51 // pred_check
          %p4916 = pneg %p217
        $region54: #{tpu_custom_call.1} parent=51 // pred_check_branch
          %4918 = sbr.rel (%p4916) target = $region56
        $region55: #{tpu_custom_call.1} parent=51 // pred_region
          %s4919 = smul.u32 48, %s26
        $region56: #{tpu_custom_call.1} parent=51 // pred_fallthru
          _
        // Predicated region
        $region57: #{tpu_custom_call.1} parent=51 // pred_check
          %p4920 = pneg %p243
        $region58: #{tpu_custom_call.1} parent=51 // pred_check_branch
          %4922 = sbr.rel (%p4920) target = $region60
        $region59: #{tpu_custom_call.1} parent=51 // pred_region
          %s4923 = smul.u32 48, %s26
          %s4925 = ssub.s32 6144, 6144
          %4926 = vsyncadd %s4912, %s4925
          %s4927 = smul.addr %s4923, 128
          %s4928 = scalar_lea.hbm %s9, %s4927
          %s4929 = sshll.u32 %s4915, 4
          %s4930 = int_to_ptr.vmem [resolvable:$true] %s4929
          %4935 = dma.vmem_to_hbm [thread:$0]  %s4930, 6144, %s4928, %s4912, 128, 128, 8
        $region60: #{tpu_custom_call.1} parent=51 // pred_fallthru
          _
      $region52: #{tpu_custom_call.1} parent=5 // pred_fallthru
        _
      %p4936 = scmp.le.s32.totalorder 2, %s21
      // Predicated region
      $region61: #{tpu_custom_call.1} parent=5 // pred_check
        %p4937 = pneg %p4936
      $region62: #{tpu_custom_call.1} parent=5 // pred_check_branch
        %4939 = sbr.rel (%p4937) target = $region64
      $region63: #{tpu_custom_call.1} parent=5 // pred_region
        %s4940 = ssub.s32 %s21, 2
        // Predicated region
        $region65: #{tpu_custom_call.1} parent=63 // pred_check
          %p4941 = pneg %p223
        $region66: #{tpu_custom_call.1} parent=63 // pred_check_branch
          %4943 = sbr.rel (%p4941) target = $region68
        $region67: #{tpu_custom_call.1} parent=63 // pred_region
          %s4944 = smul.u32 48, %s27
          %p4945 = scmp.lt.s32.totalorder %s4944, 95
          %s4946 = scalar_select %p4945, %s4944, 95
          %s4947 = smul.addr %s4946, 8
          %s4948 = scalar_lea.vmem %s8, %s4947
        $region68: #{tpu_custom_call.1} parent=63 // pred_fallthru
          _
        // Predicated region
        $region69: #{tpu_custom_call.1} parent=63 // pred_check
          %p4949 = pneg %p249
        $region70: #{tpu_custom_call.1} parent=63 // pred_check_branch
          %4951 = sbr.rel (%p4949) target = $region72
        $region71: #{tpu_custom_call.1} parent=63 // pred_region
          %s4952 = sand.u32 %s234, 1
          %s4953 = scalar_lea.sflag [#allocation4], %s4952
          %s4954 = sand.u32 %s234, 1
          %s4955 = smul.addr %s4954, 384
          %s4956 = scalar_lea.vmem [#allocation3], %s4955
          %4957 = dma.done %s4953, 6144
        $region72: #{tpu_custom_call.1} parent=63 // pred_fallthru
          _
      $region64: #{tpu_custom_call.1} parent=5 // pred_fallthru
        _
    $region6: #{tpu_custom_call.1} parent=1 // loop_footer
      %s25 = sadd.s32 1, %s21
    $region7: #{tpu_custom_call.1} parent=1 // loop_footer_branch
      %20 = sbr.rel target = $region3
    $region8: #{tpu_custom_call.1} parent=1 // loop_exit
      _
    %4958 = vsyncpa [#allocation4], 1
    %s4959 = scalar_lea.sflag [#allocation4], 1
    %4960 = vsyncpa %s4959, 1

</llo_original>
